<compile_context>
chip_gen: v7x
topology: tpu7x:2x2x1
jax: 0.10.0
libtpu: 0.0.40
codegen_flags: <defaults>
</compile_context>

<pallas_src>
import functools

import numpy as np
import jax
import jax.numpy as jnp
from jax import lax
from jax.experimental import pallas as pl
from jax.experimental.pallas import tpu as pltpu


# -----------------------------------------------------------------------------
# Pallas kernel: one grid step == one batch element, full SKE forward inside.
# -----------------------------------------------------------------------------
def _ske_kernel(x_ref, wconv_ref, scale_ref, shift_ref,
                wfc_ref, bfc_ref, wa_ref, ba_ref, out_ref, xpad_ref,
                *, H, W, C):
    HW = H * W

    # --- Build the shared pad=2 window in VMEM (no HBM pad round-trip). -----
    xpad_ref[...] = jnp.zeros_like(xpad_ref)
    xpad_ref[pl.ds(2, H), pl.ds(2, W), :] = x_ref[0]

    # --- Split: im2col over the shared pad=2 window, one fused MXU matmul. ---
    cols = []
    for ty in range(5):                     # static unrolled 5x5 window
        for tx in range(5):
            tap = xpad_ref[pl.ds(ty, H), pl.ds(tx, W), :]      # (H, W, C)
            cols.append(tap.reshape(HW, C))
    col = jnp.concatenate(cols, axis=-1)                       # (HW, 25*C)

    fea = jnp.dot(col, wconv_ref[...],
                  preferred_element_type=jnp.float32)          # (HW, 2*C), f32 acc
    # folded conv-bias + BatchNorm (inference) + ReLU, both branches at once
    fea = jnp.maximum(fea * scale_ref[...] + shift_ref[...], 0.0)
    fea0 = fea[:, :C]                                          # 3x3 branch
    fea1 = fea[:, C:]                                          # 5x5 branch

    # --- Fuse: sum branches, global average pool, fc -> d. ---
    fea_s = jnp.mean(fea0 + fea1, axis=0, keepdims=True)       # (1, C)
    fea_z = jnp.dot(fea_s, wfc_ref[...],
                    preferred_element_type=jnp.float32) + bfc_ref[...]   # (1, d)

    # --- Select: fused per-branch fc -> (1, 2*C), softmax over the 2 branches. ---
    v = jnp.dot(fea_z, wa_ref[...],
                preferred_element_type=jnp.float32) + ba_ref[...]        # (1, 2*C)
    v0 = v[:, :C]
    v1 = v[:, C:]
    m = jnp.maximum(v0, v1)
    e0 = jnp.exp(v0 - m)
    e1 = jnp.exp(v1 - m)
    inv = 1.0 / (e0 + e1)        # exact divide (keeps the 1e-4 f32 tolerance)
    out = fea0 * (e0 * inv) + fea1 * (e1 * inv)                # (HW, C)
    out_ref[0] = out.astype(out_ref.dtype)


# -----------------------------------------------------------------------------
# Wrapper (glue): layout transpose, pallas_call plumbing (padding is in-kernel).
# -----------------------------------------------------------------------------
def ske_conv_pallas(x_nchw, p, *, compute_dtype=jnp.float32):
    B, C, H, W = x_nchw.shape
    d = p["wfc"].shape[1]
    HW = H * W

    # NHWC; single fused transpose+cast.  No HBM pad copy (done in-kernel).
    x = jnp.transpose(x_nchw, (0, 2, 3, 1)).astype(compute_dtype)
    wconv = p["wconv"].astype(compute_dtype)

    kern = functools.partial(_ske_kernel, H=H, W=W, C=C)

    # Rough per-step VMEM need -> explicit (conservative) scoped-VMEM limit.
    elt = jnp.dtype(compute_dtype).itemsize
    per_step = (2 * H * W * C * elt                    # double-buffered input block
                + (H + 4) * (W + 4) * C * elt          # padded-window scratch
                + 2 * 25 * C * 2 * C * elt             # fused conv weight (resident)
                + HW * 25 * C * elt                    # im2col value
                + 2 * HW * 2 * C * 4                   # fea + branch views (f32)
                + 2 * HW * C * 4                       # double-buffered output
                + (C * d + d * 2 * C + 6 * C + 2 * d) * 4)
    vmem_limit = int(min(64 * 2 ** 20, max(32 * 2 ** 20, 2 * per_step)))

    out_hwc = pl.pallas_call(
        kern,
        out_shape=jax.ShapeDtypeStruct((B, HW, C), jnp.float32),
        grid=(B,),
        in_specs=[
            pl.BlockSpec((1, H, W, C), lambda b: (b, 0, 0, 0)),  # unpadded input
            pl.BlockSpec((25 * C, 2 * C), lambda b: (0, 0)),     # fused conv weight
            pl.BlockSpec((1, 2 * C), lambda b: (0, 0)),          # folded BN scale
            pl.BlockSpec((1, 2 * C), lambda b: (0, 0)),          # folded BN shift
            pl.BlockSpec((C, d), lambda b: (0, 0)),              # fc weight
            pl.BlockSpec((1, d), lambda b: (0, 0)),              # fc bias
            pl.BlockSpec((d, 2 * C), lambda b: (0, 0)),          # fused attention fcs
            pl.BlockSpec((1, 2 * C), lambda b: (0, 0)),          # fused attention bias
        ],
        out_specs=pl.BlockSpec((1, HW, C), lambda b: (b, 0, 0)),
        scratch_shapes=[pltpu.VMEM((H + 4, W + 4, C), compute_dtype)],
        compiler_params=pltpu.CompilerParams(
            dimension_semantics=("parallel",),
            vmem_limit_bytes=vmem_limit),
    )(x, wconv, p["scale"], p["shift"],
      p["wfc"], p["bfc"], p["wa"], p["ba"])

    return jnp.transpose(out_hwc, (0, 2, 1)).reshape(B, C, H, W)   # back to NCHW


# -----------------------------------------------------------------------------
# Parameter construction (synthetic; mirrors the nn.Module shapes).
# -----------------------------------------------------------------------------
def _combined_conv_weight(w3, w5, C, G):
    """Grouped 3x3 / 5x5 OIHW conv weights -> one dense (25*C, 2*C) im2col weight.

    Row layout: (tap, in_channel) with tap = ty*5 + tx over the shared pad=2
    window; column layout: [3x3-branch out channels | 5x5-branch out channels].
    The 3x3 taps sit at the 9 centre offsets (1..3, 1..3) of the 5x5 window.
    """
    Cg = C // G
    w3n = np.asarray(jax.device_get(w3), np.float32)   # (C, Cg, 3, 3)
    w5n = np.asarray(jax.device_get(w5), np.float32)   # (C, Cg, 5, 5)
    wc = np.zeros((25, C, 2 * C), np.float32)
    for co in range(C):
        g = co // Cg
        sl = slice(g * Cg, (g + 1) * Cg)               # block-diag (grouped)
        w3p = np.zeros((Cg, 5, 5), np.float32)
        w3p[:, 1:4, 1:4] = w3n[co]                     # centre the 3x3 taps
        wc[:, sl, co] = w3p.reshape(Cg, 25).T
        wc[:, sl, C + co] = w5n[co].reshape(Cg, 25).T
    return jnp.asarray(wc.reshape(25 * C, 2 * C))


def init_params(key, C, G=2, L=32, reduction=2):
    Cg = C // G
    d = max(int(C / reduction), L)
    eps = 1e-5
    keys = iter(jax.random.split(key, 24))
    nxt = lambda: next(keys)

    raw = {"G": G, "eps": eps, "conv": [], "wa": [], "ba": []}
    conv_w, scales, shifts = [], [], []
    for m in range(2):
        K = 3 + 2 * m
        bound = 1.0 / np.sqrt(Cg * K * K)
        w = jax.random.uniform(nxt(), (C, Cg, K, K), jnp.float32, -bound, bound)
        b = jax.random.uniform(nxt(), (C,), jnp.float32, -bound, bound)
        gamma = jax.random.uniform(nxt(), (C,), jnp.float32, 0.5, 1.5)
        beta = 0.1 * jax.random.normal(nxt(), (C,), jnp.float32)
        rmean = 0.1 * jax.random.normal(nxt(), (C,), jnp.float32)
        rvar = jax.random.uniform(nxt(), (C,), jnp.float32, 0.5, 1.5)
        raw["conv"].append((w, b, gamma, beta, rmean, rvar))

        scale = gamma / jnp.sqrt(rvar + eps)
        shift = (b - rmean) * scale + beta
        conv_w.append(w)
        scales.append(scale)
        shifts.append(shift)

    kp = {
        "wconv": _combined_conv_weight(conv_w[0], conv_w[1], C, G),
        "scale": jnp.concatenate(scales).reshape(1, 2 * C),
        "shift": jnp.concatenate(shifts).reshape(1, 2 * C),
    }

    bound = 1.0 / np.sqrt(C)
    wfc = jax.random.uniform(nxt(), (d, C), jnp.float32, -bound, bound)
    bfc = jax.random.uniform(nxt(), (d,), jnp.float32, -bound, bound)
    raw["wfc"], raw["bfc"] = wfc, bfc
    kp["wfc"] = wfc.T                      # (C, d)
    kp["bfc"] = bfc.reshape(1, d)

    bound = 1.0 / np.sqrt(d)
    was, bas = [], []
    for m in range(2):
        wa = jax.random.uniform(nxt(), (C, d), jnp.float32, -bound, bound)
        ba = jax.random.uniform(nxt(), (C,), jnp.float32, -bound, bound)
        raw["wa"].append(wa)
        raw["ba"].append(ba)
        was.append(wa.T)
        bas.append(ba)
    kp["wa"] = jnp.concatenate(was, axis=1)            # (d, 2*C)
    kp["ba"] = jnp.concatenate(bas).reshape(1, 2 * C)
    return raw, kp


# -----------------------------------------------------------------------------
# Pure-JAX reference (same math as the PyTorch module, BN in inference mode).
# -----------------------------------------------------------------------------
def ske_conv_reference(x, raw):
    eps = raw["eps"]
    feas = []
    for m in range(2):
        w, b, gamma, beta, rmean, rvar = raw["conv"][m]
        pad = 1 + m
        y = lax.conv_general_dilated(
            x, w, window_strides=(1, 1), padding=((pad, pad), (pad, pad)),
            dimension_numbers=("NCHW", "OIHW", "NCHW"),
            feature_group_count=raw["G"])
        y = y + b[None, :, None, None]
        y = (y - rmean[None, :, None, None]) * (
            gamma / jnp.sqrt(rvar + eps))[None, :, None, None] + beta[None, :, None, None]
        feas.append(jnp.maximum(y, 0.0))
    feas = jnp.stack(feas, axis=1)                    # (B, M, C, H, W)
    fea_u = feas.sum(axis=1)
    fea_s = fea_u.mean(axis=(-1, -2))                 # (B, C)
    fea_z = fea_s @ raw["wfc"].T + raw["bfc"]         # (B, d)
    vecs = jnp.stack([fea_z @ raw["wa"][m].T + raw["ba"][m] for m in range(2)],
                     axis=1)                          # (B, M, C)
    att = jax.nn.softmax(vecs, axis=1)
    return (feas * att[:, :, :, None, None]).sum(axis=1)


if __name__ == "__main__":
    B, C, H, W = 2, 4, 16, 16            # small NCHW input, G=2 divides C
    key = jax.random.PRNGKey(0)
    kx, kp_key = jax.random.split(key)
    x = jax.random.normal(kx, (B, C, H, W), jnp.float32)

    raw, kparams = init_params(kp_key, C)
    # TODO(synk): BatchNorm2d is implemented in inference mode (folded affine);
    # training-mode batch statistics are not reproduced.

    ref = ske_conv_reference(x, raw)

    # f32 MXU path: tight tolerance.
    out = jax.jit(functools.partial(ske_conv_pallas,
                                    compute_dtype=jnp.float32))(x, kparams)
    out = jax.block_until_ready(out)
    np.testing.assert_allclose(np.asarray(out), np.asarray(ref),
                               rtol=1e-4, atol=1e-4)

    # bf16 MXU path (f32 accumulation / epilogue): looser tolerance.
    out_bf16 = jax.jit(functools.partial(ske_conv_pallas,
                                         compute_dtype=jnp.bfloat16))(x, kparams)
    out_bf16 = jax.block_until_ready(out_bf16)
    np.testing.assert_allclose(np.asarray(out_bf16), np.asarray(ref),
                               rtol=5e-2, atol=5e-2)

    print("KERNEL_OK")
</pallas_src>

<mosaic_0001>
module attributes {stable_mosaic.version = 11 : i64} {
  func.func @_ske_kernel(%arg0: i32, %arg1: memref<1x16x16x4xf32, #tpu.memory_space<vmem>>, %arg2: memref<100x8xf32, #tpu.memory_space<vmem>>, %arg3: memref<1x8xf32, #tpu.memory_space<vmem>>, %arg4: memref<1x8xf32, #tpu.memory_space<vmem>>, %arg5: memref<4x32xf32, #tpu.memory_space<vmem>>, %arg6: memref<1x32xf32, #tpu.memory_space<vmem>>, %arg7: memref<32x8xf32, #tpu.memory_space<vmem>>, %arg8: memref<1x8xf32, #tpu.memory_space<vmem>>, %arg9: memref<1x256x4xf32, #tpu.memory_space<vmem>>, %arg10: memref<20x20x4xf32, #tpu.memory_space<vmem>>) attributes {dimension_semantics = [#tpu.dimension_semantics<parallel>], iteration_bounds = array<i64: 2>, scalar_prefetch = 0 : i64, scratch_operands = 1 : i64, tpu.core_type = #tpu.core_type<tc>, window_params = [{transform_indices = @transform_0, window_bounds = array<i64: 1, 16, 16, 4>}, {pipeline_mode = #tpu.pipeline_mode<synchronous>, transform_indices = @transform_1, window_bounds = array<i64: 100, 8>}, {pipeline_mode = #tpu.pipeline_mode<synchronous>, transform_indices = @transform_2, window_bounds = array<i64: 1, 8>}, {pipeline_mode = #tpu.pipeline_mode<synchronous>, transform_indices = @transform_3, window_bounds = array<i64: 1, 8>}, {pipeline_mode = #tpu.pipeline_mode<synchronous>, transform_indices = @transform_4, window_bounds = array<i64: 4, 32>}, {pipeline_mode = #tpu.pipeline_mode<synchronous>, transform_indices = @transform_5, window_bounds = array<i64: 1, 32>}, {pipeline_mode = #tpu.pipeline_mode<synchronous>, transform_indices = @transform_6, window_bounds = array<i64: 32, 8>}, {pipeline_mode = #tpu.pipeline_mode<synchronous>, transform_indices = @transform_7, window_bounds = array<i64: 1, 8>}, {transform_indices = @transform_8, window_bounds = array<i64: 1, 256, 4>}]} {
    %cst = arith.constant 0.000000e+00 : f32
    %0 = vector.broadcast %cst : f32 to vector<20x20x4xf32>
    %c0 = arith.constant 0 : index
    %c0_0 = arith.constant 0 : index
    %c0_1 = arith.constant 0 : index
    %1 = vector.load %arg10[%c0, %c0_0, %c0_1] : memref<20x20x4xf32, #tpu.memory_space<vmem>>, vector<20x20x4xf32>
    tpu.vector_store %arg10[%c0, %c0_0, %c0_1], %0 {strides = array<i32>} : memref<20x20x4xf32, #tpu.memory_space<vmem>>, vector<20x20x4xf32>,
    %c0_2 = arith.constant 0 : index
    %c0_3 = arith.constant 0 : index
    %c0_4 = arith.constant 0 : index
    %c0_5 = arith.constant 0 : index
    %2 = vector.load %arg1[%c0_2, %c0_3, %c0_4, %c0_5] : memref<1x16x16x4xf32, #tpu.memory_space<vmem>>, vector<1x16x16x4xf32>
    %3 = vector.shape_cast %2 : vector<1x16x16x4xf32> to vector<16x16x4xf32>
    %c2 = arith.constant 2 : index
    %c2_6 = arith.constant 2 : index
    %c0_7 = arith.constant 0 : index
    %4 = vector.load %arg10[%c2, %c2_6, %c0_7] : memref<20x20x4xf32, #tpu.memory_space<vmem>>, vector<16x16x4xf32>
    tpu.vector_store %arg10[%c2, %c2_6, %c0_7], %3 {strides = array<i32>} : memref<20x20x4xf32, #tpu.memory_space<vmem>>, vector<16x16x4xf32>,
    %c0_8 = arith.constant 0 : index
    %c0_9 = arith.constant 0 : index
    %c0_10 = arith.constant 0 : index
    %5 = vector.load %arg10[%c0_8, %c0_9, %c0_10] : memref<20x20x4xf32, #tpu.memory_space<vmem>>, vector<16x16x4xf32>
    %6 = vector.shape_cast %5 : vector<16x16x4xf32> to vector<256x4xf32>
    %c0_11 = arith.constant 0 : index
    %c1 = arith.constant 1 : index
    %c0_12 = arith.constant 0 : index
    %7 = vector.load %arg10[%c0_11, %c1, %c0_12] : memref<20x20x4xf32, #tpu.memory_space<vmem>>, vector<16x16x4xf32>
    %8 = vector.shape_cast %7 : vector<16x16x4xf32> to vector<256x4xf32>
    %c0_13 = arith.constant 0 : index
    %c2_14 = arith.constant 2 : index
    %c0_15 = arith.constant 0 : index
    %9 = vector.load %arg10[%c0_13, %c2_14, %c0_15] : memref<20x20x4xf32, #tpu.memory_space<vmem>>, vector<16x16x4xf32>
    %10 = vector.shape_cast %9 : vector<16x16x4xf32> to vector<256x4xf32>
    %c0_16 = arith.constant 0 : index
    %c3 = arith.constant 3 : index
    %c0_17 = arith.constant 0 : index
    %11 = vector.load %arg10[%c0_16, %c3, %c0_17] : memref<20x20x4xf32, #tpu.memory_space<vmem>>, vector<16x16x4xf32>
    %12 = vector.shape_cast %11 : vector<16x16x4xf32> to vector<256x4xf32>
    %c0_18 = arith.constant 0 : index
    %c4 = arith.constant 4 : index
    %c0_19 = arith.constant 0 : index
    %13 = vector.load %arg10[%c0_18, %c4, %c0_19] : memref<20x20x4xf32, #tpu.memory_space<vmem>>, vector<16x16x4xf32>
    %14 = vector.shape_cast %13 : vector<16x16x4xf32> to vector<256x4xf32>
    %c1_20 = arith.constant 1 : index
    %c0_21 = arith.constant 0 : index
    %c0_22 = arith.constant 0 : index
    %15 = vector.load %arg10[%c1_20, %c0_21, %c0_22] : memref<20x20x4xf32, #tpu.memory_space<vmem>>, vector<16x16x4xf32>
    %16 = vector.shape_cast %15 : vector<16x16x4xf32> to vector<256x4xf32>
    %c1_23 = arith.constant 1 : index
    %c1_24 = arith.constant 1 : index
    %c0_25 = arith.constant 0 : index
    %17 = vector.load %arg10[%c1_23, %c1_24, %c0_25] : memref<20x20x4xf32, #tpu.memory_space<vmem>>, vector<16x16x4xf32>
    %18 = vector.shape_cast %17 : vector<16x16x4xf32> to vector<256x4xf32>
    %c1_26 = arith.constant 1 : index
    %c2_27 = arith.constant 2 : index
    %c0_28 = arith.constant 0 : index
    %19 = vector.load %arg10[%c1_26, %c2_27, %c0_28] : memref<20x20x4xf32, #tpu.memory_space<vmem>>, vector<16x16x4xf32>
    %20 = vector.shape_cast %19 : vector<16x16x4xf32> to vector<256x4xf32>
    %c1_29 = arith.constant 1 : index
    %c3_30 = arith.constant 3 : index
    %c0_31 = arith.constant 0 : index
    %21 = vector.load %arg10[%c1_29, %c3_30, %c0_31] : memref<20x20x4xf32, #tpu.memory_space<vmem>>, vector<16x16x4xf32>
    %22 = vector.shape_cast %21 : vector<16x16x4xf32> to vector<256x4xf32>
    %c1_32 = arith.constant 1 : index
    %c4_33 = arith.constant 4 : index
    %c0_34 = arith.constant 0 : index
    %23 = vector.load %arg10[%c1_32, %c4_33, %c0_34] : memref<20x20x4xf32, #tpu.memory_space<vmem>>, vector<16x16x4xf32>
    %24 = vector.shape_cast %23 : vector<16x16x4xf32> to vector<256x4xf32>
    %c2_35 = arith.constant 2 : index
    %c0_36 = arith.constant 0 : index
    %c0_37 = arith.constant 0 : index
    %25 = vector.load %arg10[%c2_35, %c0_36, %c0_37] : memref<20x20x4xf32, #tpu.memory_space<vmem>>, vector<16x16x4xf32>
    %26 = vector.shape_cast %25 : vector<16x16x4xf32> to vector<256x4xf32>
    %c2_38 = arith.constant 2 : index
    %c1_39 = arith.constant 1 : index
    %c0_40 = arith.constant 0 : index
    %27 = vector.load %arg10[%c2_38, %c1_39, %c0_40] : memref<20x20x4xf32, #tpu.memory_space<vmem>>, vector<16x16x4xf32>
    %28 = vector.shape_cast %27 : vector<16x16x4xf32> to vector<256x4xf32>
    %c2_41 = arith.constant 2 : index
    %c2_42 = arith.constant 2 : index
    %c0_43 = arith.constant 0 : index
    %29 = vector.load %arg10[%c2_41, %c2_42, %c0_43] : memref<20x20x4xf32, #tpu.memory_space<vmem>>, vector<16x16x4xf32>
    %30 = vector.shape_cast %29 : vector<16x16x4xf32> to vector<256x4xf32>
    %c2_44 = arith.constant 2 : index
    %c3_45 = arith.constant 3 : index
    %c0_46 = arith.constant 0 : index
    %31 = vector.load %arg10[%c2_44, %c3_45, %c0_46] : memref<20x20x4xf32, #tpu.memory_space<vmem>>, vector<16x16x4xf32>
    %32 = vector.shape_cast %31 : vector<16x16x4xf32> to vector<256x4xf32>
    %c2_47 = arith.constant 2 : index
    %c4_48 = arith.constant 4 : index
    %c0_49 = arith.constant 0 : index
    %33 = vector.load %arg10[%c2_47, %c4_48, %c0_49] : memref<20x20x4xf32, #tpu.memory_space<vmem>>, vector<16x16x4xf32>
    %34 = vector.shape_cast %33 : vector<16x16x4xf32> to vector<256x4xf32>
    %c3_50 = arith.constant 3 : index
    %c0_51 = arith.constant 0 : index
    %c0_52 = arith.constant 0 : index
    %35 = vector.load %arg10[%c3_50, %c0_51, %c0_52] : memref<20x20x4xf32, #tpu.memory_space<vmem>>, vector<16x16x4xf32>
    %36 = vector.shape_cast %35 : vector<16x16x4xf32> to vector<256x4xf32>
    %c3_53 = arith.constant 3 : index
    %c1_54 = arith.constant 1 : index
    %c0_55 = arith.constant 0 : index
    %37 = vector.load %arg10[%c3_53, %c1_54, %c0_55] : memref<20x20x4xf32, #tpu.memory_space<vmem>>, vector<16x16x4xf32>
    %38 = vector.shape_cast %37 : vector<16x16x4xf32> to vector<256x4xf32>
    %c3_56 = arith.constant 3 : index
    %c2_57 = arith.constant 2 : index
    %c0_58 = arith.constant 0 : index
    %39 = vector.load %arg10[%c3_56, %c2_57, %c0_58] : memref<20x20x4xf32, #tpu.memory_space<vmem>>, vector<16x16x4xf32>
    %40 = vector.shape_cast %39 : vector<16x16x4xf32> to vector<256x4xf32>
    %c3_59 = arith.constant 3 : index
    %c3_60 = arith.constant 3 : index
    %c0_61 = arith.constant 0 : index
    %41 = vector.load %arg10[%c3_59, %c3_60, %c0_61] : memref<20x20x4xf32, #tpu.memory_space<vmem>>, vector<16x16x4xf32>
    %42 = vector.shape_cast %41 : vector<16x16x4xf32> to vector<256x4xf32>
    %c3_62 = arith.constant 3 : index
    %c4_63 = arith.constant 4 : index
    %c0_64 = arith.constant 0 : index
    %43 = vector.load %arg10[%c3_62, %c4_63, %c0_64] : memref<20x20x4xf32, #tpu.memory_space<vmem>>, vector<16x16x4xf32>
    %44 = vector.shape_cast %43 : vector<16x16x4xf32> to vector<256x4xf32>
    %c4_65 = arith.constant 4 : index
    %c0_66 = arith.constant 0 : index
    %c0_67 = arith.constant 0 : index
    %45 = vector.load %arg10[%c4_65, %c0_66, %c0_67] : memref<20x20x4xf32, #tpu.memory_space<vmem>>, vector<16x16x4xf32>
    %46 = vector.shape_cast %45 : vector<16x16x4xf32> to vector<256x4xf32>
    %c4_68 = arith.constant 4 : index
    %c1_69 = arith.constant 1 : index
    %c0_70 = arith.constant 0 : index
    %47 = vector.load %arg10[%c4_68, %c1_69, %c0_70] : memref<20x20x4xf32, #tpu.memory_space<vmem>>, vector<16x16x4xf32>
    %48 = vector.shape_cast %47 : vector<16x16x4xf32> to vector<256x4xf32>
    %c4_71 = arith.constant 4 : index
    %c2_72 = arith.constant 2 : index
    %c0_73 = arith.constant 0 : index
    %49 = vector.load %arg10[%c4_71, %c2_72, %c0_73] : memref<20x20x4xf32, #tpu.memory_space<vmem>>, vector<16x16x4xf32>
    %50 = vector.shape_cast %49 : vector<16x16x4xf32> to vector<256x4xf32>
    %c4_74 = arith.constant 4 : index
    %c3_75 = arith.constant 3 : index
    %c0_76 = arith.constant 0 : index
    %51 = vector.load %arg10[%c4_74, %c3_75, %c0_76] : memref<20x20x4xf32, #tpu.memory_space<vmem>>, vector<16x16x4xf32>
    %52 = vector.shape_cast %51 : vector<16x16x4xf32> to vector<256x4xf32>
    %c4_77 = arith.constant 4 : index
    %c4_78 = arith.constant 4 : index
    %c0_79 = arith.constant 0 : index
    %53 = vector.load %arg10[%c4_77, %c4_78, %c0_79] : memref<20x20x4xf32, #tpu.memory_space<vmem>>, vector<16x16x4xf32>
    %54 = vector.shape_cast %53 : vector<16x16x4xf32> to vector<256x4xf32>
    %55 = tpu.concatenate %6, %8, %10, %12, %14, %16, %18, %20, %22, %24, %26, %28, %30, %32, %34, %36 in 1 : vector<256x4xf32>, vector<256x4xf32>, vector<256x4xf32>, vector<256x4xf32>, vector<256x4xf32>, vector<256x4xf32>, vector<256x4xf32>, vector<256x4xf32>, vector<256x4xf32>, vector<256x4xf32>, vector<256x4xf32>, vector<256x4xf32>, vector<256x4xf32>, vector<256x4xf32>, vector<256x4xf32>, vector<256x4xf32> -> vector<256x64xf32>
    %56 = tpu.concatenate %38, %40, %42, %44, %46, %48, %50, %52, %54 in 1 : vector<256x4xf32>, vector<256x4xf32>, vector<256x4xf32>, vector<256x4xf32>, vector<256x4xf32>, vector<256x4xf32>, vector<256x4xf32>, vector<256x4xf32>, vector<256x4xf32> -> vector<256x36xf32>
    %57 = tpu.concatenate %55, %56 in 1 : vector<256x64xf32>, vector<256x36xf32> -> vector<256x100xf32>
    %c0_80 = arith.constant 0 : index
    %c0_81 = arith.constant 0 : index
    %58 = vector.load %arg2[%c0_80, %c0_81] : memref<100x8xf32, #tpu.memory_space<vmem>>, vector<100x8xf32>
    %cst_82 = arith.constant dense<0.000000e+00> : vector<256x8xf32>
    %59 = tpu.matmul %57, %58, %cst_82 {dimension_numbers = #tpu.dot_dimension_numbers<[1], [0], [0], [1], [0, 0, 1, 1], [], []>} : vector<256x100xf32>, vector<100x8xf32>, vector<256x8xf32> -> vector<256x8xf32>
    %c0_83 = arith.constant 0 : index
    %c0_84 = arith.constant 0 : index
    %60 = vector.load %arg3[%c0_83, %c0_84] : memref<1x8xf32, #tpu.memory_space<vmem>>, vector<1x8xf32>
    %61 = vector.broadcast %60 : vector<1x8xf32> to vector<256x8xf32>
    %62 = arith.mulf %59, %61 : vector<256x8xf32>
    %c0_85 = arith.constant 0 : index
    %c0_86 = arith.constant 0 : index
    %63 = vector.load %arg4[%c0_85, %c0_86] : memref<1x8xf32, #tpu.memory_space<vmem>>, vector<1x8xf32>
    %64 = vector.broadcast %63 : vector<1x8xf32> to vector<256x8xf32>
    %65 = arith.addf %62, %64 : vector<256x8xf32>
    %cst_87 = arith.constant 0.000000e+00 : f32
    %66 = vector.broadcast %cst_87 : f32 to vector<256x8xf32>
    %67 = arith.maximumf %65, %66 : vector<256x8xf32>
    %68 = vector.extract_strided_slice %67 {offsets = [0, 0], sizes = [256, 4], strides = [1, 1]} : vector<256x8xf32> to vector<256x4xf32>
    %69 = vector.extract_strided_slice %67 {offsets = [0, 4], sizes = [256, 4], strides = [1, 1]} : vector<256x8xf32> to vector<256x4xf32>
    %70 = arith.addf %68, %69 : vector<256x4xf32>
    %cst_88 = arith.constant dense<0.000000e+00> : vector<4xf32>
    %71 = vector.multi_reduction <add>, %70, %cst_88 [0] : vector<256x4xf32> to vector<4xf32>
    %72 = vector.shape_cast %71 : vector<4xf32> to vector<1x4xf32>
    %cst_89 = arith.constant 2.560000e+02 : f32
    %73 = vector.broadcast %cst_89 : f32 to vector<1x4xf32>
    %74 = arith.divf %72, %73 : vector<1x4xf32>
    %c0_90 = arith.constant 0 : index
    %c0_91 = arith.constant 0 : index
    %75 = vector.load %arg5[%c0_90, %c0_91] : memref<4x32xf32, #tpu.memory_space<vmem>>, vector<4x32xf32>
    %cst_92 = arith.constant dense<0.000000e+00> : vector<1x32xf32>
    %76 = tpu.matmul %74, %75, %cst_92 {dimension_numbers = #tpu.dot_dimension_numbers<[1], [0], [0], [1], [0, 0, 1, 1], [], []>} : vector<1x4xf32>, vector<4x32xf32>, vector<1x32xf32> -> vector<1x32xf32>
    %c0_93 = arith.constant 0 : index
    %c0_94 = arith.constant 0 : index
    %77 = vector.load %arg6[%c0_93, %c0_94] : memref<1x32xf32, #tpu.memory_space<vmem>>, vector<1x32xf32>
    %78 = arith.addf %76, %77 : vector<1x32xf32>
    %c0_95 = arith.constant 0 : index
    %c0_96 = arith.constant 0 : index
    %79 = vector.load %arg7[%c0_95, %c0_96] : memref<32x8xf32, #tpu.memory_space<vmem>>, vector<32x8xf32>
    %cst_97 = arith.constant dense<0.000000e+00> : vector<1x8xf32>
    %80 = tpu.matmul %78, %79, %cst_97 {dimension_numbers = #tpu.dot_dimension_numbers<[1], [0], [0], [1], [0, 0, 1, 1], [], []>} : vector<1x32xf32>, vector<32x8xf32>, vector<1x8xf32> -> vector<1x8xf32>
    %c0_98 = arith.constant 0 : index
    %c0_99 = arith.constant 0 : index
    %81 = vector.load %arg8[%c0_98, %c0_99] : memref<1x8xf32, #tpu.memory_space<vmem>>, vector<1x8xf32>
    %82 = arith.addf %80, %81 : vector<1x8xf32>
    %83 = vector.extract_strided_slice %82 {offsets = [0, 0], sizes = [1, 4], strides = [1, 1]} : vector<1x8xf32> to vector<1x4xf32>
    %84 = vector.extract_strided_slice %82 {offsets = [0, 4], sizes = [1, 4], strides = [1, 1]} : vector<1x8xf32> to vector<1x4xf32>
    %85 = arith.maximumf %83, %84 : vector<1x4xf32>
    %86 = arith.subf %83, %85 : vector<1x4xf32>
    %87 = math.exp %86 : vector<1x4xf32>
    %88 = arith.subf %84, %85 : vector<1x4xf32>
    %89 = math.exp %88 : vector<1x4xf32>
    %90 = arith.addf %87, %89 : vector<1x4xf32>
    %cst_100 = arith.constant 1.000000e+00 : f32
    %91 = vector.broadcast %cst_100 : f32 to vector<1x4xf32>
    %92 = arith.divf %91, %90 : vector<1x4xf32>
    %93 = arith.mulf %87, %92 : vector<1x4xf32>
    %94 = vector.broadcast %93 : vector<1x4xf32> to vector<256x4xf32>
    %95 = arith.mulf %68, %94 : vector<256x4xf32>
    %96 = arith.mulf %89, %92 : vector<1x4xf32>
    %97 = vector.broadcast %96 : vector<1x4xf32> to vector<256x4xf32>
    %98 = arith.mulf %69, %97 : vector<256x4xf32>
    %99 = arith.addf %95, %98 : vector<256x4xf32>
    %c0_101 = arith.constant 0 : index
    %c0_102 = arith.constant 0 : index
    %c0_103 = arith.constant 0 : index
    %100 = vector.load %arg9[%c0_101, %c0_102, %c0_103] : memref<1x256x4xf32, #tpu.memory_space<vmem>>, vector<1x256x4xf32>
    %101 = vector.shape_cast %100 : vector<1x256x4xf32> to vector<256x4xf32>
    %102 = vector.shape_cast %99 : vector<256x4xf32> to vector<1x256x4xf32>
    tpu.vector_store %arg9[%c0_101, %c0_102, %c0_103], %102 {strides = array<i32>} : memref<1x256x4xf32, #tpu.memory_space<vmem>>, vector<1x256x4xf32>,
    return
  }
  func.func @transform_0(%arg0: i32) -> (i32, i32, i32, i32) {
    %c0_i32 = arith.constant 0 : i32
    %c0_i32_0 = arith.constant 0 : i32
    %c0_i32_1 = arith.constant 0 : i32
    %c0_i32_2 = arith.constant 0 : i32
    return %arg0, %c0_i32, %c0_i32_0, %c0_i32_1 : i32, i32, i32, i32
  }
  func.func @transform_1(%arg0: i32) -> (i32, i32) {
    %c0_i32 = arith.constant 0 : i32
    %c0_i32_0 = arith.constant 0 : i32
    %c0_i32_1 = arith.constant 0 : i32
    return %c0_i32, %c0_i32_0 : i32, i32
  }
  func.func @transform_2(%arg0: i32) -> (i32, i32) {
    %c0_i32 = arith.constant 0 : i32
    %c0_i32_0 = arith.constant 0 : i32
    %c0_i32_1 = arith.constant 0 : i32
    return %c0_i32, %c0_i32_0 : i32, i32
  }
  func.func @transform_3(%arg0: i32) -> (i32, i32) {
    %c0_i32 = arith.constant 0 : i32
    %c0_i32_0 = arith.constant 0 : i32
    %c0_i32_1 = arith.constant 0 : i32
    return %c0_i32, %c0_i32_0 : i32, i32
  }
  func.func @transform_4(%arg0: i32) -> (i32, i32) {
    %c0_i32 = arith.constant 0 : i32
    %c0_i32_0 = arith.constant 0 : i32
    %c0_i32_1 = arith.constant 0 : i32
    return %c0_i32, %c0_i32_0 : i32, i32
  }
  func.func @transform_5(%arg0: i32) -> (i32, i32) {
    %c0_i32 = arith.constant 0 : i32
    %c0_i32_0 = arith.constant 0 : i32
    %c0_i32_1 = arith.constant 0 : i32
    return %c0_i32, %c0_i32_0 : i32, i32
  }
  func.func @transform_6(%arg0: i32) -> (i32, i32) {
    %c0_i32 = arith.constant 0 : i32
    %c0_i32_0 = arith.constant 0 : i32
    %c0_i32_1 = arith.constant 0 : i32
    return %c0_i32, %c0_i32_0 : i32, i32
  }
  func.func @transform_7(%arg0: i32) -> (i32, i32) {
    %c0_i32 = arith.constant 0 : i32
    %c0_i32_0 = arith.constant 0 : i32
    %c0_i32_1 = arith.constant 0 : i32
    return %c0_i32, %c0_i32_0 : i32, i32
  }
  func.func @transform_8(%arg0: i32) -> (i32, i32, i32) {
    %c0_i32 = arith.constant 0 : i32
    %c0_i32_0 = arith.constant 0 : i32
    %c0_i32_1 = arith.constant 0 : i32
    return %arg0, %c0_i32, %c0_i32_0 : i32, i32, i32
  }
}

</mosaic_0001>

<llo_original>
// kernel: ske_conv_pallas.1
$region0: #{ske_conv_pallas.1}
  #allocation0 [shape = 'u32[]', space=smem, size = 0x4, offset = 0x4, fixed_abs, tag = 'smem constant byte address 0x4 - core index']
  #allocation1 [shape = 'u32[144,128]{1,0:T(1,128)}', space=vmem, size = 0x12000, scoped, tag = 'internal scratch']
  #allocation2 [shape = 'f32[20,20,4]{2,1,0:T(8,128)}', space=vmem, size = 0x3c000, scoped, tag = 'scratch operand']
  %s0 = inlined_call_operand.vmem [shape: f32[2,16,16,4], index: 0, kind: input, shape index: {}]
  %s1 = inlined_call_operand.vmem [shape: f32[100,8], index: 1, kind: input, shape index: {}]
  %s2 = inlined_call_operand.vmem [shape: f32[1,8], index: 2, kind: input, shape index: {}]
  %s3 = inlined_call_operand.vmem [shape: f32[1,8], index: 3, kind: input, shape index: {}]
  %s4 = inlined_call_operand.vmem [shape: f32[4,32], index: 4, kind: input, shape index: {}]
  %s5 = inlined_call_operand.vmem [shape: f32[1,32], index: 5, kind: input, shape index: {}]
  %s6 = inlined_call_operand.vmem [shape: f32[32,8], index: 6, kind: input, shape index: {}]
  %s7 = inlined_call_operand.vmem [shape: f32[1,8], index: 7, kind: input, shape index: {}]
  %s8 = inlined_call_operand.vmem [shape: f32[2,256,4], index: 8, kind: output, shape index: {}]
  %s9 = sld [smem:[#allocation0]]
  $region65: #{ske_conv_pallas.1} parent=0
    _
  %s11 = ssub.s32 1, %s9
  %s12 = scalar_select 0, %s11, %s9
  loop: start=0, step=1, limit=4
  $region2: #{ske_conv_pallas.1} parent=0 // loop_pre_header
    _
  $region3: #{ske_conv_pallas.1} parent=0 // loop_header
    %s14 = sphi 0, %s18
    %p15 = scmp.ge.s32.totalorder %s14, 4
    %s24 = sphi 0, %s26
    %s27 = sphi 0, %s24
    %s28 = sphi 0, %s27
    %s44 = sphi 0, %s28
    %s48 = sphi 0, %s48
    %s50 = sphi 0, %s48
    %s51 = sphi 0, %s50
    %s65 = sphi 0, %s51
    %s69 = sphi 0, %s69
    %s71 = sphi 0, %s69
    %s72 = sphi 0, %s71
    %s86 = sphi 0, %s72
    %s90 = sphi 0, %s90
    %s92 = sphi 0, %s90
    %s93 = sphi 0, %s92
    %s107 = sphi 0, %s93
    %s111 = sphi 0, %s111
    %s113 = sphi 0, %s111
    %s114 = sphi 0, %s113
    %s128 = sphi 0, %s114
    %s132 = sphi 0, %s132
    %s134 = sphi 0, %s132
    %s135 = sphi 0, %s134
    %s149 = sphi 0, %s135
    %s153 = sphi 0, %s153
    %s155 = sphi 0, %s153
    %s156 = sphi 0, %s155
    %s170 = sphi 0, %s156
    %s174 = sphi 0, %s174
    %s176 = sphi 0, %s174
    %s177 = sphi 0, %s176
    %s191 = sphi 0, %s177
    %s197 = sphi 0, %s199
    %s200 = sphi 0, %s197
    %s201 = sphi 0, %s200
    %s217 = sphi 0, %s201
  $region4: #{ske_conv_pallas.1} parent=0 // loop_header_branch
    %17 = sbr.rel (%p15) target = $region8
  $region5: #{ske_conv_pallas.1} parent=0 // loop_body
    %s19 = ssub.s32 %s14, 1
    %s20 = ssub.s32 %s14, 2
    %s21 = sadd.s32 %s14, 1
    %s22 = ssub.s32 %s14, %s21
    %p23 = scmp.eq.s32.totalorder %s22, 0
    %s25 = sadd.s32 %s24, 1
    %s26 = scalar_select %p23, %s24, %s25
    %p29 = pneg %p23
    %p30 = scmp.eq.s32.totalorder %s14, 1
    %p31 = por %p29, %p30
    %p32 = scmp.ne.s32.totalorder %s24, %s27
    %p33 = scmp.eq.s32.totalorder %s14, 0
    %p34 = por %p32, %p33
    %p35 = scmp.ne.s32.totalorder %s24, %s27
    %p36 = scmp.eq.s32.totalorder %s19, 1
    %p37 = por %p35, %p36
    %p38 = scmp.ne.s32.totalorder %s27, %s28
    %p39 = scmp.eq.s32.totalorder %s19, 0
    %p40 = por %p38, %p39
    %p41 = scmp.ne.s32.totalorder %s27, %s28
    %p42 = scmp.eq.s32.totalorder %s20, 1
    %p43 = por %p41, %p42
    %p45 = scmp.ne.s32.totalorder %s28, %s44
    %p46 = scmp.eq.s32.totalorder %s20, 0
    %p47 = por %p45, %p46
    %s49 = sadd.s32 %s48, 1
    %p52 = scmp.eq.s32.totalorder %s14, 1
    %p53 = scmp.ne.s32.totalorder %s48, %s50
    %p54 = scmp.eq.s32.totalorder %s14, 0
    %p55 = por %p53, %p54
    %p56 = scmp.ne.s32.totalorder %s48, %s50
    %p57 = scmp.eq.s32.totalorder %s19, 1
    %p58 = por %p56, %p57
    %p59 = scmp.ne.s32.totalorder %s50, %s51
    %p60 = scmp.eq.s32.totalorder %s19, 0
    %p61 = por %p59, %p60
    %p62 = scmp.ne.s32.totalorder %s50, %s51
    %p63 = scmp.eq.s32.totalorder %s20, 1
    %p64 = por %p62, %p63
    %p66 = scmp.ne.s32.totalorder %s51, %s65
    %p67 = scmp.eq.s32.totalorder %s20, 0
    %p68 = por %p66, %p67
    %s70 = sadd.s32 %s69, 1
    %p73 = scmp.eq.s32.totalorder %s14, 1
    %p74 = scmp.ne.s32.totalorder %s69, %s71
    %p75 = scmp.eq.s32.totalorder %s14, 0
    %p76 = por %p74, %p75
    %p77 = scmp.ne.s32.totalorder %s69, %s71
    %p78 = scmp.eq.s32.totalorder %s19, 1
    %p79 = por %p77, %p78
    %p80 = scmp.ne.s32.totalorder %s71, %s72
    %p81 = scmp.eq.s32.totalorder %s19, 0
    %p82 = por %p80, %p81
    %p83 = scmp.ne.s32.totalorder %s71, %s72
    %p84 = scmp.eq.s32.totalorder %s20, 1
    %p85 = por %p83, %p84
    %p87 = scmp.ne.s32.totalorder %s72, %s86
    %p88 = scmp.eq.s32.totalorder %s20, 0
    %p89 = por %p87, %p88
    %s91 = sadd.s32 %s90, 1
    %p94 = scmp.eq.s32.totalorder %s14, 1
    %p95 = scmp.ne.s32.totalorder %s90, %s92
    %p96 = scmp.eq.s32.totalorder %s14, 0
    %p97 = por %p95, %p96
    %p98 = scmp.ne.s32.totalorder %s90, %s92
    %p99 = scmp.eq.s32.totalorder %s19, 1
    %p100 = por %p98, %p99
    %p101 = scmp.ne.s32.totalorder %s92, %s93
    %p102 = scmp.eq.s32.totalorder %s19, 0
    %p103 = por %p101, %p102
    %p104 = scmp.ne.s32.totalorder %s92, %s93
    %p105 = scmp.eq.s32.totalorder %s20, 1
    %p106 = por %p104, %p105
    %p108 = scmp.ne.s32.totalorder %s93, %s107
    %p109 = scmp.eq.s32.totalorder %s20, 0
    %p110 = por %p108, %p109
    %s112 = sadd.s32 %s111, 1
    %p115 = scmp.eq.s32.totalorder %s14, 1
    %p116 = scmp.ne.s32.totalorder %s111, %s113
    %p117 = scmp.eq.s32.totalorder %s14, 0
    %p118 = por %p116, %p117
    %p119 = scmp.ne.s32.totalorder %s111, %s113
    %p120 = scmp.eq.s32.totalorder %s19, 1
    %p121 = por %p119, %p120
    %p122 = scmp.ne.s32.totalorder %s113, %s114
    %p123 = scmp.eq.s32.totalorder %s19, 0
    %p124 = por %p122, %p123
    %p125 = scmp.ne.s32.totalorder %s113, %s114
    %p126 = scmp.eq.s32.totalorder %s20, 1
    %p127 = por %p125, %p126
    %p129 = scmp.ne.s32.totalorder %s114, %s128
    %p130 = scmp.eq.s32.totalorder %s20, 0
    %p131 = por %p129, %p130
    %s133 = sadd.s32 %s132, 1
    %p136 = scmp.eq.s32.totalorder %s14, 1
    %p137 = scmp.ne.s32.totalorder %s132, %s134
    %p138 = scmp.eq.s32.totalorder %s14, 0
    %p139 = por %p137, %p138
    %p140 = scmp.ne.s32.totalorder %s132, %s134
    %p141 = scmp.eq.s32.totalorder %s19, 1
    %p142 = por %p140, %p141
    %p143 = scmp.ne.s32.totalorder %s134, %s135
    %p144 = scmp.eq.s32.totalorder %s19, 0
    %p145 = por %p143, %p144
    %p146 = scmp.ne.s32.totalorder %s134, %s135
    %p147 = scmp.eq.s32.totalorder %s20, 1
    %p148 = por %p146, %p147
    %p150 = scmp.ne.s32.totalorder %s135, %s149
    %p151 = scmp.eq.s32.totalorder %s20, 0
    %p152 = por %p150, %p151
    %s154 = sadd.s32 %s153, 1
    %p157 = scmp.eq.s32.totalorder %s14, 1
    %p158 = scmp.ne.s32.totalorder %s153, %s155
    %p159 = scmp.eq.s32.totalorder %s14, 0
    %p160 = por %p158, %p159
    %p161 = scmp.ne.s32.totalorder %s153, %s155
    %p162 = scmp.eq.s32.totalorder %s19, 1
    %p163 = por %p161, %p162
    %p164 = scmp.ne.s32.totalorder %s155, %s156
    %p165 = scmp.eq.s32.totalorder %s19, 0
    %p166 = por %p164, %p165
    %p167 = scmp.ne.s32.totalorder %s155, %s156
    %p168 = scmp.eq.s32.totalorder %s20, 1
    %p169 = por %p167, %p168
    %p171 = scmp.ne.s32.totalorder %s156, %s170
    %p172 = scmp.eq.s32.totalorder %s20, 0
    %p173 = por %p171, %p172
    %s175 = sadd.s32 %s174, 1
    %p178 = scmp.eq.s32.totalorder %s14, 1
    %p179 = scmp.ne.s32.totalorder %s174, %s176
    %p180 = scmp.eq.s32.totalorder %s14, 0
    %p181 = por %p179, %p180
    %p182 = scmp.ne.s32.totalorder %s174, %s176
    %p183 = scmp.eq.s32.totalorder %s19, 1
    %p184 = por %p182, %p183
    %p185 = scmp.ne.s32.totalorder %s176, %s177
    %p186 = scmp.eq.s32.totalorder %s19, 0
    %p187 = por %p185, %p186
    %p188 = scmp.ne.s32.totalorder %s176, %s177
    %p189 = scmp.eq.s32.totalorder %s20, 1
    %p190 = por %p188, %p189
    %p192 = scmp.ne.s32.totalorder %s177, %s191
    %p193 = scmp.eq.s32.totalorder %s20, 0
    %p194 = por %p192, %p193
    %s195 = ssub.s32 %s14, %s21
    %p196 = scmp.eq.s32.totalorder %s195, 0
    %s198 = sadd.s32 %s197, 1
    %s199 = scalar_select %p196, %s197, %s198
    %p202 = pneg %p196
    %p203 = scmp.eq.s32.totalorder %s14, 1
    %p204 = por %p202, %p203
    %p205 = scmp.ne.s32.totalorder %s197, %s200
    %p206 = scmp.eq.s32.totalorder %s14, 0
    %p207 = por %p205, %p206
    %p208 = scmp.ne.s32.totalorder %s197, %s200
    %p209 = scmp.eq.s32.totalorder %s19, 1
    %p210 = por %p208, %p209
    %p211 = scmp.ne.s32.totalorder %s200, %s201
    %p212 = scmp.eq.s32.totalorder %s19, 0
    %p213 = por %p211, %p212
    %p214 = scmp.ne.s32.totalorder %s200, %s201
    %p215 = scmp.eq.s32.totalorder %s20, 1
    %p216 = por %p214, %p215
    %p218 = scmp.ne.s32.totalorder %s201, %s217
    %p219 = scmp.eq.s32.totalorder %s20, 0
    %p220 = por %p218, %p219
    %p221 = scmp.le.s32.totalorder 1, %s14
    %p222 = scmp.lt.s32.totalorder %s14, 3
    %p223 = pnand %p221, %p222
    %p224 = pneg %p223
    // Predicated region
    $region9: #{ske_conv_pallas.1} parent=5 // pred_check
      _
    $region10: #{ske_conv_pallas.1} parent=5 // pred_check_branch
      %226 = sbr.rel (%p223) target = $region12
    $region11: #{ske_conv_pallas.1} parent=5 // pred_region
      %s227 = ssub.s32 %s14, 1
      // Predicated region
      $region13: #{ske_conv_pallas.1} parent=11 // pred_check
        %p228 = pneg %p61
      $region14: #{ske_conv_pallas.1} parent=11 // pred_check_branch
        %230 = sbr.rel (%p228) target = $region16
      $region15: #{ske_conv_pallas.1} parent=11 // pred_region
        _
      $region16: #{ske_conv_pallas.1} parent=11 // pred_fallthru
        _
      // Predicated region
      $region17: #{ske_conv_pallas.1} parent=11 // pred_check
        %p231 = pneg %p82
      $region18: #{ske_conv_pallas.1} parent=11 // pred_check_branch
        %233 = sbr.rel (%p231) target = $region20
      $region19: #{ske_conv_pallas.1} parent=11 // pred_region
        _
      $region20: #{ske_conv_pallas.1} parent=11 // pred_fallthru
        _
      // Predicated region
      $region21: #{ske_conv_pallas.1} parent=11 // pred_check
        %p234 = pneg %p103
      $region22: #{ske_conv_pallas.1} parent=11 // pred_check_branch
        %236 = sbr.rel (%p234) target = $region24
      $region23: #{ske_conv_pallas.1} parent=11 // pred_region
        _
      $region24: #{ske_conv_pallas.1} parent=11 // pred_fallthru
        _
      // Predicated region
      $region25: #{ske_conv_pallas.1} parent=11 // pred_check
        %p237 = pneg %p124
      $region26: #{ske_conv_pallas.1} parent=11 // pred_check_branch
        %239 = sbr.rel (%p237) target = $region28
      $region27: #{ske_conv_pallas.1} parent=11 // pred_region
        _
      $region28: #{ske_conv_pallas.1} parent=11 // pred_fallthru
        _
      // Predicated region
      $region29: #{ske_conv_pallas.1} parent=11 // pred_check
        %p240 = pneg %p145
      $region30: #{ske_conv_pallas.1} parent=11 // pred_check_branch
        %242 = sbr.rel (%p240) target = $region32
      $region31: #{ske_conv_pallas.1} parent=11 // pred_region
        _
      $region32: #{ske_conv_pallas.1} parent=11 // pred_fallthru
        _
      // Predicated region
      $region33: #{ske_conv_pallas.1} parent=11 // pred_check
        %p243 = pneg %p166
      $region34: #{ske_conv_pallas.1} parent=11 // pred_check_branch
        %245 = sbr.rel (%p243) target = $region36
      $region35: #{ske_conv_pallas.1} parent=11 // pred_region
        _
      $region36: #{ske_conv_pallas.1} parent=11 // pred_fallthru
        _
      // Predicated region
      $region37: #{ske_conv_pallas.1} parent=11 // pred_check
        %p246 = pneg %p187
      $region38: #{ske_conv_pallas.1} parent=11 // pred_check_branch
        %248 = sbr.rel (%p246) target = $region40
      $region39: #{ske_conv_pallas.1} parent=11 // pred_region
        _
      $region40: #{ske_conv_pallas.1} parent=11 // pred_fallthru
        _
    $region12: #{ske_conv_pallas.1} parent=5 // pred_fallthru
      _
    %p249 = scmp.lt.s32.totalorder %s14, 2
    // Predicated region
    $region41: #{ske_conv_pallas.1} parent=5 // pred_check
      %p250 = pneg %p249
    $region42: #{ske_conv_pallas.1} parent=5 // pred_check_branch
      %252 = sbr.rel (%p250) target = $region44
    $region43: #{ske_conv_pallas.1} parent=5 // pred_region
      // Predicated region
      $region45: #{ske_conv_pallas.1} parent=43 // pred_check
        %p253 = pneg %p34
      $region46: #{ske_conv_pallas.1} parent=43 // pred_check_branch
        %255 = sbr.rel (%p253) target = $region48
      $region47: #{ske_conv_pallas.1} parent=43 // pred_region
        %p256 = scmp.lt.s32.totalorder %s14, 1
        %s257 = scalar_select %p256, %s14, 1
        %s258 = smul.addr %s257, 32
        %s259 = smul.addr %s258, 8
        %s260 = scalar_lea.vmem %s0, %s259
      $region48: #{ske_conv_pallas.1} parent=43 // pred_fallthru
        _
    $region44: #{ske_conv_pallas.1} parent=5 // pred_fallthru
      _
    %p261 = scmp.le.s32.totalorder 1, %s14
    %p262 = scmp.lt.s32.totalorder %s14, 3
    %p263 = pnand %p261, %p262
    %p264 = pneg %p263
    // Predicated region
    $region49: #{ske_conv_pallas.1} parent=5 // pred_check
      _
    $region50: #{ske_conv_pallas.1} parent=5 // pred_check_branch
      %266 = sbr.rel (%p263) target = $region52
    $region51: #{ske_conv_pallas.1} parent=5 // pred_region
      %s267 = ssub.s32 %s14, 1
      %p268 = scmp.lt.s32.totalorder %s19, 1
      %s269 = scalar_select %p268, %s19, 1
      %s270 = smul.addr %s269, 32
      %s271 = smul.addr %s270, 8
      %s272 = scalar_lea.vmem %s0, %s271
      %p273 = pneg %p40
      %p274 = pneg %p37
      %p275 = pneg %p61
      %p276 = pneg %p58
      %p277 = pneg %p82
      %p278 = pneg %p79
      %p279 = pneg %p103
      %p280 = pneg %p100
      %p281 = pneg %p124
      %p282 = pneg %p121
      %p283 = pneg %p145
      %p284 = pneg %p142
      %p285 = pneg %p166
      %p286 = pneg %p163
      %p287 = pneg %p187
      %p288 = pneg %p184
      %p289 = pneg %p213
      %p290 = pneg %p210
      %p291 = scmp.lt.s32.totalorder %s19, 1
      %s292 = scalar_select %p291, %s19, 1
      %s293 = smul.addr %s292, 32
      %s294 = smul.addr %s293, 8
      %s295 = scalar_lea.vmem %s8, %s294
      %p296 = scmp.lt.s32.totalorder %s19, 1
      %s297 = scalar_select %p296, %s19, 1
      %s298 = smul.addr %s297, 32
      %s299 = smul.addr %s298, 8
      %s300 = scalar_lea.vmem %s0, %s299
      %p301 = scmp.lt.s32.totalorder %s19, 1
      %s302 = scalar_select %p301, %s19, 1
      %s303 = smul.addr %s302, 32
      %s304 = smul.addr %s303, 8
      %s305 = scalar_lea.vmem %s8, %s304
      %vm306 = vcmask 31744
      %307 = vst.msk [vmem:[#allocation2] sm:$0xff] %vm306, 0.0
      %308 = vst.msk [vmem:[#allocation2 + $0x8] sm:$0xff] %vm306, 0.0
      %vm309 = vcmask 27648
      %310 = vst.msk [vmem:[#allocation2 + $0x10] sm:$0xf] %vm309, 0.0
      %311 = vst.msk [vmem:[#allocation2 + $0x18] sm:$0xff] %vm306, 0.0
      %312 = vst.msk [vmem:[#allocation2 + $0x20] sm:$0xff] %vm306, 0.0
      %313 = vst.msk [vmem:[#allocation2 + $0x28] sm:$0xf] %vm309, 0.0
      %314 = vst.msk [vmem:[#allocation2 + $0x30] sm:$0xff] %vm306, 0.0
      %315 = vst.msk [vmem:[#allocation2 + $0x38] sm:$0xff] %vm306, 0.0
      %316 = vst.msk [vmem:[#allocation2 + $0x40] sm:$0xf] %vm309, 0.0
      %317 = vst.msk [vmem:[#allocation2 + $0x48] sm:$0xff] %vm306, 0.0
      %318 = vst.msk [vmem:[#allocation2 + $0x50] sm:$0xff] %vm306, 0.0
      %319 = vst.msk [vmem:[#allocation2 + $0x58] sm:$0xf] %vm309, 0.0
      %320 = vst.msk [vmem:[#allocation2 + $0x60] sm:$0xff] %vm306, 0.0
      %321 = vst.msk [vmem:[#allocation2 + $0x68] sm:$0xff] %vm306, 0.0
      %322 = vst.msk [vmem:[#allocation2 + $0x70] sm:$0xf] %vm309, 0.0
      %323 = vst.msk [vmem:[#allocation2 + $0x78] sm:$0xff] %vm306, 0.0
      %324 = vst.msk [vmem:[#allocation2 + $0x80] sm:$0xff] %vm306, 0.0
      %325 = vst.msk [vmem:[#allocation2 + $0x88] sm:$0xf] %vm309, 0.0
      %326 = vst.msk [vmem:[#allocation2 + $0x90] sm:$0xff] %vm306, 0.0
      %327 = vst.msk [vmem:[#allocation2 + $0x98] sm:$0xff] %vm306, 0.0
      %328 = vst.msk [vmem:[#allocation2 + $0xa0] sm:$0xf] %vm309, 0.0
      %329 = vst.msk [vmem:[#allocation2 + $0xa8] sm:$0xff] %vm306, 0.0
      %330 = vst.msk [vmem:[#allocation2 + $0xb0] sm:$0xff] %vm306, 0.0
      %331 = vst.msk [vmem:[#allocation2 + $0xb8] sm:$0xf] %vm309, 0.0
      %332 = vst.msk [vmem:[#allocation2 + $0xc0] sm:$0xff] %vm306, 0.0
      %333 = vst.msk [vmem:[#allocation2 + $0xc8] sm:$0xff] %vm306, 0.0
      %334 = vst.msk [vmem:[#allocation2 + $0xd0] sm:$0xf] %vm309, 0.0
      %335 = vst.msk [vmem:[#allocation2 + $0xd8] sm:$0xff] %vm306, 0.0
      %336 = vst.msk [vmem:[#allocation2 + $0xe0] sm:$0xff] %vm306, 0.0
      %337 = vst.msk [vmem:[#allocation2 + $0xe8] sm:$0xf] %vm309, 0.0
      %338 = vst.msk [vmem:[#allocation2 + $0xf0] sm:$0xff] %vm306, 0.0
      %339 = vst.msk [vmem:[#allocation2 + $0xf8] sm:$0xff] %vm306, 0.0
      %340 = vst.msk [vmem:[#allocation2 + $0x100] sm:$0xf] %vm309, 0.0
      %341 = vst.msk [vmem:[#allocation2 + $0x108] sm:$0xff] %vm306, 0.0
      %342 = vst.msk [vmem:[#allocation2 + $0x110] sm:$0xff] %vm306, 0.0
      %343 = vst.msk [vmem:[#allocation2 + $0x118] sm:$0xf] %vm309, 0.0
      %344 = vst.msk [vmem:[#allocation2 + $0x120] sm:$0xff] %vm306, 0.0
      %345 = vst.msk [vmem:[#allocation2 + $0x128] sm:$0xff] %vm306, 0.0
      %346 = vst.msk [vmem:[#allocation2 + $0x130] sm:$0xf] %vm309, 0.0
      %347 = vst.msk [vmem:[#allocation2 + $0x138] sm:$0xff] %vm306, 0.0
      %348 = vst.msk [vmem:[#allocation2 + $0x140] sm:$0xff] %vm306, 0.0
      %349 = vst.msk [vmem:[#allocation2 + $0x148] sm:$0xf] %vm309, 0.0
      %350 = vst.msk [vmem:[#allocation2 + $0x150] sm:$0xff] %vm306, 0.0
      %351 = vst.msk [vmem:[#allocation2 + $0x158] sm:$0xff] %vm306, 0.0
      %352 = vst.msk [vmem:[#allocation2 + $0x160] sm:$0xf] %vm309, 0.0
      %353 = vst.msk [vmem:[#allocation2 + $0x168] sm:$0xff] %vm306, 0.0
      %354 = vst.msk [vmem:[#allocation2 + $0x170] sm:$0xff] %vm306, 0.0
      %355 = vst.msk [vmem:[#allocation2 + $0x178] sm:$0xf] %vm309, 0.0
      %356 = vst.msk [vmem:[#allocation2 + $0x180] sm:$0xff] %vm306, 0.0
      %357 = vst.msk [vmem:[#allocation2 + $0x188] sm:$0xff] %vm306, 0.0
      %358 = vst.msk [vmem:[#allocation2 + $0x190] sm:$0xf] %vm309, 0.0
      %359 = vst.msk [vmem:[#allocation2 + $0x198] sm:$0xff] %vm306, 0.0
      %360 = vst.msk [vmem:[#allocation2 + $0x1a0] sm:$0xff] %vm306, 0.0
      %361 = vst.msk [vmem:[#allocation2 + $0x1a8] sm:$0xf] %vm309, 0.0
      %362 = vst.msk [vmem:[#allocation2 + $0x1b0] sm:$0xff] %vm306, 0.0
      %363 = vst.msk [vmem:[#allocation2 + $0x1b8] sm:$0xff] %vm306, 0.0
      %364 = vst.msk [vmem:[#allocation2 + $0x1c0] sm:$0xf] %vm309, 0.0
      %365 = vst.msk [vmem:[#allocation2 + $0x1c8] sm:$0xff] %vm306, 0.0
      %366 = vst.msk [vmem:[#allocation2 + $0x1d0] sm:$0xff] %vm306, 0.0
      %367 = vst.msk [vmem:[#allocation2 + $0x1d8] sm:$0xf] %vm309, 0.0
      %v368 = vld [vmem:[%s300] sm:$0xff]
      %v369 = vld [vmem:[%s300 + $0x8] sm:$0xff]
      %v370 = vld [vmem:[%s300 + $0x10] sm:$0xff]
      %v371 = vld [vmem:[%s300 + $0x18] sm:$0xff]
      %v372 = vld [vmem:[%s300 + $0x20] sm:$0xff]
      %v373 = vld [vmem:[%s300 + $0x28] sm:$0xff]
      %v374 = vld [vmem:[%s300 + $0x30] sm:$0xff]
      %v375 = vld [vmem:[%s300 + $0x38] sm:$0xff]
      %v376 = vld [vmem:[%s300 + $0x40] sm:$0xff]
      %v377 = vld [vmem:[%s300 + $0x48] sm:$0xff]
      %v378 = vld [vmem:[%s300 + $0x50] sm:$0xff]
      %v379 = vld [vmem:[%s300 + $0x58] sm:$0xff]
      %v380 = vld [vmem:[%s300 + $0x60] sm:$0xff]
      %v381 = vld [vmem:[%s300 + $0x68] sm:$0xff]
      %v382 = vld [vmem:[%s300 + $0x70] sm:$0xff]
      %v383 = vld [vmem:[%s300 + $0x78] sm:$0xff]
      %v384 = vld [vmem:[%s300 + $0x80] sm:$0xff]
      %v385 = vld [vmem:[%s300 + $0x88] sm:$0xff]
      %v386 = vld [vmem:[%s300 + $0x90] sm:$0xff]
      %v387 = vld [vmem:[%s300 + $0x98] sm:$0xff]
      %v388 = vld [vmem:[%s300 + $0xa0] sm:$0xff]
      %v389 = vld [vmem:[%s300 + $0xa8] sm:$0xff]
      %v390 = vld [vmem:[%s300 + $0xb0] sm:$0xff]
      %v391 = vld [vmem:[%s300 + $0xb8] sm:$0xff]
      %v392 = vld [vmem:[%s300 + $0xc0] sm:$0xff]
      %v393 = vld [vmem:[%s300 + $0xc8] sm:$0xff]
      %v394 = vld [vmem:[%s300 + $0xd0] sm:$0xff]
      %v395 = vld [vmem:[%s300 + $0xd8] sm:$0xff]
      %v396 = vld [vmem:[%s300 + $0xe0] sm:$0xff]
      %v397 = vld [vmem:[%s300 + $0xe8] sm:$0xff]
      %v398 = vld [vmem:[%s300 + $0xf0] sm:$0xff]
      %v399 = vld [vmem:[%s300 + $0xf8] sm:$0xff]
      %s400 = scalar_lea.vmem [#allocation2], 48
      %401 = vst.msk [vmem:[%s400 + $0x2] sm:$0xff] %vm306, %v368
      %402 = vst.msk [vmem:[%s400 + $0xa] sm:$0xff] %vm306, %v369
      %403 = vst.msk [vmem:[%s400 + $0x1a] sm:$0xff] %vm306, %v370
      %404 = vst.msk [vmem:[%s400 + $0x22] sm:$0xff] %vm306, %v371
      %405 = vst.msk [vmem:[%s400 + $0x32] sm:$0xff] %vm306, %v372
      %406 = vst.msk [vmem:[%s400 + $0x3a] sm:$0xff] %vm306, %v373
      %407 = vst.msk [vmem:[%s400 + $0x4a] sm:$0xff] %vm306, %v374
      %408 = vst.msk [vmem:[%s400 + $0x52] sm:$0xff] %vm306, %v375
      %409 = vst.msk [vmem:[%s400 + $0x62] sm:$0xff] %vm306, %v376
      %410 = vst.msk [vmem:[%s400 + $0x6a] sm:$0xff] %vm306, %v377
      %411 = vst.msk [vmem:[%s400 + $0x7a] sm:$0xff] %vm306, %v378
      %412 = vst.msk [vmem:[%s400 + $0x82] sm:$0xff] %vm306, %v379
      %413 = vst.msk [vmem:[%s400 + $0x92] sm:$0xff] %vm306, %v380
      %414 = vst.msk [vmem:[%s400 + $0x9a] sm:$0xff] %vm306, %v381
      %415 = vst.msk [vmem:[%s400 + $0xaa] sm:$0xff] %vm306, %v382
      %416 = vst.msk [vmem:[%s400 + $0xb2] sm:$0xff] %vm306, %v383
      %417 = vst.msk [vmem:[%s400 + $0xc2] sm:$0xff] %vm306, %v384
      %418 = vst.msk [vmem:[%s400 + $0xca] sm:$0xff] %vm306, %v385
      %419 = vst.msk [vmem:[%s400 + $0xda] sm:$0xff] %vm306, %v386
      %420 = vst.msk [vmem:[%s400 + $0xe2] sm:$0xff] %vm306, %v387
      %421 = vst.msk [vmem:[%s400 + $0xf2] sm:$0xff] %vm306, %v388
      %422 = vst.msk [vmem:[%s400 + $0xfa] sm:$0xff] %vm306, %v389
      %423 = vst.msk [vmem:[%s400 + $0x10a] sm:$0xff] %vm306, %v390
      %424 = vst.msk [vmem:[%s400 + $0x112] sm:$0xff] %vm306, %v391
      %425 = vst.msk [vmem:[%s400 + $0x122] sm:$0xff] %vm306, %v392
      %426 = vst.msk [vmem:[%s400 + $0x12a] sm:$0xff] %vm306, %v393
      %427 = vst.msk [vmem:[%s400 + $0x13a] sm:$0xff] %vm306, %v394
      %428 = vst.msk [vmem:[%s400 + $0x142] sm:$0xff] %vm306, %v395
      %429 = vst.msk [vmem:[%s400 + $0x152] sm:$0xff] %vm306, %v396
      %430 = vst.msk [vmem:[%s400 + $0x15a] sm:$0xff] %vm306, %v397
      %431 = vst.msk [vmem:[%s400 + $0x16a] sm:$0xff] %vm306, %v398
      %432 = vst.msk [vmem:[%s400 + $0x172] sm:$0xff] %vm306, %v399
      %v433 = vld [vmem:[#allocation2] sm:$0xff]
      %v434 = vld [vmem:[#allocation2 + $0x8] sm:$0xff]
      %v435 = vld [vmem:[#allocation2 + $0x18] sm:$0xff]
      %v436 = vld [vmem:[#allocation2 + $0x20] sm:$0xff]
      %v437 = vld [vmem:[#allocation2 + $0x30] sm:$0xff]
      %v438 = vld [vmem:[#allocation2 + $0x38] sm:$0xff]
      %v439 = vld [vmem:[#allocation2 + $0x48] sm:$0xff]
      %v440 = vld [vmem:[#allocation2 + $0x50] sm:$0xff]
      %v441 = vld [vmem:[#allocation2 + $0x60] sm:$0xff]
      %v442 = vld [vmem:[#allocation2 + $0x68] sm:$0xff]
      %v443 = vld [vmem:[#allocation2 + $0x78] sm:$0xff]
      %v444 = vld [vmem:[#allocation2 + $0x80] sm:$0xff]
      %v445 = vld [vmem:[#allocation2 + $0x90] sm:$0xff]
      %v446 = vld [vmem:[#allocation2 + $0x98] sm:$0xff]
      %v447 = vld [vmem:[#allocation2 + $0xa8] sm:$0xff]
      %v448 = vld [vmem:[#allocation2 + $0xb0] sm:$0xff]
      %v449 = vld [vmem:[#allocation2 + $0xc0] sm:$0xff]
      %v450 = vld [vmem:[#allocation2 + $0xc8] sm:$0xff]
      %v451 = vld [vmem:[#allocation2 + $0xd8] sm:$0xff]
      %v452 = vld [vmem:[#allocation2 + $0xe0] sm:$0xff]
      %v453 = vld [vmem:[#allocation2 + $0xf0] sm:$0xff]
      %v454 = vld [vmem:[#allocation2 + $0xf8] sm:$0xff]
      %v455 = vld [vmem:[#allocation2 + $0x108] sm:$0xff]
      %v456 = vld [vmem:[#allocation2 + $0x110] sm:$0xff]
      %v457 = vld [vmem:[#allocation2 + $0x120] sm:$0xff]
      %v458 = vld [vmem:[#allocation2 + $0x128] sm:$0xff]
      %v459 = vld [vmem:[#allocation2 + $0x138] sm:$0xff]
      %v460 = vld [vmem:[#allocation2 + $0x140] sm:$0xff]
      %v461 = vld [vmem:[#allocation2 + $0x150] sm:$0xff]
      %v462 = vld [vmem:[#allocation2 + $0x158] sm:$0xff]
      %v463 = vld [vmem:[#allocation2 + $0x168] sm:$0xff]
      %v464 = vld [vmem:[#allocation2 + $0x170] sm:$0xff]
      %v465 = vld [vmem:[#allocation2 + $0x1] sm:$0xff]
      %v466 = vld [vmem:[#allocation2 + $0x9] sm:$0xff]
      %v467 = vld [vmem:[#allocation2 + $0x19] sm:$0xff]
      %v468 = vld [vmem:[#allocation2 + $0x21] sm:$0xff]
      %v469 = vld [vmem:[#allocation2 + $0x31] sm:$0xff]
      %v470 = vld [vmem:[#allocation2 + $0x39] sm:$0xff]
      %v471 = vld [vmem:[#allocation2 + $0x49] sm:$0xff]
      %v472 = vld [vmem:[#allocation2 + $0x51] sm:$0xff]
      %v473 = vld [vmem:[#allocation2 + $0x61] sm:$0xff]
      %v474 = vld [vmem:[#allocation2 + $0x69] sm:$0xff]
      %v475 = vld [vmem:[#allocation2 + $0x79] sm:$0xff]
      %v476 = vld [vmem:[#allocation2 + $0x81] sm:$0xff]
      %v477 = vld [vmem:[#allocation2 + $0x91] sm:$0xff]
      %v478 = vld [vmem:[#allocation2 + $0x99] sm:$0xff]
      %v479 = vld [vmem:[#allocation2 + $0xa9] sm:$0xff]
      %v480 = vld [vmem:[#allocation2 + $0xb1] sm:$0xff]
      %v481 = vld [vmem:[#allocation2 + $0xc1] sm:$0xff]
      %v482 = vld [vmem:[#allocation2 + $0xc9] sm:$0xff]
      %v483 = vld [vmem:[#allocation2 + $0xd9] sm:$0xff]
      %v484 = vld [vmem:[#allocation2 + $0xe1] sm:$0xff]
      %v485 = vld [vmem:[#allocation2 + $0xf1] sm:$0xff]
      %v486 = vld [vmem:[#allocation2 + $0xf9] sm:$0xff]
      %v487 = vld [vmem:[#allocation2 + $0x109] sm:$0xff]
      %v488 = vld [vmem:[#allocation2 + $0x111] sm:$0xff]
      %v489 = vld [vmem:[#allocation2 + $0x121] sm:$0xff]
      %v490 = vld [vmem:[#allocation2 + $0x129] sm:$0xff]
      %v491 = vld [vmem:[#allocation2 + $0x139] sm:$0xff]
      %v492 = vld [vmem:[#allocation2 + $0x141] sm:$0xff]
      %v493 = vld [vmem:[#allocation2 + $0x151] sm:$0xff]
      %v494 = vld [vmem:[#allocation2 + $0x159] sm:$0xff]
      %v495 = vld [vmem:[#allocation2 + $0x169] sm:$0xff]
      %v496 = vld [vmem:[#allocation2 + $0x171] sm:$0xff]
      %v497 = vld [vmem:[#allocation2 + $0x2] sm:$0xff]
      %v498 = vld [vmem:[#allocation2 + $0xa] sm:$0xff]
      %v499 = vld [vmem:[#allocation2 + $0x1a] sm:$0xff]
      %v500 = vld [vmem:[#allocation2 + $0x22] sm:$0xff]
      %v501 = vld [vmem:[#allocation2 + $0x32] sm:$0xff]
      %v502 = vld [vmem:[#allocation2 + $0x3a] sm:$0xff]
      %v503 = vld [vmem:[#allocation2 + $0x4a] sm:$0xff]
      %v504 = vld [vmem:[#allocation2 + $0x52] sm:$0xff]
      %v505 = vld [vmem:[#allocation2 + $0x62] sm:$0xff]
      %v506 = vld [vmem:[#allocation2 + $0x6a] sm:$0xff]
      %v507 = vld [vmem:[#allocation2 + $0x7a] sm:$0xff]
      %v508 = vld [vmem:[#allocation2 + $0x82] sm:$0xff]
      %v509 = vld [vmem:[#allocation2 + $0x92] sm:$0xff]
      %v510 = vld [vmem:[#allocation2 + $0x9a] sm:$0xff]
      %v511 = vld [vmem:[#allocation2 + $0xaa] sm:$0xff]
      %v512 = vld [vmem:[#allocation2 + $0xb2] sm:$0xff]
      %v513 = vld [vmem:[#allocation2 + $0xc2] sm:$0xff]
      %v514 = vld [vmem:[#allocation2 + $0xca] sm:$0xff]
      %v515 = vld [vmem:[#allocation2 + $0xda] sm:$0xff]
      %v516 = vld [vmem:[#allocation2 + $0xe2] sm:$0xff]
      %v517 = vld [vmem:[#allocation2 + $0xf2] sm:$0xff]
      %v518 = vld [vmem:[#allocation2 + $0xfa] sm:$0xff]
      %v519 = vld [vmem:[#allocation2 + $0x10a] sm:$0xff]
      %v520 = vld [vmem:[#allocation2 + $0x112] sm:$0xff]
      %v521 = vld [vmem:[#allocation2 + $0x122] sm:$0xff]
      %v522 = vld [vmem:[#allocation2 + $0x12a] sm:$0xff]
      %v523 = vld [vmem:[#allocation2 + $0x13a] sm:$0xff]
      %v524 = vld [vmem:[#allocation2 + $0x142] sm:$0xff]
      %v525 = vld [vmem:[#allocation2 + $0x152] sm:$0xff]
      %v526 = vld [vmem:[#allocation2 + $0x15a] sm:$0xff]
      %v527 = vld [vmem:[#allocation2 + $0x16a] sm:$0xff]
      %v528 = vld [vmem:[#allocation2 + $0x172] sm:$0xff]
      %v529 = vld [vmem:[#allocation2 + $0x3] sm:$0xff]
      %v530 = vld [vmem:[#allocation2 + $0xb] sm:$0xff]
      %v531 = vld [vmem:[#allocation2 + $0x1b] sm:$0xff]
      %v532 = vld [vmem:[#allocation2 + $0x23] sm:$0xff]
      %v533 = vld [vmem:[#allocation2 + $0x33] sm:$0xff]
      %v534 = vld [vmem:[#allocation2 + $0x3b] sm:$0xff]
      %v535 = vld [vmem:[#allocation2 + $0x4b] sm:$0xff]
      %v536 = vld [vmem:[#allocation2 + $0x53] sm:$0xff]
      %v537 = vld [vmem:[#allocation2 + $0x63] sm:$0xff]
      %v538 = vld [vmem:[#allocation2 + $0x6b] sm:$0xff]
      %v539 = vld [vmem:[#allocation2 + $0x7b] sm:$0xff]
      %v540 = vld [vmem:[#allocation2 + $0x83] sm:$0xff]
      %v541 = vld [vmem:[#allocation2 + $0x93] sm:$0xff]
      %v542 = vld [vmem:[#allocation2 + $0x9b] sm:$0xff]
      %v543 = vld [vmem:[#allocation2 + $0xab] sm:$0xff]
      %v544 = vld [vmem:[#allocation2 + $0xb3] sm:$0xff]
      %v545 = vld [vmem:[#allocation2 + $0xc3] sm:$0xff]
      %v546 = vld [vmem:[#allocation2 + $0xcb] sm:$0xff]
      %v547 = vld [vmem:[#allocation2 + $0xdb] sm:$0xff]
      %v548 = vld [vmem:[#allocation2 + $0xe3] sm:$0xff]
      %v549 = vld [vmem:[#allocation2 + $0xf3] sm:$0xff]
      %v550 = vld [vmem:[#allocation2 + $0xfb] sm:$0xff]
      %v551 = vld [vmem:[#allocation2 + $0x10b] sm:$0xff]
      %v552 = vld [vmem:[#allocation2 + $0x113] sm:$0xff]
      %v553 = vld [vmem:[#allocation2 + $0x123] sm:$0xff]
      %v554 = vld [vmem:[#allocation2 + $0x12b] sm:$0xff]
      %v555 = vld [vmem:[#allocation2 + $0x13b] sm:$0xff]
      %v556 = vld [vmem:[#allocation2 + $0x143] sm:$0xff]
      %v557 = vld [vmem:[#allocation2 + $0x153] sm:$0xff]
      %v558 = vld [vmem:[#allocation2 + $0x15b] sm:$0xff]
      %v559 = vld [vmem:[#allocation2 + $0x16b] sm:$0xff]
      %v560 = vld [vmem:[#allocation2 + $0x173] sm:$0xff]
      %v561 = vld [vmem:[#allocation2 + $0x4] sm:$0xff]
      %v562 = vld [vmem:[#allocation2 + $0xc] sm:$0xff]
      %v563 = vld [vmem:[#allocation2 + $0x1c] sm:$0xff]
      %v564 = vld [vmem:[#allocation2 + $0x24] sm:$0xff]
      %v565 = vld [vmem:[#allocation2 + $0x34] sm:$0xff]
      %v566 = vld [vmem:[#allocation2 + $0x3c] sm:$0xff]
      %v567 = vld [vmem:[#allocation2 + $0x4c] sm:$0xff]
      %v568 = vld [vmem:[#allocation2 + $0x54] sm:$0xff]
      %v569 = vld [vmem:[#allocation2 + $0x64] sm:$0xff]
      %v570 = vld [vmem:[#allocation2 + $0x6c] sm:$0xff]
      %v571 = vld [vmem:[#allocation2 + $0x7c] sm:$0xff]
      %v572 = vld [vmem:[#allocation2 + $0x84] sm:$0xff]
      %v573 = vld [vmem:[#allocation2 + $0x94] sm:$0xff]
      %v574 = vld [vmem:[#allocation2 + $0x9c] sm:$0xff]
      %v575 = vld [vmem:[#allocation2 + $0xac] sm:$0xff]
      %v576 = vld [vmem:[#allocation2 + $0xb4] sm:$0xff]
      %v577 = vld [vmem:[#allocation2 + $0xc4] sm:$0xff]
      %v578 = vld [vmem:[#allocation2 + $0xcc] sm:$0xff]
      %v579 = vld [vmem:[#allocation2 + $0xdc] sm:$0xff]
      %v580 = vld [vmem:[#allocation2 + $0xe4] sm:$0xff]
      %v581 = vld [vmem:[#allocation2 + $0xf4] sm:$0xff]
      %v582 = vld [vmem:[#allocation2 + $0xfc] sm:$0xff]
      %v583 = vld [vmem:[#allocation2 + $0x10c] sm:$0xff]
      %v584 = vld [vmem:[#allocation2 + $0x114] sm:$0xff]
      %v585 = vld [vmem:[#allocation2 + $0x124] sm:$0xff]
      %v586 = vld [vmem:[#allocation2 + $0x12c] sm:$0xff]
      %v587 = vld [vmem:[#allocation2 + $0x13c] sm:$0xff]
      %v588 = vld [vmem:[#allocation2 + $0x144] sm:$0xff]
      %v589 = vld [vmem:[#allocation2 + $0x154] sm:$0xff]
      %v590 = vld [vmem:[#allocation2 + $0x15c] sm:$0xff]
      %v591 = vld [vmem:[#allocation2 + $0x16c] sm:$0xff]
      %v592 = vld [vmem:[#allocation2 + $0x174] sm:$0xff]
      %s593 = scalar_lea.vmem [#allocation2], 24
      %v594 = vld [vmem:[%s593] sm:$0xff]
      %v595 = vld [vmem:[%s593 + $0x8] sm:$0xff]
      %v596 = vld [vmem:[%s593 + $0x18] sm:$0xff]
      %v597 = vld [vmem:[%s593 + $0x20] sm:$0xff]
      %v598 = vld [vmem:[%s593 + $0x30] sm:$0xff]
      %v599 = vld [vmem:[%s593 + $0x38] sm:$0xff]
      %v600 = vld [vmem:[%s593 + $0x48] sm:$0xff]
      %v601 = vld [vmem:[%s593 + $0x50] sm:$0xff]
      %v602 = vld [vmem:[%s593 + $0x60] sm:$0xff]
      %v603 = vld [vmem:[%s593 + $0x68] sm:$0xff]
      %v604 = vld [vmem:[%s593 + $0x78] sm:$0xff]
      %v605 = vld [vmem:[%s593 + $0x80] sm:$0xff]
      %v606 = vld [vmem:[%s593 + $0x90] sm:$0xff]
      %v607 = vld [vmem:[%s593 + $0x98] sm:$0xff]
      %v608 = vld [vmem:[%s593 + $0xa8] sm:$0xff]
      %v609 = vld [vmem:[%s593 + $0xb0] sm:$0xff]
      %v610 = vld [vmem:[%s593 + $0xc0] sm:$0xff]
      %v611 = vld [vmem:[%s593 + $0xc8] sm:$0xff]
      %v612 = vld [vmem:[%s593 + $0xd8] sm:$0xff]
      %v613 = vld [vmem:[%s593 + $0xe0] sm:$0xff]
      %v614 = vld [vmem:[%s593 + $0xf0] sm:$0xff]
      %v615 = vld [vmem:[%s593 + $0xf8] sm:$0xff]
      %v616 = vld [vmem:[%s593 + $0x108] sm:$0xff]
      %v617 = vld [vmem:[%s593 + $0x110] sm:$0xff]
      %v618 = vld [vmem:[%s593 + $0x120] sm:$0xff]
      %v619 = vld [vmem:[%s593 + $0x128] sm:$0xff]
      %v620 = vld [vmem:[%s593 + $0x138] sm:$0xff]
      %v621 = vld [vmem:[%s593 + $0x140] sm:$0xff]
      %v622 = vld [vmem:[%s593 + $0x150] sm:$0xff]
      %v623 = vld [vmem:[%s593 + $0x158] sm:$0xff]
      %v624 = vld [vmem:[%s593 + $0x168] sm:$0xff]
      %v625 = vld [vmem:[%s593 + $0x170] sm:$0xff]
      %v626 = vld [vmem:[%s593 + $0x1] sm:$0xff]
      %v627 = vld [vmem:[%s593 + $0x9] sm:$0xff]
      %v628 = vld [vmem:[%s593 + $0x19] sm:$0xff]
      %v629 = vld [vmem:[%s593 + $0x21] sm:$0xff]
      %v630 = vld [vmem:[%s593 + $0x31] sm:$0xff]
      %v631 = vld [vmem:[%s593 + $0x39] sm:$0xff]
      %v632 = vld [vmem:[%s593 + $0x49] sm:$0xff]
      %v633 = vld [vmem:[%s593 + $0x51] sm:$0xff]
      %v634 = vld [vmem:[%s593 + $0x61] sm:$0xff]
      %v635 = vld [vmem:[%s593 + $0x69] sm:$0xff]
      %v636 = vld [vmem:[%s593 + $0x79] sm:$0xff]
      %v637 = vld [vmem:[%s593 + $0x81] sm:$0xff]
      %v638 = vld [vmem:[%s593 + $0x91] sm:$0xff]
      %v639 = vld [vmem:[%s593 + $0x99] sm:$0xff]
      %v640 = vld [vmem:[%s593 + $0xa9] sm:$0xff]
      %v641 = vld [vmem:[%s593 + $0xb1] sm:$0xff]
      %v642 = vld [vmem:[%s593 + $0xc1] sm:$0xff]
      %v643 = vld [vmem:[%s593 + $0xc9] sm:$0xff]
      %v644 = vld [vmem:[%s593 + $0xd9] sm:$0xff]
      %v645 = vld [vmem:[%s593 + $0xe1] sm:$0xff]
      %v646 = vld [vmem:[%s593 + $0xf1] sm:$0xff]
      %v647 = vld [vmem:[%s593 + $0xf9] sm:$0xff]
      %v648 = vld [vmem:[%s593 + $0x109] sm:$0xff]
      %v649 = vld [vmem:[%s593 + $0x111] sm:$0xff]
      %v650 = vld [vmem:[%s593 + $0x121] sm:$0xff]
      %v651 = vld [vmem:[%s593 + $0x129] sm:$0xff]
      %v652 = vld [vmem:[%s593 + $0x139] sm:$0xff]
      %v653 = vld [vmem:[%s593 + $0x141] sm:$0xff]
      %v654 = vld [vmem:[%s593 + $0x151] sm:$0xff]
      %v655 = vld [vmem:[%s593 + $0x159] sm:$0xff]
      %v656 = vld [vmem:[%s593 + $0x169] sm:$0xff]
      %v657 = vld [vmem:[%s593 + $0x171] sm:$0xff]
      %v658 = vld [vmem:[%s593 + $0x2] sm:$0xff]
      %v659 = vld [vmem:[%s593 + $0xa] sm:$0xff]
      %v660 = vld [vmem:[%s593 + $0x1a] sm:$0xff]
      %v661 = vld [vmem:[%s593 + $0x22] sm:$0xff]
      %v662 = vld [vmem:[%s593 + $0x32] sm:$0xff]
      %v663 = vld [vmem:[%s593 + $0x3a] sm:$0xff]
      %v664 = vld [vmem:[%s593 + $0x4a] sm:$0xff]
      %v665 = vld [vmem:[%s593 + $0x52] sm:$0xff]
      %v666 = vld [vmem:[%s593 + $0x62] sm:$0xff]
      %v667 = vld [vmem:[%s593 + $0x6a] sm:$0xff]
      %v668 = vld [vmem:[%s593 + $0x7a] sm:$0xff]
      %v669 = vld [vmem:[%s593 + $0x82] sm:$0xff]
      %v670 = vld [vmem:[%s593 + $0x92] sm:$0xff]
      %v671 = vld [vmem:[%s593 + $0x9a] sm:$0xff]
      %v672 = vld [vmem:[%s593 + $0xaa] sm:$0xff]
      %v673 = vld [vmem:[%s593 + $0xb2] sm:$0xff]
      %v674 = vld [vmem:[%s593 + $0xc2] sm:$0xff]
      %v675 = vld [vmem:[%s593 + $0xca] sm:$0xff]
      %v676 = vld [vmem:[%s593 + $0xda] sm:$0xff]
      %v677 = vld [vmem:[%s593 + $0xe2] sm:$0xff]
      %v678 = vld [vmem:[%s593 + $0xf2] sm:$0xff]
      %v679 = vld [vmem:[%s593 + $0xfa] sm:$0xff]
      %v680 = vld [vmem:[%s593 + $0x10a] sm:$0xff]
      %v681 = vld [vmem:[%s593 + $0x112] sm:$0xff]
      %v682 = vld [vmem:[%s593 + $0x122] sm:$0xff]
      %v683 = vld [vmem:[%s593 + $0x12a] sm:$0xff]
      %v684 = vld [vmem:[%s593 + $0x13a] sm:$0xff]
      %v685 = vld [vmem:[%s593 + $0x142] sm:$0xff]
      %v686 = vld [vmem:[%s593 + $0x152] sm:$0xff]
      %v687 = vld [vmem:[%s593 + $0x15a] sm:$0xff]
      %v688 = vld [vmem:[%s593 + $0x16a] sm:$0xff]
      %v689 = vld [vmem:[%s593 + $0x172] sm:$0xff]
      %v690 = vld [vmem:[%s593 + $0x3] sm:$0xff]
      %v691 = vld [vmem:[%s593 + $0xb] sm:$0xff]
      %v692 = vld [vmem:[%s593 + $0x1b] sm:$0xff]
      %v693 = vld [vmem:[%s593 + $0x23] sm:$0xff]
      %v694 = vld [vmem:[%s593 + $0x33] sm:$0xff]
      %v695 = vld [vmem:[%s593 + $0x3b] sm:$0xff]
      %v696 = vld [vmem:[%s593 + $0x4b] sm:$0xff]
      %v697 = vld [vmem:[%s593 + $0x53] sm:$0xff]
      %v698 = vld [vmem:[%s593 + $0x63] sm:$0xff]
      %v699 = vld [vmem:[%s593 + $0x6b] sm:$0xff]
      %v700 = vld [vmem:[%s593 + $0x7b] sm:$0xff]
      %v701 = vld [vmem:[%s593 + $0x83] sm:$0xff]
      %v702 = vld [vmem:[%s593 + $0x93] sm:$0xff]
      %v703 = vld [vmem:[%s593 + $0x9b] sm:$0xff]
      %v704 = vld [vmem:[%s593 + $0xab] sm:$0xff]
      %v705 = vld [vmem:[%s593 + $0xb3] sm:$0xff]
      %v706 = vld [vmem:[%s593 + $0xc3] sm:$0xff]
      %v707 = vld [vmem:[%s593 + $0xcb] sm:$0xff]
      %v708 = vld [vmem:[%s593 + $0xdb] sm:$0xff]
      %v709 = vld [vmem:[%s593 + $0xe3] sm:$0xff]
      %v710 = vld [vmem:[%s593 + $0xf3] sm:$0xff]
      %v711 = vld [vmem:[%s593 + $0xfb] sm:$0xff]
      %v712 = vld [vmem:[%s593 + $0x10b] sm:$0xff]
      %v713 = vld [vmem:[%s593 + $0x113] sm:$0xff]
      %v714 = vld [vmem:[%s593 + $0x123] sm:$0xff]
      %v715 = vld [vmem:[%s593 + $0x12b] sm:$0xff]
      %v716 = vld [vmem:[%s593 + $0x13b] sm:$0xff]
      %v717 = vld [vmem:[%s593 + $0x143] sm:$0xff]
      %v718 = vld [vmem:[%s593 + $0x153] sm:$0xff]
      %v719 = vld [vmem:[%s593 + $0x15b] sm:$0xff]
      %v720 = vld [vmem:[%s593 + $0x16b] sm:$0xff]
      %v721 = vld [vmem:[%s593 + $0x173] sm:$0xff]
      %v722 = vld [vmem:[%s593 + $0x4] sm:$0xff]
      %v723 = vld [vmem:[%s593 + $0xc] sm:$0xff]
      %v724 = vld [vmem:[%s593 + $0x1c] sm:$0xff]
      %v725 = vld [vmem:[%s593 + $0x24] sm:$0xff]
      %v726 = vld [vmem:[%s593 + $0x34] sm:$0xff]
      %v727 = vld [vmem:[%s593 + $0x3c] sm:$0xff]
      %v728 = vld [vmem:[%s593 + $0x4c] sm:$0xff]
      %v729 = vld [vmem:[%s593 + $0x54] sm:$0xff]
      %v730 = vld [vmem:[%s593 + $0x64] sm:$0xff]
      %v731 = vld [vmem:[%s593 + $0x6c] sm:$0xff]
      %v732 = vld [vmem:[%s593 + $0x7c] sm:$0xff]
      %v733 = vld [vmem:[%s593 + $0x84] sm:$0xff]
      %v734 = vld [vmem:[%s593 + $0x94] sm:$0xff]
      %v735 = vld [vmem:[%s593 + $0x9c] sm:$0xff]
      %v736 = vld [vmem:[%s593 + $0xac] sm:$0xff]
      %v737 = vld [vmem:[%s593 + $0xb4] sm:$0xff]
      %v738 = vld [vmem:[%s593 + $0xc4] sm:$0xff]
      %v739 = vld [vmem:[%s593 + $0xcc] sm:$0xff]
      %v740 = vld [vmem:[%s593 + $0xdc] sm:$0xff]
      %v741 = vld [vmem:[%s593 + $0xe4] sm:$0xff]
      %v742 = vld [vmem:[%s593 + $0xf4] sm:$0xff]
      %v743 = vld [vmem:[%s593 + $0xfc] sm:$0xff]
      %v744 = vld [vmem:[%s593 + $0x10c] sm:$0xff]
      %v745 = vld [vmem:[%s593 + $0x114] sm:$0xff]
      %v746 = vld [vmem:[%s593 + $0x124] sm:$0xff]
      %v747 = vld [vmem:[%s593 + $0x12c] sm:$0xff]
      %v748 = vld [vmem:[%s593 + $0x13c] sm:$0xff]
      %v749 = vld [vmem:[%s593 + $0x144] sm:$0xff]
      %v750 = vld [vmem:[%s593 + $0x154] sm:$0xff]
      %v751 = vld [vmem:[%s593 + $0x15c] sm:$0xff]
      %v752 = vld [vmem:[%s593 + $0x16c] sm:$0xff]
      %v753 = vld [vmem:[%s593 + $0x174] sm:$0xff]
      %v754 = vld [vmem:[%s400] sm:$0xff]
      %v755 = vld [vmem:[%s400 + $0x8] sm:$0xff]
      %v756 = vld [vmem:[%s400 + $0x18] sm:$0xff]
      %v757 = vld [vmem:[%s400 + $0x20] sm:$0xff]
      %v758 = vld [vmem:[%s400 + $0x30] sm:$0xff]
      %v759 = vld [vmem:[%s400 + $0x38] sm:$0xff]
      %v760 = vld [vmem:[%s400 + $0x48] sm:$0xff]
      %v761 = vld [vmem:[%s400 + $0x50] sm:$0xff]
      %v762 = vld [vmem:[%s400 + $0x60] sm:$0xff]
      %v763 = vld [vmem:[%s400 + $0x68] sm:$0xff]
      %v764 = vld [vmem:[%s400 + $0x78] sm:$0xff]
      %v765 = vld [vmem:[%s400 + $0x80] sm:$0xff]
      %v766 = vld [vmem:[%s400 + $0x90] sm:$0xff]
      %v767 = vld [vmem:[%s400 + $0x98] sm:$0xff]
      %v768 = vld [vmem:[%s400 + $0xa8] sm:$0xff]
      %v769 = vld [vmem:[%s400 + $0xb0] sm:$0xff]
      %v770 = vld [vmem:[%s400 + $0xc0] sm:$0xff]
      %v771 = vld [vmem:[%s400 + $0xc8] sm:$0xff]
      %v772 = vld [vmem:[%s400 + $0xd8] sm:$0xff]
      %v773 = vld [vmem:[%s400 + $0xe0] sm:$0xff]
      %v774 = vld [vmem:[%s400 + $0xf0] sm:$0xff]
      %v775 = vld [vmem:[%s400 + $0xf8] sm:$0xff]
      %v776 = vld [vmem:[%s400 + $0x108] sm:$0xff]
      %v777 = vld [vmem:[%s400 + $0x110] sm:$0xff]
      %v778 = vld [vmem:[%s400 + $0x120] sm:$0xff]
      %v779 = vld [vmem:[%s400 + $0x128] sm:$0xff]
      %v780 = vld [vmem:[%s400 + $0x138] sm:$0xff]
      %v781 = vld [vmem:[%s400 + $0x140] sm:$0xff]
      %v782 = vld [vmem:[%s400 + $0x150] sm:$0xff]
      %v783 = vld [vmem:[%s400 + $0x158] sm:$0xff]
      %v784 = vld [vmem:[%s400 + $0x168] sm:$0xff]
      %v785 = vld [vmem:[%s400 + $0x170] sm:$0xff]
      %v786 = vld [vmem:[%s400 + $0x1] sm:$0xff]
      %v787 = vld [vmem:[%s400 + $0x9] sm:$0xff]
      %v788 = vld [vmem:[%s400 + $0x19] sm:$0xff]
      %v789 = vld [vmem:[%s400 + $0x21] sm:$0xff]
      %v790 = vld [vmem:[%s400 + $0x31] sm:$0xff]
      %v791 = vld [vmem:[%s400 + $0x39] sm:$0xff]
      %v792 = vld [vmem:[%s400 + $0x49] sm:$0xff]
      %v793 = vld [vmem:[%s400 + $0x51] sm:$0xff]
      %v794 = vld [vmem:[%s400 + $0x61] sm:$0xff]
      %v795 = vld [vmem:[%s400 + $0x69] sm:$0xff]
      %v796 = vld [vmem:[%s400 + $0x79] sm:$0xff]
      %v797 = vld [vmem:[%s400 + $0x81] sm:$0xff]
      %v798 = vld [vmem:[%s400 + $0x91] sm:$0xff]
      %v799 = vld [vmem:[%s400 + $0x99] sm:$0xff]
      %v800 = vld [vmem:[%s400 + $0xa9] sm:$0xff]
      %v801 = vld [vmem:[%s400 + $0xb1] sm:$0xff]
      %v802 = vld [vmem:[%s400 + $0xc1] sm:$0xff]
      %v803 = vld [vmem:[%s400 + $0xc9] sm:$0xff]
      %v804 = vld [vmem:[%s400 + $0xd9] sm:$0xff]
      %v805 = vld [vmem:[%s400 + $0xe1] sm:$0xff]
      %v806 = vld [vmem:[%s400 + $0xf1] sm:$0xff]
      %v807 = vld [vmem:[%s400 + $0xf9] sm:$0xff]
      %v808 = vld [vmem:[%s400 + $0x109] sm:$0xff]
      %v809 = vld [vmem:[%s400 + $0x111] sm:$0xff]
      %v810 = vld [vmem:[%s400 + $0x121] sm:$0xff]
      %v811 = vld [vmem:[%s400 + $0x129] sm:$0xff]
      %v812 = vld [vmem:[%s400 + $0x139] sm:$0xff]
      %v813 = vld [vmem:[%s400 + $0x141] sm:$0xff]
      %v814 = vld [vmem:[%s400 + $0x151] sm:$0xff]
      %v815 = vld [vmem:[%s400 + $0x159] sm:$0xff]
      %v816 = vld [vmem:[%s400 + $0x169] sm:$0xff]
      %v817 = vld [vmem:[%s400 + $0x171] sm:$0xff]
      %v818 = vld [vmem:[%s400 + $0x2] sm:$0xff]
      %v819 = vld [vmem:[%s400 + $0xa] sm:$0xff]
      %v820 = vld [vmem:[%s400 + $0x1a] sm:$0xff]
      %v821 = vld [vmem:[%s400 + $0x22] sm:$0xff]
      %v822 = vld [vmem:[%s400 + $0x32] sm:$0xff]
      %v823 = vld [vmem:[%s400 + $0x3a] sm:$0xff]
      %v824 = vld [vmem:[%s400 + $0x4a] sm:$0xff]
      %v825 = vld [vmem:[%s400 + $0x52] sm:$0xff]
      %v826 = vld [vmem:[%s400 + $0x62] sm:$0xff]
      %v827 = vld [vmem:[%s400 + $0x6a] sm:$0xff]
      %v828 = vld [vmem:[%s400 + $0x7a] sm:$0xff]
      %v829 = vld [vmem:[%s400 + $0x82] sm:$0xff]
      %v830 = vld [vmem:[%s400 + $0x92] sm:$0xff]
      %v831 = vld [vmem:[%s400 + $0x9a] sm:$0xff]
      %v832 = vld [vmem:[%s400 + $0xaa] sm:$0xff]
      %v833 = vld [vmem:[%s400 + $0xb2] sm:$0xff]
      %v834 = vld [vmem:[%s400 + $0xc2] sm:$0xff]
      %v835 = vld [vmem:[%s400 + $0xca] sm:$0xff]
      %v836 = vld [vmem:[%s400 + $0xda] sm:$0xff]
      %v837 = vld [vmem:[%s400 + $0xe2] sm:$0xff]
      %v838 = vld [vmem:[%s400 + $0xf2] sm:$0xff]
      %v839 = vld [vmem:[%s400 + $0xfa] sm:$0xff]
      %v840 = vld [vmem:[%s400 + $0x10a] sm:$0xff]
      %v841 = vld [vmem:[%s400 + $0x112] sm:$0xff]
      %v842 = vld [vmem:[%s400 + $0x122] sm:$0xff]
      %v843 = vld [vmem:[%s400 + $0x12a] sm:$0xff]
      %v844 = vld [vmem:[%s400 + $0x13a] sm:$0xff]
      %v845 = vld [vmem:[%s400 + $0x142] sm:$0xff]
      %v846 = vld [vmem:[%s400 + $0x152] sm:$0xff]
      %v847 = vld [vmem:[%s400 + $0x15a] sm:$0xff]
      %v848 = vld [vmem:[%s400 + $0x16a] sm:$0xff]
      %v849 = vld [vmem:[%s400 + $0x172] sm:$0xff]
      %v850 = vld [vmem:[%s400 + $0x3] sm:$0xff]
      %v851 = vld [vmem:[%s400 + $0xb] sm:$0xff]
      %v852 = vld [vmem:[%s400 + $0x1b] sm:$0xff]
      %v853 = vld [vmem:[%s400 + $0x23] sm:$0xff]
      %v854 = vld [vmem:[%s400 + $0x33] sm:$0xff]
      %v855 = vld [vmem:[%s400 + $0x3b] sm:$0xff]
      %v856 = vld [vmem:[%s400 + $0x4b] sm:$0xff]
      %v857 = vld [vmem:[%s400 + $0x53] sm:$0xff]
      %v858 = vld [vmem:[%s400 + $0x63] sm:$0xff]
      %v859 = vld [vmem:[%s400 + $0x6b] sm:$0xff]
      %v860 = vld [vmem:[%s400 + $0x7b] sm:$0xff]
      %v861 = vld [vmem:[%s400 + $0x83] sm:$0xff]
      %v862 = vld [vmem:[%s400 + $0x93] sm:$0xff]
      %v863 = vld [vmem:[%s400 + $0x9b] sm:$0xff]
      %v864 = vld [vmem:[%s400 + $0xab] sm:$0xff]
      %v865 = vld [vmem:[%s400 + $0xb3] sm:$0xff]
      %v866 = vld [vmem:[%s400 + $0xc3] sm:$0xff]
      %v867 = vld [vmem:[%s400 + $0xcb] sm:$0xff]
      %v868 = vld [vmem:[%s400 + $0xdb] sm:$0xff]
      %v869 = vld [vmem:[%s400 + $0xe3] sm:$0xff]
      %v870 = vld [vmem:[%s400 + $0xf3] sm:$0xff]
      %v871 = vld [vmem:[%s400 + $0xfb] sm:$0xff]
      %v872 = vld [vmem:[%s400 + $0x10b] sm:$0xff]
      %v873 = vld [vmem:[%s400 + $0x113] sm:$0xff]
      %v874 = vld [vmem:[%s400 + $0x123] sm:$0xff]
      %v875 = vld [vmem:[%s400 + $0x12b] sm:$0xff]
      %v876 = vld [vmem:[%s400 + $0x13b] sm:$0xff]
      %v877 = vld [vmem:[%s400 + $0x143] sm:$0xff]
      %v878 = vld [vmem:[%s400 + $0x153] sm:$0xff]
      %v879 = vld [vmem:[%s400 + $0x15b] sm:$0xff]
      %v880 = vld [vmem:[%s400 + $0x16b] sm:$0xff]
      %v881 = vld [vmem:[%s400 + $0x173] sm:$0xff]
      %v882 = vld [vmem:[%s400 + $0x4] sm:$0xff]
      %v883 = vld [vmem:[%s400 + $0xc] sm:$0xff]
      %v884 = vld [vmem:[%s400 + $0x1c] sm:$0xff]
      %v885 = vld [vmem:[%s400 + $0x24] sm:$0xff]
      %v886 = vld [vmem:[%s400 + $0x34] sm:$0xff]
      %v887 = vld [vmem:[%s400 + $0x3c] sm:$0xff]
      %v888 = vld [vmem:[%s400 + $0x4c] sm:$0xff]
      %v889 = vld [vmem:[%s400 + $0x54] sm:$0xff]
      %v890 = vld [vmem:[%s400 + $0x64] sm:$0xff]
      %v891 = vld [vmem:[%s400 + $0x6c] sm:$0xff]
      %v892 = vld [vmem:[%s400 + $0x7c] sm:$0xff]
      %v893 = vld [vmem:[%s400 + $0x84] sm:$0xff]
      %v894 = vld [vmem:[%s400 + $0x94] sm:$0xff]
      %v895 = vld [vmem:[%s400 + $0x9c] sm:$0xff]
      %v896 = vld [vmem:[%s400 + $0xac] sm:$0xff]
      %v897 = vld [vmem:[%s400 + $0xb4] sm:$0xff]
      %v898 = vld [vmem:[%s400 + $0xc4] sm:$0xff]
      %v899 = vld [vmem:[%s400 + $0xcc] sm:$0xff]
      %v900 = vld [vmem:[%s400 + $0xdc] sm:$0xff]
      %v901 = vld [vmem:[%s400 + $0xe4] sm:$0xff]
      %v902 = vld [vmem:[%s400 + $0xf4] sm:$0xff]
      %v903 = vld [vmem:[%s400 + $0xfc] sm:$0xff]
      %v904 = vld [vmem:[%s400 + $0x10c] sm:$0xff]
      %v905 = vld [vmem:[%s400 + $0x114] sm:$0xff]
      %v906 = vld [vmem:[%s400 + $0x124] sm:$0xff]
      %v907 = vld [vmem:[%s400 + $0x12c] sm:$0xff]
      %v908 = vld [vmem:[%s400 + $0x13c] sm:$0xff]
      %v909 = vld [vmem:[%s400 + $0x144] sm:$0xff]
      %v910 = vld [vmem:[%s400 + $0x154] sm:$0xff]
      %v911 = vld [vmem:[%s400 + $0x15c] sm:$0xff]
      %v912 = vld [vmem:[%s400 + $0x16c] sm:$0xff]
      %v913 = vld [vmem:[%s400 + $0x174] sm:$0xff]
      %s914 = scalar_lea.vmem [#allocation2], 72
      %v915 = vld [vmem:[%s914] sm:$0xff]
      %v916 = vld [vmem:[%s914 + $0x8] sm:$0xff]
      %v917 = vld [vmem:[%s914 + $0x18] sm:$0xff]
      %v918 = vld [vmem:[%s914 + $0x20] sm:$0xff]
      %v919 = vld [vmem:[%s914 + $0x30] sm:$0xff]
      %v920 = vld [vmem:[%s914 + $0x38] sm:$0xff]
      %v921 = vld [vmem:[%s914 + $0x48] sm:$0xff]
      %v922 = vld [vmem:[%s914 + $0x50] sm:$0xff]
      %v923 = vld [vmem:[%s914 + $0x60] sm:$0xff]
      %v924 = vld [vmem:[%s914 + $0x68] sm:$0xff]
      %v925 = vld [vmem:[%s914 + $0x78] sm:$0xff]
      %v926 = vld [vmem:[%s914 + $0x80] sm:$0xff]
      %v927 = vld [vmem:[%s914 + $0x90] sm:$0xff]
      %v928 = vld [vmem:[%s914 + $0x98] sm:$0xff]
      %v929 = vld [vmem:[%s914 + $0xa8] sm:$0xff]
      %v930 = vld [vmem:[%s914 + $0xb0] sm:$0xff]
      %v931 = vld [vmem:[%s914 + $0xc0] sm:$0xff]
      %v932 = vld [vmem:[%s914 + $0xc8] sm:$0xff]
      %v933 = vld [vmem:[%s914 + $0xd8] sm:$0xff]
      %v934 = vld [vmem:[%s914 + $0xe0] sm:$0xff]
      %v935 = vld [vmem:[%s914 + $0xf0] sm:$0xff]
      %v936 = vld [vmem:[%s914 + $0xf8] sm:$0xff]
      %v937 = vld [vmem:[%s914 + $0x108] sm:$0xff]
      %v938 = vld [vmem:[%s914 + $0x110] sm:$0xff]
      %v939 = vld [vmem:[%s914 + $0x120] sm:$0xff]
      %v940 = vld [vmem:[%s914 + $0x128] sm:$0xff]
      %v941 = vld [vmem:[%s914 + $0x138] sm:$0xff]
      %v942 = vld [vmem:[%s914 + $0x140] sm:$0xff]
      %v943 = vld [vmem:[%s914 + $0x150] sm:$0xff]
      %v944 = vld [vmem:[%s914 + $0x158] sm:$0xff]
      %v945 = vld [vmem:[%s914 + $0x168] sm:$0xff]
      %v946 = vld [vmem:[%s914 + $0x170] sm:$0xff]
      %v947 = vld [vmem:[%s914 + $0x1] sm:$0xff]
      %v948 = vld [vmem:[%s914 + $0x9] sm:$0xff]
      %v949 = vld [vmem:[%s914 + $0x19] sm:$0xff]
      %v950 = vld [vmem:[%s914 + $0x21] sm:$0xff]
      %v951 = vld [vmem:[%s914 + $0x31] sm:$0xff]
      %v952 = vld [vmem:[%s914 + $0x39] sm:$0xff]
      %v953 = vld [vmem:[%s914 + $0x49] sm:$0xff]
      %v954 = vld [vmem:[%s914 + $0x51] sm:$0xff]
      %v955 = vld [vmem:[%s914 + $0x61] sm:$0xff]
      %v956 = vld [vmem:[%s914 + $0x69] sm:$0xff]
      %v957 = vld [vmem:[%s914 + $0x79] sm:$0xff]
      %v958 = vld [vmem:[%s914 + $0x81] sm:$0xff]
      %v959 = vld [vmem:[%s914 + $0x91] sm:$0xff]
      %v960 = vld [vmem:[%s914 + $0x99] sm:$0xff]
      %v961 = vld [vmem:[%s914 + $0xa9] sm:$0xff]
      %v962 = vld [vmem:[%s914 + $0xb1] sm:$0xff]
      %v963 = vld [vmem:[%s914 + $0xc1] sm:$0xff]
      %v964 = vld [vmem:[%s914 + $0xc9] sm:$0xff]
      %v965 = vld [vmem:[%s914 + $0xd9] sm:$0xff]
      %v966 = vld [vmem:[%s914 + $0xe1] sm:$0xff]
      %v967 = vld [vmem:[%s914 + $0xf1] sm:$0xff]
      %v968 = vld [vmem:[%s914 + $0xf9] sm:$0xff]
      %v969 = vld [vmem:[%s914 + $0x109] sm:$0xff]
      %v970 = vld [vmem:[%s914 + $0x111] sm:$0xff]
      %v971 = vld [vmem:[%s914 + $0x121] sm:$0xff]
      %v972 = vld [vmem:[%s914 + $0x129] sm:$0xff]
      %v973 = vld [vmem:[%s914 + $0x139] sm:$0xff]
      %v974 = vld [vmem:[%s914 + $0x141] sm:$0xff]
      %v975 = vld [vmem:[%s914 + $0x151] sm:$0xff]
      %v976 = vld [vmem:[%s914 + $0x159] sm:$0xff]
      %v977 = vld [vmem:[%s914 + $0x169] sm:$0xff]
      %v978 = vld [vmem:[%s914 + $0x171] sm:$0xff]
      %v979 = vld [vmem:[%s914 + $0x2] sm:$0xff]
      %v980 = vld [vmem:[%s914 + $0xa] sm:$0xff]
      %v981 = vld [vmem:[%s914 + $0x1a] sm:$0xff]
      %v982 = vld [vmem:[%s914 + $0x22] sm:$0xff]
      %v983 = vld [vmem:[%s914 + $0x32] sm:$0xff]
      %v984 = vld [vmem:[%s914 + $0x3a] sm:$0xff]
      %v985 = vld [vmem:[%s914 + $0x4a] sm:$0xff]
      %v986 = vld [vmem:[%s914 + $0x52] sm:$0xff]
      %v987 = vld [vmem:[%s914 + $0x62] sm:$0xff]
      %v988 = vld [vmem:[%s914 + $0x6a] sm:$0xff]
      %v989 = vld [vmem:[%s914 + $0x7a] sm:$0xff]
      %v990 = vld [vmem:[%s914 + $0x82] sm:$0xff]
      %v991 = vld [vmem:[%s914 + $0x92] sm:$0xff]
      %v992 = vld [vmem:[%s914 + $0x9a] sm:$0xff]
      %v993 = vld [vmem:[%s914 + $0xaa] sm:$0xff]
      %v994 = vld [vmem:[%s914 + $0xb2] sm:$0xff]
      %v995 = vld [vmem:[%s914 + $0xc2] sm:$0xff]
      %v996 = vld [vmem:[%s914 + $0xca] sm:$0xff]
      %v997 = vld [vmem:[%s914 + $0xda] sm:$0xff]
      %v998 = vld [vmem:[%s914 + $0xe2] sm:$0xff]
      %v999 = vld [vmem:[%s914 + $0xf2] sm:$0xff]
      %v1000 = vld [vmem:[%s914 + $0xfa] sm:$0xff]
      %v1001 = vld [vmem:[%s914 + $0x10a] sm:$0xff]
      %v1002 = vld [vmem:[%s914 + $0x112] sm:$0xff]
      %v1003 = vld [vmem:[%s914 + $0x122] sm:$0xff]
      %v1004 = vld [vmem:[%s914 + $0x12a] sm:$0xff]
      %v1005 = vld [vmem:[%s914 + $0x13a] sm:$0xff]
      %v1006 = vld [vmem:[%s914 + $0x142] sm:$0xff]
      %v1007 = vld [vmem:[%s914 + $0x152] sm:$0xff]
      %v1008 = vld [vmem:[%s914 + $0x15a] sm:$0xff]
      %v1009 = vld [vmem:[%s914 + $0x16a] sm:$0xff]
      %v1010 = vld [vmem:[%s914 + $0x172] sm:$0xff]
      %v1011 = vld [vmem:[%s914 + $0x3] sm:$0xff]
      %v1012 = vld [vmem:[%s914 + $0xb] sm:$0xff]
      %v1013 = vld [vmem:[%s914 + $0x1b] sm:$0xff]
      %v1014 = vld [vmem:[%s914 + $0x23] sm:$0xff]
      %v1015 = vld [vmem:[%s914 + $0x33] sm:$0xff]
      %v1016 = vld [vmem:[%s914 + $0x3b] sm:$0xff]
      %v1017 = vld [vmem:[%s914 + $0x4b] sm:$0xff]
      %v1018 = vld [vmem:[%s914 + $0x53] sm:$0xff]
      %v1019 = vld [vmem:[%s914 + $0x63] sm:$0xff]
      %v1020 = vld [vmem:[%s914 + $0x6b] sm:$0xff]
      %v1021 = vld [vmem:[%s914 + $0x7b] sm:$0xff]
      %v1022 = vld [vmem:[%s914 + $0x83] sm:$0xff]
      %v1023 = vld [vmem:[%s914 + $0x93] sm:$0xff]
      %v1024 = vld [vmem:[%s914 + $0x9b] sm:$0xff]
      %v1025 = vld [vmem:[%s914 + $0xab] sm:$0xff]
      %v1026 = vld [vmem:[%s914 + $0xb3] sm:$0xff]
      %v1027 = vld [vmem:[%s914 + $0xc3] sm:$0xff]
      %v1028 = vld [vmem:[%s914 + $0xcb] sm:$0xff]
      %v1029 = vld [vmem:[%s914 + $0xdb] sm:$0xff]
      %v1030 = vld [vmem:[%s914 + $0xe3] sm:$0xff]
      %v1031 = vld [vmem:[%s914 + $0xf3] sm:$0xff]
      %v1032 = vld [vmem:[%s914 + $0xfb] sm:$0xff]
      %v1033 = vld [vmem:[%s914 + $0x10b] sm:$0xff]
      %v1034 = vld [vmem:[%s914 + $0x113] sm:$0xff]
      %v1035 = vld [vmem:[%s914 + $0x123] sm:$0xff]
      %v1036 = vld [vmem:[%s914 + $0x12b] sm:$0xff]
      %v1037 = vld [vmem:[%s914 + $0x13b] sm:$0xff]
      %v1038 = vld [vmem:[%s914 + $0x143] sm:$0xff]
      %v1039 = vld [vmem:[%s914 + $0x153] sm:$0xff]
      %v1040 = vld [vmem:[%s914 + $0x15b] sm:$0xff]
      %v1041 = vld [vmem:[%s914 + $0x16b] sm:$0xff]
      %v1042 = vld [vmem:[%s914 + $0x173] sm:$0xff]
      %v1043 = vld [vmem:[%s914 + $0x4] sm:$0xff]
      %v1044 = vld [vmem:[%s914 + $0xc] sm:$0xff]
      %v1045 = vld [vmem:[%s914 + $0x1c] sm:$0xff]
      %v1046 = vld [vmem:[%s914 + $0x24] sm:$0xff]
      %v1047 = vld [vmem:[%s914 + $0x34] sm:$0xff]
      %v1048 = vld [vmem:[%s914 + $0x3c] sm:$0xff]
      %v1049 = vld [vmem:[%s914 + $0x4c] sm:$0xff]
      %v1050 = vld [vmem:[%s914 + $0x54] sm:$0xff]
      %v1051 = vld [vmem:[%s914 + $0x64] sm:$0xff]
      %v1052 = vld [vmem:[%s914 + $0x6c] sm:$0xff]
      %v1053 = vld [vmem:[%s914 + $0x7c] sm:$0xff]
      %v1054 = vld [vmem:[%s914 + $0x84] sm:$0xff]
      %v1055 = vld [vmem:[%s914 + $0x94] sm:$0xff]
      %v1056 = vld [vmem:[%s914 + $0x9c] sm:$0xff]
      %v1057 = vld [vmem:[%s914 + $0xac] sm:$0xff]
      %v1058 = vld [vmem:[%s914 + $0xb4] sm:$0xff]
      %v1059 = vld [vmem:[%s914 + $0xc4] sm:$0xff]
      %v1060 = vld [vmem:[%s914 + $0xcc] sm:$0xff]
      %v1061 = vld [vmem:[%s914 + $0xdc] sm:$0xff]
      %v1062 = vld [vmem:[%s914 + $0xe4] sm:$0xff]
      %v1063 = vld [vmem:[%s914 + $0xf4] sm:$0xff]
      %v1064 = vld [vmem:[%s914 + $0xfc] sm:$0xff]
      %v1065 = vld [vmem:[%s914 + $0x10c] sm:$0xff]
      %v1066 = vld [vmem:[%s914 + $0x114] sm:$0xff]
      %v1067 = vld [vmem:[%s914 + $0x124] sm:$0xff]
      %v1068 = vld [vmem:[%s914 + $0x12c] sm:$0xff]
      %v1069 = vld [vmem:[%s914 + $0x13c] sm:$0xff]
      %v1070 = vld [vmem:[%s914 + $0x144] sm:$0xff]
      %v1071 = vld [vmem:[%s914 + $0x154] sm:$0xff]
      %v1072 = vld [vmem:[%s914 + $0x15c] sm:$0xff]
      %v1073 = vld [vmem:[%s914 + $0x16c] sm:$0xff]
      %v1074 = vld [vmem:[%s914 + $0x174] sm:$0xff]
      %s1075 = scalar_lea.vmem [#allocation2], 96
      %v1076 = vld [vmem:[%s1075] sm:$0xff]
      %v1077 = vld [vmem:[%s1075 + $0x8] sm:$0xff]
      %v1078 = vld [vmem:[%s1075 + $0x18] sm:$0xff]
      %v1079 = vld [vmem:[%s1075 + $0x20] sm:$0xff]
      %v1080 = vld [vmem:[%s1075 + $0x30] sm:$0xff]
      %v1081 = vld [vmem:[%s1075 + $0x38] sm:$0xff]
      %v1082 = vld [vmem:[%s1075 + $0x48] sm:$0xff]
      %v1083 = vld [vmem:[%s1075 + $0x50] sm:$0xff]
      %v1084 = vld [vmem:[%s1075 + $0x60] sm:$0xff]
      %v1085 = vld [vmem:[%s1075 + $0x68] sm:$0xff]
      %v1086 = vld [vmem:[%s1075 + $0x78] sm:$0xff]
      %v1087 = vld [vmem:[%s1075 + $0x80] sm:$0xff]
      %v1088 = vld [vmem:[%s1075 + $0x90] sm:$0xff]
      %v1089 = vld [vmem:[%s1075 + $0x98] sm:$0xff]
      %v1090 = vld [vmem:[%s1075 + $0xa8] sm:$0xff]
      %v1091 = vld [vmem:[%s1075 + $0xb0] sm:$0xff]
      %v1092 = vld [vmem:[%s1075 + $0xc0] sm:$0xff]
      %v1093 = vld [vmem:[%s1075 + $0xc8] sm:$0xff]
      %v1094 = vld [vmem:[%s1075 + $0xd8] sm:$0xff]
      %v1095 = vld [vmem:[%s1075 + $0xe0] sm:$0xff]
      %v1096 = vld [vmem:[%s1075 + $0xf0] sm:$0xff]
      %v1097 = vld [vmem:[%s1075 + $0xf8] sm:$0xff]
      %v1098 = vld [vmem:[%s1075 + $0x108] sm:$0xff]
      %v1099 = vld [vmem:[%s1075 + $0x110] sm:$0xff]
      %v1100 = vld [vmem:[%s1075 + $0x120] sm:$0xff]
      %v1101 = vld [vmem:[%s1075 + $0x128] sm:$0xff]
      %v1102 = vld [vmem:[%s1075 + $0x138] sm:$0xff]
      %v1103 = vld [vmem:[%s1075 + $0x140] sm:$0xff]
      %v1104 = vld [vmem:[%s1075 + $0x150] sm:$0xff]
      %v1105 = vld [vmem:[%s1075 + $0x158] sm:$0xff]
      %v1106 = vld [vmem:[%s1075 + $0x168] sm:$0xff]
      %v1107 = vld [vmem:[%s1075 + $0x170] sm:$0xff]
      %v1108 = vld [vmem:[%s1075 + $0x1] sm:$0xff]
      %v1109 = vld [vmem:[%s1075 + $0x9] sm:$0xff]
      %v1110 = vld [vmem:[%s1075 + $0x19] sm:$0xff]
      %v1111 = vld [vmem:[%s1075 + $0x21] sm:$0xff]
      %v1112 = vld [vmem:[%s1075 + $0x31] sm:$0xff]
      %v1113 = vld [vmem:[%s1075 + $0x39] sm:$0xff]
      %v1114 = vld [vmem:[%s1075 + $0x49] sm:$0xff]
      %v1115 = vld [vmem:[%s1075 + $0x51] sm:$0xff]
      %v1116 = vld [vmem:[%s1075 + $0x61] sm:$0xff]
      %v1117 = vld [vmem:[%s1075 + $0x69] sm:$0xff]
      %v1118 = vld [vmem:[%s1075 + $0x79] sm:$0xff]
      %v1119 = vld [vmem:[%s1075 + $0x81] sm:$0xff]
      %v1120 = vld [vmem:[%s1075 + $0x91] sm:$0xff]
      %v1121 = vld [vmem:[%s1075 + $0x99] sm:$0xff]
      %v1122 = vld [vmem:[%s1075 + $0xa9] sm:$0xff]
      %v1123 = vld [vmem:[%s1075 + $0xb1] sm:$0xff]
      %v1124 = vld [vmem:[%s1075 + $0xc1] sm:$0xff]
      %v1125 = vld [vmem:[%s1075 + $0xc9] sm:$0xff]
      %v1126 = vld [vmem:[%s1075 + $0xd9] sm:$0xff]
      %v1127 = vld [vmem:[%s1075 + $0xe1] sm:$0xff]
      %v1128 = vld [vmem:[%s1075 + $0xf1] sm:$0xff]
      %v1129 = vld [vmem:[%s1075 + $0xf9] sm:$0xff]
      %v1130 = vld [vmem:[%s1075 + $0x109] sm:$0xff]
      %v1131 = vld [vmem:[%s1075 + $0x111] sm:$0xff]
      %v1132 = vld [vmem:[%s1075 + $0x121] sm:$0xff]
      %v1133 = vld [vmem:[%s1075 + $0x129] sm:$0xff]
      %v1134 = vld [vmem:[%s1075 + $0x139] sm:$0xff]
      %v1135 = vld [vmem:[%s1075 + $0x141] sm:$0xff]
      %v1136 = vld [vmem:[%s1075 + $0x151] sm:$0xff]
      %v1137 = vld [vmem:[%s1075 + $0x159] sm:$0xff]
      %v1138 = vld [vmem:[%s1075 + $0x169] sm:$0xff]
      %v1139 = vld [vmem:[%s1075 + $0x171] sm:$0xff]
      %v1140 = vld [vmem:[%s1075 + $0x2] sm:$0xff]
      %v1141 = vld [vmem:[%s1075 + $0xa] sm:$0xff]
      %v1142 = vld [vmem:[%s1075 + $0x1a] sm:$0xff]
      %v1143 = vld [vmem:[%s1075 + $0x22] sm:$0xff]
      %v1144 = vld [vmem:[%s1075 + $0x32] sm:$0xff]
      %v1145 = vld [vmem:[%s1075 + $0x3a] sm:$0xff]
      %v1146 = vld [vmem:[%s1075 + $0x4a] sm:$0xff]
      %v1147 = vld [vmem:[%s1075 + $0x52] sm:$0xff]
      %v1148 = vld [vmem:[%s1075 + $0x62] sm:$0xff]
      %v1149 = vld [vmem:[%s1075 + $0x6a] sm:$0xff]
      %v1150 = vld [vmem:[%s1075 + $0x7a] sm:$0xff]
      %v1151 = vld [vmem:[%s1075 + $0x82] sm:$0xff]
      %v1152 = vld [vmem:[%s1075 + $0x92] sm:$0xff]
      %v1153 = vld [vmem:[%s1075 + $0x9a] sm:$0xff]
      %v1154 = vld [vmem:[%s1075 + $0xaa] sm:$0xff]
      %v1155 = vld [vmem:[%s1075 + $0xb2] sm:$0xff]
      %v1156 = vld [vmem:[%s1075 + $0xc2] sm:$0xff]
      %v1157 = vld [vmem:[%s1075 + $0xca] sm:$0xff]
      %v1158 = vld [vmem:[%s1075 + $0xda] sm:$0xff]
      %v1159 = vld [vmem:[%s1075 + $0xe2] sm:$0xff]
      %v1160 = vld [vmem:[%s1075 + $0xf2] sm:$0xff]
      %v1161 = vld [vmem:[%s1075 + $0xfa] sm:$0xff]
      %v1162 = vld [vmem:[%s1075 + $0x10a] sm:$0xff]
      %v1163 = vld [vmem:[%s1075 + $0x112] sm:$0xff]
      %v1164 = vld [vmem:[%s1075 + $0x122] sm:$0xff]
      %v1165 = vld [vmem:[%s1075 + $0x12a] sm:$0xff]
      %v1166 = vld [vmem:[%s1075 + $0x13a] sm:$0xff]
      %v1167 = vld [vmem:[%s1075 + $0x142] sm:$0xff]
      %v1168 = vld [vmem:[%s1075 + $0x152] sm:$0xff]
      %v1169 = vld [vmem:[%s1075 + $0x15a] sm:$0xff]
      %v1170 = vld [vmem:[%s1075 + $0x16a] sm:$0xff]
      %v1171 = vld [vmem:[%s1075 + $0x172] sm:$0xff]
      %v1172 = vld [vmem:[%s1075 + $0x3] sm:$0xff]
      %v1173 = vld [vmem:[%s1075 + $0xb] sm:$0xff]
      %v1174 = vld [vmem:[%s1075 + $0x1b] sm:$0xff]
      %v1175 = vld [vmem:[%s1075 + $0x23] sm:$0xff]
      %v1176 = vld [vmem:[%s1075 + $0x33] sm:$0xff]
      %v1177 = vld [vmem:[%s1075 + $0x3b] sm:$0xff]
      %v1178 = vld [vmem:[%s1075 + $0x4b] sm:$0xff]
      %v1179 = vld [vmem:[%s1075 + $0x53] sm:$0xff]
      %v1180 = vld [vmem:[%s1075 + $0x63] sm:$0xff]
      %v1181 = vld [vmem:[%s1075 + $0x6b] sm:$0xff]
      %v1182 = vld [vmem:[%s1075 + $0x7b] sm:$0xff]
      %v1183 = vld [vmem:[%s1075 + $0x83] sm:$0xff]
      %v1184 = vld [vmem:[%s1075 + $0x93] sm:$0xff]
      %v1185 = vld [vmem:[%s1075 + $0x9b] sm:$0xff]
      %v1186 = vld [vmem:[%s1075 + $0xab] sm:$0xff]
      %v1187 = vld [vmem:[%s1075 + $0xb3] sm:$0xff]
      %v1188 = vld [vmem:[%s1075 + $0xc3] sm:$0xff]
      %v1189 = vld [vmem:[%s1075 + $0xcb] sm:$0xff]
      %v1190 = vld [vmem:[%s1075 + $0xdb] sm:$0xff]
      %v1191 = vld [vmem:[%s1075 + $0xe3] sm:$0xff]
      %v1192 = vld [vmem:[%s1075 + $0xf3] sm:$0xff]
      %v1193 = vld [vmem:[%s1075 + $0xfb] sm:$0xff]
      %v1194 = vld [vmem:[%s1075 + $0x10b] sm:$0xff]
      %v1195 = vld [vmem:[%s1075 + $0x113] sm:$0xff]
      %v1196 = vld [vmem:[%s1075 + $0x123] sm:$0xff]
      %v1197 = vld [vmem:[%s1075 + $0x12b] sm:$0xff]
      %v1198 = vld [vmem:[%s1075 + $0x13b] sm:$0xff]
      %v1199 = vld [vmem:[%s1075 + $0x143] sm:$0xff]
      %v1200 = vld [vmem:[%s1075 + $0x153] sm:$0xff]
      %v1201 = vld [vmem:[%s1075 + $0x15b] sm:$0xff]
      %v1202 = vld [vmem:[%s1075 + $0x16b] sm:$0xff]
      %v1203 = vld [vmem:[%s1075 + $0x173] sm:$0xff]
      %v1204 = vld [vmem:[%s1075 + $0x4] sm:$0xff]
      %v1205 = vld [vmem:[%s1075 + $0xc] sm:$0xff]
      %v1206 = vld [vmem:[%s1075 + $0x1c] sm:$0xff]
      %v1207 = vld [vmem:[%s1075 + $0x24] sm:$0xff]
      %v1208 = vld [vmem:[%s1075 + $0x34] sm:$0xff]
      %v1209 = vld [vmem:[%s1075 + $0x3c] sm:$0xff]
      %v1210 = vld [vmem:[%s1075 + $0x4c] sm:$0xff]
      %v1211 = vld [vmem:[%s1075 + $0x54] sm:$0xff]
      %v1212 = vld [vmem:[%s1075 + $0x64] sm:$0xff]
      %v1213 = vld [vmem:[%s1075 + $0x6c] sm:$0xff]
      %v1214 = vld [vmem:[%s1075 + $0x7c] sm:$0xff]
      %v1215 = vld [vmem:[%s1075 + $0x84] sm:$0xff]
      %v1216 = vld [vmem:[%s1075 + $0x94] sm:$0xff]
      %v1217 = vld [vmem:[%s1075 + $0x9c] sm:$0xff]
      %v1218 = vld [vmem:[%s1075 + $0xac] sm:$0xff]
      %v1219 = vld [vmem:[%s1075 + $0xb4] sm:$0xff]
      %v1220 = vld [vmem:[%s1075 + $0xc4] sm:$0xff]
      %v1221 = vld [vmem:[%s1075 + $0xcc] sm:$0xff]
      %v1222 = vld [vmem:[%s1075 + $0xdc] sm:$0xff]
      %v1223 = vld [vmem:[%s1075 + $0xe4] sm:$0xff]
      %v1224 = vld [vmem:[%s1075 + $0xf4] sm:$0xff]
      %v1225 = vld [vmem:[%s1075 + $0xfc] sm:$0xff]
      %v1226 = vld [vmem:[%s1075 + $0x10c] sm:$0xff]
      %v1227 = vld [vmem:[%s1075 + $0x114] sm:$0xff]
      %v1228 = vld [vmem:[%s1075 + $0x124] sm:$0xff]
      %v1229 = vld [vmem:[%s1075 + $0x12c] sm:$0xff]
      %v1230 = vld [vmem:[%s1075 + $0x13c] sm:$0xff]
      %v1231 = vld [vmem:[%s1075 + $0x144] sm:$0xff]
      %v1232 = vld [vmem:[%s1075 + $0x154] sm:$0xff]
      %v1233 = vld [vmem:[%s1075 + $0x15c] sm:$0xff]
      %v1234 = vld [vmem:[%s1075 + $0x16c] sm:$0xff]
      %v1235 = vld [vmem:[%s1075 + $0x174] sm:$0xff]
      %1268 = vrot.lane.b32.xlu0 %v465, 4
      %v1269 = vpop.permute.xlu0 %1268
      %1270 = vrot.lane.b32.xlu0 %v466, 4
      %v1271 = vpop.permute.xlu0 %1270
      %1272 = vrot.lane.b32.xlu0 %v467, 4
      %v1273 = vpop.permute.xlu0 %1272
      %1274 = vrot.lane.b32.xlu0 %v468, 4
      %v1275 = vpop.permute.xlu0 %1274
      %1276 = vrot.lane.b32.xlu0 %v469, 4
      %v1277 = vpop.permute.xlu0 %1276
      %1278 = vrot.lane.b32.xlu0 %v470, 4
      %v1279 = vpop.permute.xlu0 %1278
      %1280 = vrot.lane.b32.xlu0 %v471, 4
      %v1281 = vpop.permute.xlu0 %1280
      %1282 = vrot.lane.b32.xlu0 %v472, 4
      %v1283 = vpop.permute.xlu0 %1282
      %1284 = vrot.lane.b32.xlu0 %v473, 4
      %v1285 = vpop.permute.xlu0 %1284
      %1286 = vrot.lane.b32.xlu0 %v474, 4
      %v1287 = vpop.permute.xlu0 %1286
      %1288 = vrot.lane.b32.xlu0 %v475, 4
      %v1289 = vpop.permute.xlu0 %1288
      %1290 = vrot.lane.b32.xlu0 %v476, 4
      %v1291 = vpop.permute.xlu0 %1290
      %1292 = vrot.lane.b32.xlu0 %v477, 4
      %v1293 = vpop.permute.xlu0 %1292
      %1294 = vrot.lane.b32.xlu0 %v478, 4
      %v1295 = vpop.permute.xlu0 %1294
      %1296 = vrot.lane.b32.xlu0 %v479, 4
      %v1297 = vpop.permute.xlu0 %1296
      %1298 = vrot.lane.b32.xlu0 %v480, 4
      %v1299 = vpop.permute.xlu0 %1298
      %1300 = vrot.lane.b32.xlu0 %v481, 4
      %v1301 = vpop.permute.xlu0 %1300
      %1302 = vrot.lane.b32.xlu0 %v482, 4
      %v1303 = vpop.permute.xlu0 %1302
      %1304 = vrot.lane.b32.xlu0 %v483, 4
      %v1305 = vpop.permute.xlu0 %1304
      %1306 = vrot.lane.b32.xlu0 %v484, 4
      %v1307 = vpop.permute.xlu0 %1306
      %1308 = vrot.lane.b32.xlu0 %v485, 4
      %v1309 = vpop.permute.xlu0 %1308
      %1310 = vrot.lane.b32.xlu0 %v486, 4
      %v1311 = vpop.permute.xlu0 %1310
      %1312 = vrot.lane.b32.xlu0 %v487, 4
      %v1313 = vpop.permute.xlu0 %1312
      %1314 = vrot.lane.b32.xlu0 %v488, 4
      %v1315 = vpop.permute.xlu0 %1314
      %1316 = vrot.lane.b32.xlu0 %v489, 4
      %v1317 = vpop.permute.xlu0 %1316
      %1318 = vrot.lane.b32.xlu0 %v490, 4
      %v1319 = vpop.permute.xlu0 %1318
      %1320 = vrot.lane.b32.xlu0 %v491, 4
      %v1321 = vpop.permute.xlu0 %1320
      %1322 = vrot.lane.b32.xlu0 %v492, 4
      %v1323 = vpop.permute.xlu0 %1322
      %1324 = vrot.lane.b32.xlu0 %v493, 4
      %v1325 = vpop.permute.xlu0 %1324
      %1326 = vrot.lane.b32.xlu0 %v494, 4
      %v1327 = vpop.permute.xlu0 %1326
      %1328 = vrot.lane.b32.xlu0 %v495, 4
      %v1329 = vpop.permute.xlu0 %1328
      %1330 = vrot.lane.b32.xlu0 %v496, 4
      %v1331 = vpop.permute.xlu0 %1330
      %1396 = vrot.lane.b32.xlu0 %v497, 8
      %v1397 = vpop.permute.xlu0 %1396
      %1398 = vrot.lane.b32.xlu0 %v498, 8
      %v1399 = vpop.permute.xlu0 %1398
      %1400 = vrot.lane.b32.xlu0 %v499, 8
      %v1401 = vpop.permute.xlu0 %1400
      %1402 = vrot.lane.b32.xlu0 %v500, 8
      %v1403 = vpop.permute.xlu0 %1402
      %1404 = vrot.lane.b32.xlu0 %v501, 8
      %v1405 = vpop.permute.xlu0 %1404
      %1406 = vrot.lane.b32.xlu0 %v502, 8
      %v1407 = vpop.permute.xlu0 %1406
      %1408 = vrot.lane.b32.xlu0 %v503, 8
      %v1409 = vpop.permute.xlu0 %1408
      %1410 = vrot.lane.b32.xlu0 %v504, 8
      %v1411 = vpop.permute.xlu0 %1410
      %1412 = vrot.lane.b32.xlu0 %v505, 8
      %v1413 = vpop.permute.xlu0 %1412
      %1414 = vrot.lane.b32.xlu0 %v506, 8
      %v1415 = vpop.permute.xlu0 %1414
      %1416 = vrot.lane.b32.xlu0 %v507, 8
      %v1417 = vpop.permute.xlu0 %1416
      %1418 = vrot.lane.b32.xlu0 %v508, 8
      %v1419 = vpop.permute.xlu0 %1418
      %1420 = vrot.lane.b32.xlu0 %v509, 8
      %v1421 = vpop.permute.xlu0 %1420
      %1422 = vrot.lane.b32.xlu0 %v510, 8
      %v1423 = vpop.permute.xlu0 %1422
      %1424 = vrot.lane.b32.xlu0 %v511, 8
      %v1425 = vpop.permute.xlu0 %1424
      %1426 = vrot.lane.b32.xlu0 %v512, 8
      %v1427 = vpop.permute.xlu0 %1426
      %1428 = vrot.lane.b32.xlu0 %v513, 8
      %v1429 = vpop.permute.xlu0 %1428
      %1430 = vrot.lane.b32.xlu0 %v514, 8
      %v1431 = vpop.permute.xlu0 %1430
      %1432 = vrot.lane.b32.xlu0 %v515, 8
      %v1433 = vpop.permute.xlu0 %1432
      %1434 = vrot.lane.b32.xlu0 %v516, 8
      %v1435 = vpop.permute.xlu0 %1434
      %1436 = vrot.lane.b32.xlu0 %v517, 8
      %v1437 = vpop.permute.xlu0 %1436
      %1438 = vrot.lane.b32.xlu0 %v518, 8
      %v1439 = vpop.permute.xlu0 %1438
      %1440 = vrot.lane.b32.xlu0 %v519, 8
      %v1441 = vpop.permute.xlu0 %1440
      %1442 = vrot.lane.b32.xlu0 %v520, 8
      %v1443 = vpop.permute.xlu0 %1442
      %1444 = vrot.lane.b32.xlu0 %v521, 8
      %v1445 = vpop.permute.xlu0 %1444
      %1446 = vrot.lane.b32.xlu0 %v522, 8
      %v1447 = vpop.permute.xlu0 %1446
      %1448 = vrot.lane.b32.xlu0 %v523, 8
      %v1449 = vpop.permute.xlu0 %1448
      %1450 = vrot.lane.b32.xlu0 %v524, 8
      %v1451 = vpop.permute.xlu0 %1450
      %1452 = vrot.lane.b32.xlu0 %v525, 8
      %v1453 = vpop.permute.xlu0 %1452
      %1454 = vrot.lane.b32.xlu0 %v526, 8
      %v1455 = vpop.permute.xlu0 %1454
      %1456 = vrot.lane.b32.xlu0 %v527, 8
      %v1457 = vpop.permute.xlu0 %1456
      %1458 = vrot.lane.b32.xlu0 %v528, 8
      %v1459 = vpop.permute.xlu0 %1458
      %1524 = vrot.lane.b32.xlu0 %v529, 12
      %v1525 = vpop.permute.xlu0 %1524
      %1526 = vrot.lane.b32.xlu0 %v530, 12
      %v1527 = vpop.permute.xlu0 %1526
      %1528 = vrot.lane.b32.xlu0 %v531, 12
      %v1529 = vpop.permute.xlu0 %1528
      %1530 = vrot.lane.b32.xlu0 %v532, 12
      %v1531 = vpop.permute.xlu0 %1530
      %1532 = vrot.lane.b32.xlu0 %v533, 12
      %v1533 = vpop.permute.xlu0 %1532
      %1534 = vrot.lane.b32.xlu0 %v534, 12
      %v1535 = vpop.permute.xlu0 %1534
      %1536 = vrot.lane.b32.xlu0 %v535, 12
      %v1537 = vpop.permute.xlu0 %1536
      %1538 = vrot.lane.b32.xlu0 %v536, 12
      %v1539 = vpop.permute.xlu0 %1538
      %1540 = vrot.lane.b32.xlu0 %v537, 12
      %v1541 = vpop.permute.xlu0 %1540
      %1542 = vrot.lane.b32.xlu0 %v538, 12
      %v1543 = vpop.permute.xlu0 %1542
      %1544 = vrot.lane.b32.xlu0 %v539, 12
      %v1545 = vpop.permute.xlu0 %1544
      %1546 = vrot.lane.b32.xlu0 %v540, 12
      %v1547 = vpop.permute.xlu0 %1546
      %1548 = vrot.lane.b32.xlu0 %v541, 12
      %v1549 = vpop.permute.xlu0 %1548
      %1550 = vrot.lane.b32.xlu0 %v542, 12
      %v1551 = vpop.permute.xlu0 %1550
      %1552 = vrot.lane.b32.xlu0 %v543, 12
      %v1553 = vpop.permute.xlu0 %1552
      %1554 = vrot.lane.b32.xlu0 %v544, 12
      %v1555 = vpop.permute.xlu0 %1554
      %1556 = vrot.lane.b32.xlu0 %v545, 12
      %v1557 = vpop.permute.xlu0 %1556
      %1558 = vrot.lane.b32.xlu0 %v546, 12
      %v1559 = vpop.permute.xlu0 %1558
      %1560 = vrot.lane.b32.xlu0 %v547, 12
      %v1561 = vpop.permute.xlu0 %1560
      %1562 = vrot.lane.b32.xlu0 %v548, 12
      %v1563 = vpop.permute.xlu0 %1562
      %1564 = vrot.lane.b32.xlu0 %v549, 12
      %v1565 = vpop.permute.xlu0 %1564
      %1566 = vrot.lane.b32.xlu0 %v550, 12
      %v1567 = vpop.permute.xlu0 %1566
      %1568 = vrot.lane.b32.xlu0 %v551, 12
      %v1569 = vpop.permute.xlu0 %1568
      %1570 = vrot.lane.b32.xlu0 %v552, 12
      %v1571 = vpop.permute.xlu0 %1570
      %1572 = vrot.lane.b32.xlu0 %v553, 12
      %v1573 = vpop.permute.xlu0 %1572
      %1574 = vrot.lane.b32.xlu0 %v554, 12
      %v1575 = vpop.permute.xlu0 %1574
      %1576 = vrot.lane.b32.xlu0 %v555, 12
      %v1577 = vpop.permute.xlu0 %1576
      %1578 = vrot.lane.b32.xlu0 %v556, 12
      %v1579 = vpop.permute.xlu0 %1578
      %1580 = vrot.lane.b32.xlu0 %v557, 12
      %v1581 = vpop.permute.xlu0 %1580
      %1582 = vrot.lane.b32.xlu0 %v558, 12
      %v1583 = vpop.permute.xlu0 %1582
      %1584 = vrot.lane.b32.xlu0 %v559, 12
      %v1585 = vpop.permute.xlu0 %1584
      %1586 = vrot.lane.b32.xlu0 %v560, 12
      %v1587 = vpop.permute.xlu0 %1586
      %1652 = vrot.lane.b32.xlu0 %v561, 16
      %v1653 = vpop.permute.xlu0 %1652
      %1654 = vrot.lane.b32.xlu0 %v562, 16
      %v1655 = vpop.permute.xlu0 %1654
      %1656 = vrot.lane.b32.xlu0 %v563, 16
      %v1657 = vpop.permute.xlu0 %1656
      %1658 = vrot.lane.b32.xlu0 %v564, 16
      %v1659 = vpop.permute.xlu0 %1658
      %1660 = vrot.lane.b32.xlu0 %v565, 16
      %v1661 = vpop.permute.xlu0 %1660
      %1662 = vrot.lane.b32.xlu0 %v566, 16
      %v1663 = vpop.permute.xlu0 %1662
      %1664 = vrot.lane.b32.xlu0 %v567, 16
      %v1665 = vpop.permute.xlu0 %1664
      %1666 = vrot.lane.b32.xlu0 %v568, 16
      %v1667 = vpop.permute.xlu0 %1666
      %1668 = vrot.lane.b32.xlu0 %v569, 16
      %v1669 = vpop.permute.xlu0 %1668
      %1670 = vrot.lane.b32.xlu0 %v570, 16
      %v1671 = vpop.permute.xlu0 %1670
      %1672 = vrot.lane.b32.xlu0 %v571, 16
      %v1673 = vpop.permute.xlu0 %1672
      %1674 = vrot.lane.b32.xlu0 %v572, 16
      %v1675 = vpop.permute.xlu0 %1674
      %1676 = vrot.lane.b32.xlu0 %v573, 16
      %v1677 = vpop.permute.xlu0 %1676
      %1678 = vrot.lane.b32.xlu0 %v574, 16
      %v1679 = vpop.permute.xlu0 %1678
      %1680 = vrot.lane.b32.xlu0 %v575, 16
      %v1681 = vpop.permute.xlu0 %1680
      %1682 = vrot.lane.b32.xlu0 %v576, 16
      %v1683 = vpop.permute.xlu0 %1682
      %1684 = vrot.lane.b32.xlu0 %v577, 16
      %v1685 = vpop.permute.xlu0 %1684
      %1686 = vrot.lane.b32.xlu0 %v578, 16
      %v1687 = vpop.permute.xlu0 %1686
      %1688 = vrot.lane.b32.xlu0 %v579, 16
      %v1689 = vpop.permute.xlu0 %1688
      %1690 = vrot.lane.b32.xlu0 %v580, 16
      %v1691 = vpop.permute.xlu0 %1690
      %1692 = vrot.lane.b32.xlu0 %v581, 16
      %v1693 = vpop.permute.xlu0 %1692
      %1694 = vrot.lane.b32.xlu0 %v582, 16
      %v1695 = vpop.permute.xlu0 %1694
      %1696 = vrot.lane.b32.xlu0 %v583, 16
      %v1697 = vpop.permute.xlu0 %1696
      %1698 = vrot.lane.b32.xlu0 %v584, 16
      %v1699 = vpop.permute.xlu0 %1698
      %1700 = vrot.lane.b32.xlu0 %v585, 16
      %v1701 = vpop.permute.xlu0 %1700
      %1702 = vrot.lane.b32.xlu0 %v586, 16
      %v1703 = vpop.permute.xlu0 %1702
      %1704 = vrot.lane.b32.xlu0 %v587, 16
      %v1705 = vpop.permute.xlu0 %1704
      %1706 = vrot.lane.b32.xlu0 %v588, 16
      %v1707 = vpop.permute.xlu0 %1706
      %1708 = vrot.lane.b32.xlu0 %v589, 16
      %v1709 = vpop.permute.xlu0 %1708
      %1710 = vrot.lane.b32.xlu0 %v590, 16
      %v1711 = vpop.permute.xlu0 %1710
      %1712 = vrot.lane.b32.xlu0 %v591, 16
      %v1713 = vpop.permute.xlu0 %1712
      %1714 = vrot.lane.b32.xlu0 %v592, 16
      %v1715 = vpop.permute.xlu0 %1714
      %1780 = vrot.lane.b32.xlu0 %v594, 20
      %v1781 = vpop.permute.xlu0 %1780
      %1782 = vrot.lane.b32.xlu0 %v595, 20
      %v1783 = vpop.permute.xlu0 %1782
      %1784 = vrot.lane.b32.xlu0 %v596, 20
      %v1785 = vpop.permute.xlu0 %1784
      %1786 = vrot.lane.b32.xlu0 %v597, 20
      %v1787 = vpop.permute.xlu0 %1786
      %1788 = vrot.lane.b32.xlu0 %v598, 20
      %v1789 = vpop.permute.xlu0 %1788
      %1790 = vrot.lane.b32.xlu0 %v599, 20
      %v1791 = vpop.permute.xlu0 %1790
      %1792 = vrot.lane.b32.xlu0 %v600, 20
      %v1793 = vpop.permute.xlu0 %1792
      %1794 = vrot.lane.b32.xlu0 %v601, 20
      %v1795 = vpop.permute.xlu0 %1794
      %1796 = vrot.lane.b32.xlu0 %v602, 20
      %v1797 = vpop.permute.xlu0 %1796
      %1798 = vrot.lane.b32.xlu0 %v603, 20
      %v1799 = vpop.permute.xlu0 %1798
      %1800 = vrot.lane.b32.xlu0 %v604, 20
      %v1801 = vpop.permute.xlu0 %1800
      %1802 = vrot.lane.b32.xlu0 %v605, 20
      %v1803 = vpop.permute.xlu0 %1802
      %1804 = vrot.lane.b32.xlu0 %v606, 20
      %v1805 = vpop.permute.xlu0 %1804
      %1806 = vrot.lane.b32.xlu0 %v607, 20
      %v1807 = vpop.permute.xlu0 %1806
      %1808 = vrot.lane.b32.xlu0 %v608, 20
      %v1809 = vpop.permute.xlu0 %1808
      %1810 = vrot.lane.b32.xlu0 %v609, 20
      %v1811 = vpop.permute.xlu0 %1810
      %1812 = vrot.lane.b32.xlu0 %v610, 20
      %v1813 = vpop.permute.xlu0 %1812
      %1814 = vrot.lane.b32.xlu0 %v611, 20
      %v1815 = vpop.permute.xlu0 %1814
      %1816 = vrot.lane.b32.xlu0 %v612, 20
      %v1817 = vpop.permute.xlu0 %1816
      %1818 = vrot.lane.b32.xlu0 %v613, 20
      %v1819 = vpop.permute.xlu0 %1818
      %1820 = vrot.lane.b32.xlu0 %v614, 20
      %v1821 = vpop.permute.xlu0 %1820
      %1822 = vrot.lane.b32.xlu0 %v615, 20
      %v1823 = vpop.permute.xlu0 %1822
      %1824 = vrot.lane.b32.xlu0 %v616, 20
      %v1825 = vpop.permute.xlu0 %1824
      %1826 = vrot.lane.b32.xlu0 %v617, 20
      %v1827 = vpop.permute.xlu0 %1826
      %1828 = vrot.lane.b32.xlu0 %v618, 20
      %v1829 = vpop.permute.xlu0 %1828
      %1830 = vrot.lane.b32.xlu0 %v619, 20
      %v1831 = vpop.permute.xlu0 %1830
      %1832 = vrot.lane.b32.xlu0 %v620, 20
      %v1833 = vpop.permute.xlu0 %1832
      %1834 = vrot.lane.b32.xlu0 %v621, 20
      %v1835 = vpop.permute.xlu0 %1834
      %1836 = vrot.lane.b32.xlu0 %v622, 20
      %v1837 = vpop.permute.xlu0 %1836
      %1838 = vrot.lane.b32.xlu0 %v623, 20
      %v1839 = vpop.permute.xlu0 %1838
      %1840 = vrot.lane.b32.xlu0 %v624, 20
      %v1841 = vpop.permute.xlu0 %1840
      %1842 = vrot.lane.b32.xlu0 %v625, 20
      %v1843 = vpop.permute.xlu0 %1842
      %1908 = vrot.lane.b32.xlu0 %v626, 24
      %v1909 = vpop.permute.xlu0 %1908
      %1910 = vrot.lane.b32.xlu0 %v627, 24
      %v1911 = vpop.permute.xlu0 %1910
      %1912 = vrot.lane.b32.xlu0 %v628, 24
      %v1913 = vpop.permute.xlu0 %1912
      %1914 = vrot.lane.b32.xlu0 %v629, 24
      %v1915 = vpop.permute.xlu0 %1914
      %1916 = vrot.lane.b32.xlu0 %v630, 24
      %v1917 = vpop.permute.xlu0 %1916
      %1918 = vrot.lane.b32.xlu0 %v631, 24
      %v1919 = vpop.permute.xlu0 %1918
      %1920 = vrot.lane.b32.xlu0 %v632, 24
      %v1921 = vpop.permute.xlu0 %1920
      %1922 = vrot.lane.b32.xlu0 %v633, 24
      %v1923 = vpop.permute.xlu0 %1922
      %1924 = vrot.lane.b32.xlu0 %v634, 24
      %v1925 = vpop.permute.xlu0 %1924
      %1926 = vrot.lane.b32.xlu0 %v635, 24
      %v1927 = vpop.permute.xlu0 %1926
      %1928 = vrot.lane.b32.xlu0 %v636, 24
      %v1929 = vpop.permute.xlu0 %1928
      %1930 = vrot.lane.b32.xlu0 %v637, 24
      %v1931 = vpop.permute.xlu0 %1930
      %1932 = vrot.lane.b32.xlu0 %v638, 24
      %v1933 = vpop.permute.xlu0 %1932
      %1934 = vrot.lane.b32.xlu0 %v639, 24
      %v1935 = vpop.permute.xlu0 %1934
      %1936 = vrot.lane.b32.xlu0 %v640, 24
      %v1937 = vpop.permute.xlu0 %1936
      %1938 = vrot.lane.b32.xlu0 %v641, 24
      %v1939 = vpop.permute.xlu0 %1938
      %1940 = vrot.lane.b32.xlu0 %v642, 24
      %v1941 = vpop.permute.xlu0 %1940
      %1942 = vrot.lane.b32.xlu0 %v643, 24
      %v1943 = vpop.permute.xlu0 %1942
      %1944 = vrot.lane.b32.xlu0 %v644, 24
      %v1945 = vpop.permute.xlu0 %1944
      %1946 = vrot.lane.b32.xlu0 %v645, 24
      %v1947 = vpop.permute.xlu0 %1946
      %1948 = vrot.lane.b32.xlu0 %v646, 24
      %v1949 = vpop.permute.xlu0 %1948
      %1950 = vrot.lane.b32.xlu0 %v647, 24
      %v1951 = vpop.permute.xlu0 %1950
      %1952 = vrot.lane.b32.xlu0 %v648, 24
      %v1953 = vpop.permute.xlu0 %1952
      %1954 = vrot.lane.b32.xlu0 %v649, 24
      %v1955 = vpop.permute.xlu0 %1954
      %1956 = vrot.lane.b32.xlu0 %v650, 24
      %v1957 = vpop.permute.xlu0 %1956
      %1958 = vrot.lane.b32.xlu0 %v651, 24
      %v1959 = vpop.permute.xlu0 %1958
      %1960 = vrot.lane.b32.xlu0 %v652, 24
      %v1961 = vpop.permute.xlu0 %1960
      %1962 = vrot.lane.b32.xlu0 %v653, 24
      %v1963 = vpop.permute.xlu0 %1962
      %1964 = vrot.lane.b32.xlu0 %v654, 24
      %v1965 = vpop.permute.xlu0 %1964
      %1966 = vrot.lane.b32.xlu0 %v655, 24
      %v1967 = vpop.permute.xlu0 %1966
      %1968 = vrot.lane.b32.xlu0 %v656, 24
      %v1969 = vpop.permute.xlu0 %1968
      %1970 = vrot.lane.b32.xlu0 %v657, 24
      %v1971 = vpop.permute.xlu0 %1970
      %2036 = vrot.lane.b32.xlu0 %v658, 28
      %v2037 = vpop.permute.xlu0 %2036
      %2038 = vrot.lane.b32.xlu0 %v659, 28
      %v2039 = vpop.permute.xlu0 %2038
      %2040 = vrot.lane.b32.xlu0 %v660, 28
      %v2041 = vpop.permute.xlu0 %2040
      %2042 = vrot.lane.b32.xlu0 %v661, 28
      %v2043 = vpop.permute.xlu0 %2042
      %2044 = vrot.lane.b32.xlu0 %v662, 28
      %v2045 = vpop.permute.xlu0 %2044
      %2046 = vrot.lane.b32.xlu0 %v663, 28
      %v2047 = vpop.permute.xlu0 %2046
      %2048 = vrot.lane.b32.xlu0 %v664, 28
      %v2049 = vpop.permute.xlu0 %2048
      %2050 = vrot.lane.b32.xlu0 %v665, 28
      %v2051 = vpop.permute.xlu0 %2050
      %2052 = vrot.lane.b32.xlu0 %v666, 28
      %v2053 = vpop.permute.xlu0 %2052
      %2054 = vrot.lane.b32.xlu0 %v667, 28
      %v2055 = vpop.permute.xlu0 %2054
      %2056 = vrot.lane.b32.xlu0 %v668, 28
      %v2057 = vpop.permute.xlu0 %2056
      %2058 = vrot.lane.b32.xlu0 %v669, 28
      %v2059 = vpop.permute.xlu0 %2058
      %2060 = vrot.lane.b32.xlu0 %v670, 28
      %v2061 = vpop.permute.xlu0 %2060
      %2062 = vrot.lane.b32.xlu0 %v671, 28
      %v2063 = vpop.permute.xlu0 %2062
      %2064 = vrot.lane.b32.xlu0 %v672, 28
      %v2065 = vpop.permute.xlu0 %2064
      %2066 = vrot.lane.b32.xlu0 %v673, 28
      %v2067 = vpop.permute.xlu0 %2066
      %2068 = vrot.lane.b32.xlu0 %v674, 28
      %v2069 = vpop.permute.xlu0 %2068
      %2070 = vrot.lane.b32.xlu0 %v675, 28
      %v2071 = vpop.permute.xlu0 %2070
      %2072 = vrot.lane.b32.xlu0 %v676, 28
      %v2073 = vpop.permute.xlu0 %2072
      %2074 = vrot.lane.b32.xlu0 %v677, 28
      %v2075 = vpop.permute.xlu0 %2074
      %2076 = vrot.lane.b32.xlu0 %v678, 28
      %v2077 = vpop.permute.xlu0 %2076
      %2078 = vrot.lane.b32.xlu0 %v679, 28
      %v2079 = vpop.permute.xlu0 %2078
      %2080 = vrot.lane.b32.xlu0 %v680, 28
      %v2081 = vpop.permute.xlu0 %2080
      %2082 = vrot.lane.b32.xlu0 %v681, 28
      %v2083 = vpop.permute.xlu0 %2082
      %2084 = vrot.lane.b32.xlu0 %v682, 28
      %v2085 = vpop.permute.xlu0 %2084
      %2086 = vrot.lane.b32.xlu0 %v683, 28
      %v2087 = vpop.permute.xlu0 %2086
      %2088 = vrot.lane.b32.xlu0 %v684, 28
      %v2089 = vpop.permute.xlu0 %2088
      %2090 = vrot.lane.b32.xlu0 %v685, 28
      %v2091 = vpop.permute.xlu0 %2090
      %2092 = vrot.lane.b32.xlu0 %v686, 28
      %v2093 = vpop.permute.xlu0 %2092
      %2094 = vrot.lane.b32.xlu0 %v687, 28
      %v2095 = vpop.permute.xlu0 %2094
      %2096 = vrot.lane.b32.xlu0 %v688, 28
      %v2097 = vpop.permute.xlu0 %2096
      %2098 = vrot.lane.b32.xlu0 %v689, 28
      %v2099 = vpop.permute.xlu0 %2098
      %2164 = vrot.lane.b32.xlu0 %v690, 32
      %v2165 = vpop.permute.xlu0 %2164
      %2166 = vrot.lane.b32.xlu0 %v691, 32
      %v2167 = vpop.permute.xlu0 %2166
      %2168 = vrot.lane.b32.xlu0 %v692, 32
      %v2169 = vpop.permute.xlu0 %2168
      %2170 = vrot.lane.b32.xlu0 %v693, 32
      %v2171 = vpop.permute.xlu0 %2170
      %2172 = vrot.lane.b32.xlu0 %v694, 32
      %v2173 = vpop.permute.xlu0 %2172
      %2174 = vrot.lane.b32.xlu0 %v695, 32
      %v2175 = vpop.permute.xlu0 %2174
      %2176 = vrot.lane.b32.xlu0 %v696, 32
      %v2177 = vpop.permute.xlu0 %2176
      %2178 = vrot.lane.b32.xlu0 %v697, 32
      %v2179 = vpop.permute.xlu0 %2178
      %2180 = vrot.lane.b32.xlu0 %v698, 32
      %v2181 = vpop.permute.xlu0 %2180
      %2182 = vrot.lane.b32.xlu0 %v699, 32
      %v2183 = vpop.permute.xlu0 %2182
      %2184 = vrot.lane.b32.xlu0 %v700, 32
      %v2185 = vpop.permute.xlu0 %2184
      %2186 = vrot.lane.b32.xlu0 %v701, 32
      %v2187 = vpop.permute.xlu0 %2186
      %2188 = vrot.lane.b32.xlu0 %v702, 32
      %v2189 = vpop.permute.xlu0 %2188
      %2190 = vrot.lane.b32.xlu0 %v703, 32
      %v2191 = vpop.permute.xlu0 %2190
      %2192 = vrot.lane.b32.xlu0 %v704, 32
      %v2193 = vpop.permute.xlu0 %2192
      %2194 = vrot.lane.b32.xlu0 %v705, 32
      %v2195 = vpop.permute.xlu0 %2194
      %2196 = vrot.lane.b32.xlu0 %v706, 32
      %v2197 = vpop.permute.xlu0 %2196
      %2198 = vrot.lane.b32.xlu0 %v707, 32
      %v2199 = vpop.permute.xlu0 %2198
      %2200 = vrot.lane.b32.xlu0 %v708, 32
      %v2201 = vpop.permute.xlu0 %2200
      %2202 = vrot.lane.b32.xlu0 %v709, 32
      %v2203 = vpop.permute.xlu0 %2202
      %2204 = vrot.lane.b32.xlu0 %v710, 32
      %v2205 = vpop.permute.xlu0 %2204
      %2206 = vrot.lane.b32.xlu0 %v711, 32
      %v2207 = vpop.permute.xlu0 %2206
      %2208 = vrot.lane.b32.xlu0 %v712, 32
      %v2209 = vpop.permute.xlu0 %2208
      %2210 = vrot.lane.b32.xlu0 %v713, 32
      %v2211 = vpop.permute.xlu0 %2210
      %2212 = vrot.lane.b32.xlu0 %v714, 32
      %v2213 = vpop.permute.xlu0 %2212
      %2214 = vrot.lane.b32.xlu0 %v715, 32
      %v2215 = vpop.permute.xlu0 %2214
      %2216 = vrot.lane.b32.xlu0 %v716, 32
      %v2217 = vpop.permute.xlu0 %2216
      %2218 = vrot.lane.b32.xlu0 %v717, 32
      %v2219 = vpop.permute.xlu0 %2218
      %2220 = vrot.lane.b32.xlu0 %v718, 32
      %v2221 = vpop.permute.xlu0 %2220
      %2222 = vrot.lane.b32.xlu0 %v719, 32
      %v2223 = vpop.permute.xlu0 %2222
      %2224 = vrot.lane.b32.xlu0 %v720, 32
      %v2225 = vpop.permute.xlu0 %2224
      %2226 = vrot.lane.b32.xlu0 %v721, 32
      %v2227 = vpop.permute.xlu0 %2226
      %2292 = vrot.lane.b32.xlu0 %v722, 36
      %v2293 = vpop.permute.xlu0 %2292
      %2294 = vrot.lane.b32.xlu0 %v723, 36
      %v2295 = vpop.permute.xlu0 %2294
      %2296 = vrot.lane.b32.xlu0 %v724, 36
      %v2297 = vpop.permute.xlu0 %2296
      %2298 = vrot.lane.b32.xlu0 %v725, 36
      %v2299 = vpop.permute.xlu0 %2298
      %2300 = vrot.lane.b32.xlu0 %v726, 36
      %v2301 = vpop.permute.xlu0 %2300
      %2302 = vrot.lane.b32.xlu0 %v727, 36
      %v2303 = vpop.permute.xlu0 %2302
      %2304 = vrot.lane.b32.xlu0 %v728, 36
      %v2305 = vpop.permute.xlu0 %2304
      %2306 = vrot.lane.b32.xlu0 %v729, 36
      %v2307 = vpop.permute.xlu0 %2306
      %2308 = vrot.lane.b32.xlu0 %v730, 36
      %v2309 = vpop.permute.xlu0 %2308
      %2310 = vrot.lane.b32.xlu0 %v731, 36
      %v2311 = vpop.permute.xlu0 %2310
      %2312 = vrot.lane.b32.xlu0 %v732, 36
      %v2313 = vpop.permute.xlu0 %2312
      %2314 = vrot.lane.b32.xlu0 %v733, 36
      %v2315 = vpop.permute.xlu0 %2314
      %2316 = vrot.lane.b32.xlu0 %v734, 36
      %v2317 = vpop.permute.xlu0 %2316
      %2318 = vrot.lane.b32.xlu0 %v735, 36
      %v2319 = vpop.permute.xlu0 %2318
      %2320 = vrot.lane.b32.xlu0 %v736, 36
      %v2321 = vpop.permute.xlu0 %2320
      %2322 = vrot.lane.b32.xlu0 %v737, 36
      %v2323 = vpop.permute.xlu0 %2322
      %2324 = vrot.lane.b32.xlu0 %v738, 36
      %v2325 = vpop.permute.xlu0 %2324
      %2326 = vrot.lane.b32.xlu0 %v739, 36
      %v2327 = vpop.permute.xlu0 %2326
      %2328 = vrot.lane.b32.xlu0 %v740, 36
      %v2329 = vpop.permute.xlu0 %2328
      %2330 = vrot.lane.b32.xlu0 %v741, 36
      %v2331 = vpop.permute.xlu0 %2330
      %2332 = vrot.lane.b32.xlu0 %v742, 36
      %v2333 = vpop.permute.xlu0 %2332
      %2334 = vrot.lane.b32.xlu0 %v743, 36
      %v2335 = vpop.permute.xlu0 %2334
      %2336 = vrot.lane.b32.xlu0 %v744, 36
      %v2337 = vpop.permute.xlu0 %2336
      %2338 = vrot.lane.b32.xlu0 %v745, 36
      %v2339 = vpop.permute.xlu0 %2338
      %2340 = vrot.lane.b32.xlu0 %v746, 36
      %v2341 = vpop.permute.xlu0 %2340
      %2342 = vrot.lane.b32.xlu0 %v747, 36
      %v2343 = vpop.permute.xlu0 %2342
      %2344 = vrot.lane.b32.xlu0 %v748, 36
      %v2345 = vpop.permute.xlu0 %2344
      %2346 = vrot.lane.b32.xlu0 %v749, 36
      %v2347 = vpop.permute.xlu0 %2346
      %2348 = vrot.lane.b32.xlu0 %v750, 36
      %v2349 = vpop.permute.xlu0 %2348
      %2350 = vrot.lane.b32.xlu0 %v751, 36
      %v2351 = vpop.permute.xlu0 %2350
      %2352 = vrot.lane.b32.xlu0 %v752, 36
      %v2353 = vpop.permute.xlu0 %2352
      %2354 = vrot.lane.b32.xlu0 %v753, 36
      %v2355 = vpop.permute.xlu0 %2354
      %2420 = vrot.lane.b32.xlu0 %v754, 40
      %v2421 = vpop.permute.xlu0 %2420
      %2422 = vrot.lane.b32.xlu0 %v755, 40
      %v2423 = vpop.permute.xlu0 %2422
      %2424 = vrot.lane.b32.xlu0 %v756, 40
      %v2425 = vpop.permute.xlu0 %2424
      %2426 = vrot.lane.b32.xlu0 %v757, 40
      %v2427 = vpop.permute.xlu0 %2426
      %2428 = vrot.lane.b32.xlu0 %v758, 40
      %v2429 = vpop.permute.xlu0 %2428
      %2430 = vrot.lane.b32.xlu0 %v759, 40
      %v2431 = vpop.permute.xlu0 %2430
      %2432 = vrot.lane.b32.xlu0 %v760, 40
      %v2433 = vpop.permute.xlu0 %2432
      %2434 = vrot.lane.b32.xlu0 %v761, 40
      %v2435 = vpop.permute.xlu0 %2434
      %2436 = vrot.lane.b32.xlu0 %v762, 40
      %v2437 = vpop.permute.xlu0 %2436
      %2438 = vrot.lane.b32.xlu0 %v763, 40
      %v2439 = vpop.permute.xlu0 %2438
      %2440 = vrot.lane.b32.xlu0 %v764, 40
      %v2441 = vpop.permute.xlu0 %2440
      %2442 = vrot.lane.b32.xlu0 %v765, 40
      %v2443 = vpop.permute.xlu0 %2442
      %2444 = vrot.lane.b32.xlu0 %v766, 40
      %v2445 = vpop.permute.xlu0 %2444
      %2446 = vrot.lane.b32.xlu0 %v767, 40
      %v2447 = vpop.permute.xlu0 %2446
      %2448 = vrot.lane.b32.xlu0 %v768, 40
      %v2449 = vpop.permute.xlu0 %2448
      %2450 = vrot.lane.b32.xlu0 %v769, 40
      %v2451 = vpop.permute.xlu0 %2450
      %2452 = vrot.lane.b32.xlu0 %v770, 40
      %v2453 = vpop.permute.xlu0 %2452
      %2454 = vrot.lane.b32.xlu0 %v771, 40
      %v2455 = vpop.permute.xlu0 %2454
      %2456 = vrot.lane.b32.xlu0 %v772, 40
      %v2457 = vpop.permute.xlu0 %2456
      %2458 = vrot.lane.b32.xlu0 %v773, 40
      %v2459 = vpop.permute.xlu0 %2458
      %2460 = vrot.lane.b32.xlu0 %v774, 40
      %v2461 = vpop.permute.xlu0 %2460
      %2462 = vrot.lane.b32.xlu0 %v775, 40
      %v2463 = vpop.permute.xlu0 %2462
      %2464 = vrot.lane.b32.xlu0 %v776, 40
      %v2465 = vpop.permute.xlu0 %2464
      %2466 = vrot.lane.b32.xlu0 %v777, 40
      %v2467 = vpop.permute.xlu0 %2466
      %2468 = vrot.lane.b32.xlu0 %v778, 40
      %v2469 = vpop.permute.xlu0 %2468
      %2470 = vrot.lane.b32.xlu0 %v779, 40
      %v2471 = vpop.permute.xlu0 %2470
      %2472 = vrot.lane.b32.xlu0 %v780, 40
      %v2473 = vpop.permute.xlu0 %2472
      %2474 = vrot.lane.b32.xlu0 %v781, 40
      %v2475 = vpop.permute.xlu0 %2474
      %2476 = vrot.lane.b32.xlu0 %v782, 40
      %v2477 = vpop.permute.xlu0 %2476
      %2478 = vrot.lane.b32.xlu0 %v783, 40
      %v2479 = vpop.permute.xlu0 %2478
      %2480 = vrot.lane.b32.xlu0 %v784, 40
      %v2481 = vpop.permute.xlu0 %2480
      %2482 = vrot.lane.b32.xlu0 %v785, 40
      %v2483 = vpop.permute.xlu0 %2482
      %2548 = vrot.lane.b32.xlu0 %v786, 44
      %v2549 = vpop.permute.xlu0 %2548
      %2550 = vrot.lane.b32.xlu0 %v787, 44
      %v2551 = vpop.permute.xlu0 %2550
      %2552 = vrot.lane.b32.xlu0 %v788, 44
      %v2553 = vpop.permute.xlu0 %2552
      %2554 = vrot.lane.b32.xlu0 %v789, 44
      %v2555 = vpop.permute.xlu0 %2554
      %2556 = vrot.lane.b32.xlu0 %v790, 44
      %v2557 = vpop.permute.xlu0 %2556
      %2558 = vrot.lane.b32.xlu0 %v791, 44
      %v2559 = vpop.permute.xlu0 %2558
      %2560 = vrot.lane.b32.xlu0 %v792, 44
      %v2561 = vpop.permute.xlu0 %2560
      %2562 = vrot.lane.b32.xlu0 %v793, 44
      %v2563 = vpop.permute.xlu0 %2562
      %2564 = vrot.lane.b32.xlu0 %v794, 44
      %v2565 = vpop.permute.xlu0 %2564
      %2566 = vrot.lane.b32.xlu0 %v795, 44
      %v2567 = vpop.permute.xlu0 %2566
      %2568 = vrot.lane.b32.xlu0 %v796, 44
      %v2569 = vpop.permute.xlu0 %2568
      %2570 = vrot.lane.b32.xlu0 %v797, 44
      %v2571 = vpop.permute.xlu0 %2570
      %2572 = vrot.lane.b32.xlu0 %v798, 44
      %v2573 = vpop.permute.xlu0 %2572
      %2574 = vrot.lane.b32.xlu0 %v799, 44
      %v2575 = vpop.permute.xlu0 %2574
      %2576 = vrot.lane.b32.xlu0 %v800, 44
      %v2577 = vpop.permute.xlu0 %2576
      %2578 = vrot.lane.b32.xlu0 %v801, 44
      %v2579 = vpop.permute.xlu0 %2578
      %2580 = vrot.lane.b32.xlu0 %v802, 44
      %v2581 = vpop.permute.xlu0 %2580
      %2582 = vrot.lane.b32.xlu0 %v803, 44
      %v2583 = vpop.permute.xlu0 %2582
      %2584 = vrot.lane.b32.xlu0 %v804, 44
      %v2585 = vpop.permute.xlu0 %2584
      %2586 = vrot.lane.b32.xlu0 %v805, 44
      %v2587 = vpop.permute.xlu0 %2586
      %2588 = vrot.lane.b32.xlu0 %v806, 44
      %v2589 = vpop.permute.xlu0 %2588
      %2590 = vrot.lane.b32.xlu0 %v807, 44
      %v2591 = vpop.permute.xlu0 %2590
      %2592 = vrot.lane.b32.xlu0 %v808, 44
      %v2593 = vpop.permute.xlu0 %2592
      %2594 = vrot.lane.b32.xlu0 %v809, 44
      %v2595 = vpop.permute.xlu0 %2594
      %2596 = vrot.lane.b32.xlu0 %v810, 44
      %v2597 = vpop.permute.xlu0 %2596
      %2598 = vrot.lane.b32.xlu0 %v811, 44
      %v2599 = vpop.permute.xlu0 %2598
      %2600 = vrot.lane.b32.xlu0 %v812, 44
      %v2601 = vpop.permute.xlu0 %2600
      %2602 = vrot.lane.b32.xlu0 %v813, 44
      %v2603 = vpop.permute.xlu0 %2602
      %2604 = vrot.lane.b32.xlu0 %v814, 44
      %v2605 = vpop.permute.xlu0 %2604
      %2606 = vrot.lane.b32.xlu0 %v815, 44
      %v2607 = vpop.permute.xlu0 %2606
      %2608 = vrot.lane.b32.xlu0 %v816, 44
      %v2609 = vpop.permute.xlu0 %2608
      %2610 = vrot.lane.b32.xlu0 %v817, 44
      %v2611 = vpop.permute.xlu0 %2610
      %2676 = vrot.lane.b32.xlu0 %v818, 48
      %v2677 = vpop.permute.xlu0 %2676
      %2678 = vrot.lane.b32.xlu0 %v819, 48
      %v2679 = vpop.permute.xlu0 %2678
      %2680 = vrot.lane.b32.xlu0 %v820, 48
      %v2681 = vpop.permute.xlu0 %2680
      %2682 = vrot.lane.b32.xlu0 %v821, 48
      %v2683 = vpop.permute.xlu0 %2682
      %2684 = vrot.lane.b32.xlu0 %v822, 48
      %v2685 = vpop.permute.xlu0 %2684
      %2686 = vrot.lane.b32.xlu0 %v823, 48
      %v2687 = vpop.permute.xlu0 %2686
      %2688 = vrot.lane.b32.xlu0 %v824, 48
      %v2689 = vpop.permute.xlu0 %2688
      %2690 = vrot.lane.b32.xlu0 %v825, 48
      %v2691 = vpop.permute.xlu0 %2690
      %2692 = vrot.lane.b32.xlu0 %v826, 48
      %v2693 = vpop.permute.xlu0 %2692
      %2694 = vrot.lane.b32.xlu0 %v827, 48
      %v2695 = vpop.permute.xlu0 %2694
      %2696 = vrot.lane.b32.xlu0 %v828, 48
      %v2697 = vpop.permute.xlu0 %2696
      %2698 = vrot.lane.b32.xlu0 %v829, 48
      %v2699 = vpop.permute.xlu0 %2698
      %2700 = vrot.lane.b32.xlu0 %v830, 48
      %v2701 = vpop.permute.xlu0 %2700
      %2702 = vrot.lane.b32.xlu0 %v831, 48
      %v2703 = vpop.permute.xlu0 %2702
      %2704 = vrot.lane.b32.xlu0 %v832, 48
      %v2705 = vpop.permute.xlu0 %2704
      %2706 = vrot.lane.b32.xlu0 %v833, 48
      %v2707 = vpop.permute.xlu0 %2706
      %2708 = vrot.lane.b32.xlu0 %v834, 48
      %v2709 = vpop.permute.xlu0 %2708
      %2710 = vrot.lane.b32.xlu0 %v835, 48
      %v2711 = vpop.permute.xlu0 %2710
      %2712 = vrot.lane.b32.xlu0 %v836, 48
      %v2713 = vpop.permute.xlu0 %2712
      %2714 = vrot.lane.b32.xlu0 %v837, 48
      %v2715 = vpop.permute.xlu0 %2714
      %2716 = vrot.lane.b32.xlu0 %v838, 48
      %v2717 = vpop.permute.xlu0 %2716
      %2718 = vrot.lane.b32.xlu0 %v839, 48
      %v2719 = vpop.permute.xlu0 %2718
      %2720 = vrot.lane.b32.xlu0 %v840, 48
      %v2721 = vpop.permute.xlu0 %2720
      %2722 = vrot.lane.b32.xlu0 %v841, 48
      %v2723 = vpop.permute.xlu0 %2722
      %2724 = vrot.lane.b32.xlu0 %v842, 48
      %v2725 = vpop.permute.xlu0 %2724
      %2726 = vrot.lane.b32.xlu0 %v843, 48
      %v2727 = vpop.permute.xlu0 %2726
      %2728 = vrot.lane.b32.xlu0 %v844, 48
      %v2729 = vpop.permute.xlu0 %2728
      %2730 = vrot.lane.b32.xlu0 %v845, 48
      %v2731 = vpop.permute.xlu0 %2730
      %2732 = vrot.lane.b32.xlu0 %v846, 48
      %v2733 = vpop.permute.xlu0 %2732
      %2734 = vrot.lane.b32.xlu0 %v847, 48
      %v2735 = vpop.permute.xlu0 %2734
      %2736 = vrot.lane.b32.xlu0 %v848, 48
      %v2737 = vpop.permute.xlu0 %2736
      %2738 = vrot.lane.b32.xlu0 %v849, 48
      %v2739 = vpop.permute.xlu0 %2738
      %2804 = vrot.lane.b32.xlu0 %v850, 52
      %v2805 = vpop.permute.xlu0 %2804
      %2806 = vrot.lane.b32.xlu0 %v851, 52
      %v2807 = vpop.permute.xlu0 %2806
      %2808 = vrot.lane.b32.xlu0 %v852, 52
      %v2809 = vpop.permute.xlu0 %2808
      %2810 = vrot.lane.b32.xlu0 %v853, 52
      %v2811 = vpop.permute.xlu0 %2810
      %2812 = vrot.lane.b32.xlu0 %v854, 52
      %v2813 = vpop.permute.xlu0 %2812
      %2814 = vrot.lane.b32.xlu0 %v855, 52
      %v2815 = vpop.permute.xlu0 %2814
      %2816 = vrot.lane.b32.xlu0 %v856, 52
      %v2817 = vpop.permute.xlu0 %2816
      %2818 = vrot.lane.b32.xlu0 %v857, 52
      %v2819 = vpop.permute.xlu0 %2818
      %2820 = vrot.lane.b32.xlu0 %v858, 52
      %v2821 = vpop.permute.xlu0 %2820
      %2822 = vrot.lane.b32.xlu0 %v859, 52
      %v2823 = vpop.permute.xlu0 %2822
      %2824 = vrot.lane.b32.xlu0 %v860, 52
      %v2825 = vpop.permute.xlu0 %2824
      %2826 = vrot.lane.b32.xlu0 %v861, 52
      %v2827 = vpop.permute.xlu0 %2826
      %2828 = vrot.lane.b32.xlu0 %v862, 52
      %v2829 = vpop.permute.xlu0 %2828
      %2830 = vrot.lane.b32.xlu0 %v863, 52
      %v2831 = vpop.permute.xlu0 %2830
      %2832 = vrot.lane.b32.xlu0 %v864, 52
      %v2833 = vpop.permute.xlu0 %2832
      %2834 = vrot.lane.b32.xlu0 %v865, 52
      %v2835 = vpop.permute.xlu0 %2834
      %2836 = vrot.lane.b32.xlu0 %v866, 52
      %v2837 = vpop.permute.xlu0 %2836
      %2838 = vrot.lane.b32.xlu0 %v867, 52
      %v2839 = vpop.permute.xlu0 %2838
      %2840 = vrot.lane.b32.xlu0 %v868, 52
      %v2841 = vpop.permute.xlu0 %2840
      %2842 = vrot.lane.b32.xlu0 %v869, 52
      %v2843 = vpop.permute.xlu0 %2842
      %2844 = vrot.lane.b32.xlu0 %v870, 52
      %v2845 = vpop.permute.xlu0 %2844
      %2846 = vrot.lane.b32.xlu0 %v871, 52
      %v2847 = vpop.permute.xlu0 %2846
      %2848 = vrot.lane.b32.xlu0 %v872, 52
      %v2849 = vpop.permute.xlu0 %2848
      %2850 = vrot.lane.b32.xlu0 %v873, 52
      %v2851 = vpop.permute.xlu0 %2850
      %2852 = vrot.lane.b32.xlu0 %v874, 52
      %v2853 = vpop.permute.xlu0 %2852
      %2854 = vrot.lane.b32.xlu0 %v875, 52
      %v2855 = vpop.permute.xlu0 %2854
      %2856 = vrot.lane.b32.xlu0 %v876, 52
      %v2857 = vpop.permute.xlu0 %2856
      %2858 = vrot.lane.b32.xlu0 %v877, 52
      %v2859 = vpop.permute.xlu0 %2858
      %2860 = vrot.lane.b32.xlu0 %v878, 52
      %v2861 = vpop.permute.xlu0 %2860
      %2862 = vrot.lane.b32.xlu0 %v879, 52
      %v2863 = vpop.permute.xlu0 %2862
      %2864 = vrot.lane.b32.xlu0 %v880, 52
      %v2865 = vpop.permute.xlu0 %2864
      %2866 = vrot.lane.b32.xlu0 %v881, 52
      %v2867 = vpop.permute.xlu0 %2866
      %2932 = vrot.lane.b32.xlu0 %v882, 56
      %v2933 = vpop.permute.xlu0 %2932
      %2934 = vrot.lane.b32.xlu0 %v883, 56
      %v2935 = vpop.permute.xlu0 %2934
      %2936 = vrot.lane.b32.xlu0 %v884, 56
      %v2937 = vpop.permute.xlu0 %2936
      %2938 = vrot.lane.b32.xlu0 %v885, 56
      %v2939 = vpop.permute.xlu0 %2938
      %2940 = vrot.lane.b32.xlu0 %v886, 56
      %v2941 = vpop.permute.xlu0 %2940
      %2942 = vrot.lane.b32.xlu0 %v887, 56
      %v2943 = vpop.permute.xlu0 %2942
      %2944 = vrot.lane.b32.xlu0 %v888, 56
      %v2945 = vpop.permute.xlu0 %2944
      %2946 = vrot.lane.b32.xlu0 %v889, 56
      %v2947 = vpop.permute.xlu0 %2946
      %2948 = vrot.lane.b32.xlu0 %v890, 56
      %v2949 = vpop.permute.xlu0 %2948
      %2950 = vrot.lane.b32.xlu0 %v891, 56
      %v2951 = vpop.permute.xlu0 %2950
      %2952 = vrot.lane.b32.xlu0 %v892, 56
      %v2953 = vpop.permute.xlu0 %2952
      %2954 = vrot.lane.b32.xlu0 %v893, 56
      %v2955 = vpop.permute.xlu0 %2954
      %2956 = vrot.lane.b32.xlu0 %v894, 56
      %v2957 = vpop.permute.xlu0 %2956
      %2958 = vrot.lane.b32.xlu0 %v895, 56
      %v2959 = vpop.permute.xlu0 %2958
      %2960 = vrot.lane.b32.xlu0 %v896, 56
      %v2961 = vpop.permute.xlu0 %2960
      %2962 = vrot.lane.b32.xlu0 %v897, 56
      %v2963 = vpop.permute.xlu0 %2962
      %2964 = vrot.lane.b32.xlu0 %v898, 56
      %v2965 = vpop.permute.xlu0 %2964
      %2966 = vrot.lane.b32.xlu0 %v899, 56
      %v2967 = vpop.permute.xlu0 %2966
      %2968 = vrot.lane.b32.xlu0 %v900, 56
      %v2969 = vpop.permute.xlu0 %2968
      %2970 = vrot.lane.b32.xlu0 %v901, 56
      %v2971 = vpop.permute.xlu0 %2970
      %2972 = vrot.lane.b32.xlu0 %v902, 56
      %v2973 = vpop.permute.xlu0 %2972
      %2974 = vrot.lane.b32.xlu0 %v903, 56
      %v2975 = vpop.permute.xlu0 %2974
      %2976 = vrot.lane.b32.xlu0 %v904, 56
      %v2977 = vpop.permute.xlu0 %2976
      %2978 = vrot.lane.b32.xlu0 %v905, 56
      %v2979 = vpop.permute.xlu0 %2978
      %2980 = vrot.lane.b32.xlu0 %v906, 56
      %v2981 = vpop.permute.xlu0 %2980
      %2982 = vrot.lane.b32.xlu0 %v907, 56
      %v2983 = vpop.permute.xlu0 %2982
      %2984 = vrot.lane.b32.xlu0 %v908, 56
      %v2985 = vpop.permute.xlu0 %2984
      %2986 = vrot.lane.b32.xlu0 %v909, 56
      %v2987 = vpop.permute.xlu0 %2986
      %2988 = vrot.lane.b32.xlu0 %v910, 56
      %v2989 = vpop.permute.xlu0 %2988
      %2990 = vrot.lane.b32.xlu0 %v911, 56
      %v2991 = vpop.permute.xlu0 %2990
      %2992 = vrot.lane.b32.xlu0 %v912, 56
      %v2993 = vpop.permute.xlu0 %2992
      %2994 = vrot.lane.b32.xlu0 %v913, 56
      %v2995 = vpop.permute.xlu0 %2994
      %3060 = vrot.lane.b32.xlu0 %v915, 60
      %v3061 = vpop.permute.xlu0 %3060
      %3062 = vrot.lane.b32.xlu0 %v916, 60
      %v3063 = vpop.permute.xlu0 %3062
      %3064 = vrot.lane.b32.xlu0 %v917, 60
      %v3065 = vpop.permute.xlu0 %3064
      %3066 = vrot.lane.b32.xlu0 %v918, 60
      %v3067 = vpop.permute.xlu0 %3066
      %3068 = vrot.lane.b32.xlu0 %v919, 60
      %v3069 = vpop.permute.xlu0 %3068
      %3070 = vrot.lane.b32.xlu0 %v920, 60
      %v3071 = vpop.permute.xlu0 %3070
      %3072 = vrot.lane.b32.xlu0 %v921, 60
      %v3073 = vpop.permute.xlu0 %3072
      %3074 = vrot.lane.b32.xlu0 %v922, 60
      %v3075 = vpop.permute.xlu0 %3074
      %3076 = vrot.lane.b32.xlu0 %v923, 60
      %v3077 = vpop.permute.xlu0 %3076
      %3078 = vrot.lane.b32.xlu0 %v924, 60
      %v3079 = vpop.permute.xlu0 %3078
      %3080 = vrot.lane.b32.xlu0 %v925, 60
      %v3081 = vpop.permute.xlu0 %3080
      %3082 = vrot.lane.b32.xlu0 %v926, 60
      %v3083 = vpop.permute.xlu0 %3082
      %3084 = vrot.lane.b32.xlu0 %v927, 60
      %v3085 = vpop.permute.xlu0 %3084
      %3086 = vrot.lane.b32.xlu0 %v928, 60
      %v3087 = vpop.permute.xlu0 %3086
      %3088 = vrot.lane.b32.xlu0 %v929, 60
      %v3089 = vpop.permute.xlu0 %3088
      %3090 = vrot.lane.b32.xlu0 %v930, 60
      %v3091 = vpop.permute.xlu0 %3090
      %3092 = vrot.lane.b32.xlu0 %v931, 60
      %v3093 = vpop.permute.xlu0 %3092
      %3094 = vrot.lane.b32.xlu0 %v932, 60
      %v3095 = vpop.permute.xlu0 %3094
      %3096 = vrot.lane.b32.xlu0 %v933, 60
      %v3097 = vpop.permute.xlu0 %3096
      %3098 = vrot.lane.b32.xlu0 %v934, 60
      %v3099 = vpop.permute.xlu0 %3098
      %3100 = vrot.lane.b32.xlu0 %v935, 60
      %v3101 = vpop.permute.xlu0 %3100
      %3102 = vrot.lane.b32.xlu0 %v936, 60
      %v3103 = vpop.permute.xlu0 %3102
      %3104 = vrot.lane.b32.xlu0 %v937, 60
      %v3105 = vpop.permute.xlu0 %3104
      %3106 = vrot.lane.b32.xlu0 %v938, 60
      %v3107 = vpop.permute.xlu0 %3106
      %3108 = vrot.lane.b32.xlu0 %v939, 60
      %v3109 = vpop.permute.xlu0 %3108
      %3110 = vrot.lane.b32.xlu0 %v940, 60
      %v3111 = vpop.permute.xlu0 %3110
      %3112 = vrot.lane.b32.xlu0 %v941, 60
      %v3113 = vpop.permute.xlu0 %3112
      %3114 = vrot.lane.b32.xlu0 %v942, 60
      %v3115 = vpop.permute.xlu0 %3114
      %3116 = vrot.lane.b32.xlu0 %v943, 60
      %v3117 = vpop.permute.xlu0 %3116
      %3118 = vrot.lane.b32.xlu0 %v944, 60
      %v3119 = vpop.permute.xlu0 %3118
      %3120 = vrot.lane.b32.xlu0 %v945, 60
      %v3121 = vpop.permute.xlu0 %3120
      %3122 = vrot.lane.b32.xlu0 %v946, 60
      %v3123 = vpop.permute.xlu0 %3122
      %v3156 = vsel %vm306, %v433, %v1269
      %v3157 = vsel %vm306, %v434, %v1271
      %v3158 = vsel %vm306, %v435, %v1273
      %v3159 = vsel %vm306, %v436, %v1275
      %v3160 = vsel %vm306, %v437, %v1277
      %v3161 = vsel %vm306, %v438, %v1279
      %v3162 = vsel %vm306, %v439, %v1281
      %v3163 = vsel %vm306, %v440, %v1283
      %v3164 = vsel %vm306, %v441, %v1285
      %v3165 = vsel %vm306, %v442, %v1287
      %v3166 = vsel %vm306, %v443, %v1289
      %v3167 = vsel %vm306, %v444, %v1291
      %v3168 = vsel %vm306, %v445, %v1293
      %v3169 = vsel %vm306, %v446, %v1295
      %v3170 = vsel %vm306, %v447, %v1297
      %v3171 = vsel %vm306, %v448, %v1299
      %v3172 = vsel %vm306, %v449, %v1301
      %v3173 = vsel %vm306, %v450, %v1303
      %v3174 = vsel %vm306, %v451, %v1305
      %v3175 = vsel %vm306, %v452, %v1307
      %v3176 = vsel %vm306, %v453, %v1309
      %v3177 = vsel %vm306, %v454, %v1311
      %v3178 = vsel %vm306, %v455, %v1313
      %v3179 = vsel %vm306, %v456, %v1315
      %v3180 = vsel %vm306, %v457, %v1317
      %v3181 = vsel %vm306, %v458, %v1319
      %v3182 = vsel %vm306, %v459, %v1321
      %v3183 = vsel %vm306, %v460, %v1323
      %v3184 = vsel %vm306, %v461, %v1325
      %v3185 = vsel %vm306, %v462, %v1327
      %v3186 = vsel %vm306, %v463, %v1329
      %v3187 = vsel %vm306, %v464, %v1331
      %vm3188 = vcmask 64512
      %v3189 = vsel %vm3188, %v3156, %v1397
      %v3190 = vsel %vm3188, %v3157, %v1399
      %v3191 = vsel %vm3188, %v3158, %v1401
      %v3192 = vsel %vm3188, %v3159, %v1403
      %v3193 = vsel %vm3188, %v3160, %v1405
      %v3194 = vsel %vm3188, %v3161, %v1407
      %v3195 = vsel %vm3188, %v3162, %v1409
      %v3196 = vsel %vm3188, %v3163, %v1411
      %v3197 = vsel %vm3188, %v3164, %v1413
      %v3198 = vsel %vm3188, %v3165, %v1415
      %v3199 = vsel %vm3188, %v3166, %v1417
      %v3200 = vsel %vm3188, %v3167, %v1419
      %v3201 = vsel %vm3188, %v3168, %v1421
      %v3202 = vsel %vm3188, %v3169, %v1423
      %v3203 = vsel %vm3188, %v3170, %v1425
      %v3204 = vsel %vm3188, %v3171, %v1427
      %v3205 = vsel %vm3188, %v3172, %v1429
      %v3206 = vsel %vm3188, %v3173, %v1431
      %v3207 = vsel %vm3188, %v3174, %v1433
      %v3208 = vsel %vm3188, %v3175, %v1435
      %v3209 = vsel %vm3188, %v3176, %v1437
      %v3210 = vsel %vm3188, %v3177, %v1439
      %v3211 = vsel %vm3188, %v3178, %v1441
      %v3212 = vsel %vm3188, %v3179, %v1443
      %v3213 = vsel %vm3188, %v3180, %v1445
      %v3214 = vsel %vm3188, %v3181, %v1447
      %v3215 = vsel %vm3188, %v3182, %v1449
      %v3216 = vsel %vm3188, %v3183, %v1451
      %v3217 = vsel %vm3188, %v3184, %v1453
      %v3218 = vsel %vm3188, %v3185, %v1455
      %v3219 = vsel %vm3188, %v3186, %v1457
      %v3220 = vsel %vm3188, %v3187, %v1459
      %vm3221 = vcmask 97280
      %v3222 = vsel %vm3221, %v3189, %v1525
      %v3223 = vsel %vm3221, %v3190, %v1527
      %v3224 = vsel %vm3221, %v3191, %v1529
      %v3225 = vsel %vm3221, %v3192, %v1531
      %v3226 = vsel %vm3221, %v3193, %v1533
      %v3227 = vsel %vm3221, %v3194, %v1535
      %v3228 = vsel %vm3221, %v3195, %v1537
      %v3229 = vsel %vm3221, %v3196, %v1539
      %v3230 = vsel %vm3221, %v3197, %v1541
      %v3231 = vsel %vm3221, %v3198, %v1543
      %v3232 = vsel %vm3221, %v3199, %v1545
      %v3233 = vsel %vm3221, %v3200, %v1547
      %v3234 = vsel %vm3221, %v3201, %v1549
      %v3235 = vsel %vm3221, %v3202, %v1551
      %v3236 = vsel %vm3221, %v3203, %v1553
      %v3237 = vsel %vm3221, %v3204, %v1555
      %v3238 = vsel %vm3221, %v3205, %v1557
      %v3239 = vsel %vm3221, %v3206, %v1559
      %v3240 = vsel %vm3221, %v3207, %v1561
      %v3241 = vsel %vm3221, %v3208, %v1563
      %v3242 = vsel %vm3221, %v3209, %v1565
      %v3243 = vsel %vm3221, %v3210, %v1567
      %v3244 = vsel %vm3221, %v3211, %v1569
      %v3245 = vsel %vm3221, %v3212, %v1571
      %v3246 = vsel %vm3221, %v3213, %v1573
      %v3247 = vsel %vm3221, %v3214, %v1575
      %v3248 = vsel %vm3221, %v3215, %v1577
      %v3249 = vsel %vm3221, %v3216, %v1579
      %v3250 = vsel %vm3221, %v3217, %v1581
      %v3251 = vsel %vm3221, %v3218, %v1583
      %v3252 = vsel %vm3221, %v3219, %v1585
      %v3253 = vsel %vm3221, %v3220, %v1587
      %vm3254 = vcmask 130048
      %v3255 = vsel %vm3254, %v3222, %v1653
      %v3256 = vsel %vm3254, %v3223, %v1655
      %v3257 = vsel %vm3254, %v3224, %v1657
      %v3258 = vsel %vm3254, %v3225, %v1659
      %v3259 = vsel %vm3254, %v3226, %v1661
      %v3260 = vsel %vm3254, %v3227, %v1663
      %v3261 = vsel %vm3254, %v3228, %v1665
      %v3262 = vsel %vm3254, %v3229, %v1667
      %v3263 = vsel %vm3254, %v3230, %v1669
      %v3264 = vsel %vm3254, %v3231, %v1671
      %v3265 = vsel %vm3254, %v3232, %v1673
      %v3266 = vsel %vm3254, %v3233, %v1675
      %v3267 = vsel %vm3254, %v3234, %v1677
      %v3268 = vsel %vm3254, %v3235, %v1679
      %v3269 = vsel %vm3254, %v3236, %v1681
      %v3270 = vsel %vm3254, %v3237, %v1683
      %v3271 = vsel %vm3254, %v3238, %v1685
      %v3272 = vsel %vm3254, %v3239, %v1687
      %v3273 = vsel %vm3254, %v3240, %v1689
      %v3274 = vsel %vm3254, %v3241, %v1691
      %v3275 = vsel %vm3254, %v3242, %v1693
      %v3276 = vsel %vm3254, %v3243, %v1695
      %v3277 = vsel %vm3254, %v3244, %v1697
      %v3278 = vsel %vm3254, %v3245, %v1699
      %v3279 = vsel %vm3254, %v3246, %v1701
      %v3280 = vsel %vm3254, %v3247, %v1703
      %v3281 = vsel %vm3254, %v3248, %v1705
      %v3282 = vsel %vm3254, %v3249, %v1707
      %v3283 = vsel %vm3254, %v3250, %v1709
      %v3284 = vsel %vm3254, %v3251, %v1711
      %v3285 = vsel %vm3254, %v3252, %v1713
      %v3286 = vsel %vm3254, %v3253, %v1715
      %vm3287 = vcmask 162816
      %v3288 = vsel %vm3287, %v3255, %v1781
      %v3289 = vsel %vm3287, %v3256, %v1783
      %v3290 = vsel %vm3287, %v3257, %v1785
      %v3291 = vsel %vm3287, %v3258, %v1787
      %v3292 = vsel %vm3287, %v3259, %v1789
      %v3293 = vsel %vm3287, %v3260, %v1791
      %v3294 = vsel %vm3287, %v3261, %v1793
      %v3295 = vsel %vm3287, %v3262, %v1795
      %v3296 = vsel %vm3287, %v3263, %v1797
      %v3297 = vsel %vm3287, %v3264, %v1799
      %v3298 = vsel %vm3287, %v3265, %v1801
      %v3299 = vsel %vm3287, %v3266, %v1803
      %v3300 = vsel %vm3287, %v3267, %v1805
      %v3301 = vsel %vm3287, %v3268, %v1807
      %v3302 = vsel %vm3287, %v3269, %v1809
      %v3303 = vsel %vm3287, %v3270, %v1811
      %v3304 = vsel %vm3287, %v3271, %v1813
      %v3305 = vsel %vm3287, %v3272, %v1815
      %v3306 = vsel %vm3287, %v3273, %v1817
      %v3307 = vsel %vm3287, %v3274, %v1819
      %v3308 = vsel %vm3287, %v3275, %v1821
      %v3309 = vsel %vm3287, %v3276, %v1823
      %v3310 = vsel %vm3287, %v3277, %v1825
      %v3311 = vsel %vm3287, %v3278, %v1827
      %v3312 = vsel %vm3287, %v3279, %v1829
      %v3313 = vsel %vm3287, %v3280, %v1831
      %v3314 = vsel %vm3287, %v3281, %v1833
      %v3315 = vsel %vm3287, %v3282, %v1835
      %v3316 = vsel %vm3287, %v3283, %v1837
      %v3317 = vsel %vm3287, %v3284, %v1839
      %v3318 = vsel %vm3287, %v3285, %v1841
      %v3319 = vsel %vm3287, %v3286, %v1843
      %vm3320 = vcmask 195584
      %v3321 = vsel %vm3320, %v3288, %v1909
      %v3322 = vsel %vm3320, %v3289, %v1911
      %v3323 = vsel %vm3320, %v3290, %v1913
      %v3324 = vsel %vm3320, %v3291, %v1915
      %v3325 = vsel %vm3320, %v3292, %v1917
      %v3326 = vsel %vm3320, %v3293, %v1919
      %v3327 = vsel %vm3320, %v3294, %v1921
      %v3328 = vsel %vm3320, %v3295, %v1923
      %v3329 = vsel %vm3320, %v3296, %v1925
      %v3330 = vsel %vm3320, %v3297, %v1927
      %v3331 = vsel %vm3320, %v3298, %v1929
      %v3332 = vsel %vm3320, %v3299, %v1931
      %v3333 = vsel %vm3320, %v3300, %v1933
      %v3334 = vsel %vm3320, %v3301, %v1935
      %v3335 = vsel %vm3320, %v3302, %v1937
      %v3336 = vsel %vm3320, %v3303, %v1939
      %v3337 = vsel %vm3320, %v3304, %v1941
      %v3338 = vsel %vm3320, %v3305, %v1943
      %v3339 = vsel %vm3320, %v3306, %v1945
      %v3340 = vsel %vm3320, %v3307, %v1947
      %v3341 = vsel %vm3320, %v3308, %v1949
      %v3342 = vsel %vm3320, %v3309, %v1951
      %v3343 = vsel %vm3320, %v3310, %v1953
      %v3344 = vsel %vm3320, %v3311, %v1955
      %v3345 = vsel %vm3320, %v3312, %v1957
      %v3346 = vsel %vm3320, %v3313, %v1959
      %v3347 = vsel %vm3320, %v3314, %v1961
      %v3348 = vsel %vm3320, %v3315, %v1963
      %v3349 = vsel %vm3320, %v3316, %v1965
      %v3350 = vsel %vm3320, %v3317, %v1967
      %v3351 = vsel %vm3320, %v3318, %v1969
      %v3352 = vsel %vm3320, %v3319, %v1971
      %vm3353 = vcmask 228352
      %v3354 = vsel %vm3353, %v3321, %v2037
      %v3355 = vsel %vm3353, %v3322, %v2039
      %v3356 = vsel %vm3353, %v3323, %v2041
      %v3357 = vsel %vm3353, %v3324, %v2043
      %v3358 = vsel %vm3353, %v3325, %v2045
      %v3359 = vsel %vm3353, %v3326, %v2047
      %v3360 = vsel %vm3353, %v3327, %v2049
      %v3361 = vsel %vm3353, %v3328, %v2051
      %v3362 = vsel %vm3353, %v3329, %v2053
      %v3363 = vsel %vm3353, %v3330, %v2055
      %v3364 = vsel %vm3353, %v3331, %v2057
      %v3365 = vsel %vm3353, %v3332, %v2059
      %v3366 = vsel %vm3353, %v3333, %v2061
      %v3367 = vsel %vm3353, %v3334, %v2063
      %v3368 = vsel %vm3353, %v3335, %v2065
      %v3369 = vsel %vm3353, %v3336, %v2067
      %v3370 = vsel %vm3353, %v3337, %v2069
      %v3371 = vsel %vm3353, %v3338, %v2071
      %v3372 = vsel %vm3353, %v3339, %v2073
      %v3373 = vsel %vm3353, %v3340, %v2075
      %v3374 = vsel %vm3353, %v3341, %v2077
      %v3375 = vsel %vm3353, %v3342, %v2079
      %v3376 = vsel %vm3353, %v3343, %v2081
      %v3377 = vsel %vm3353, %v3344, %v2083
      %v3378 = vsel %vm3353, %v3345, %v2085
      %v3379 = vsel %vm3353, %v3346, %v2087
      %v3380 = vsel %vm3353, %v3347, %v2089
      %v3381 = vsel %vm3353, %v3348, %v2091
      %v3382 = vsel %vm3353, %v3349, %v2093
      %v3383 = vsel %vm3353, %v3350, %v2095
      %v3384 = vsel %vm3353, %v3351, %v2097
      %v3385 = vsel %vm3353, %v3352, %v2099
      %vm3386 = vcmask 261120
      %v3387 = vsel %vm3386, %v3354, %v2165
      %v3388 = vsel %vm3386, %v3355, %v2167
      %v3389 = vsel %vm3386, %v3356, %v2169
      %v3390 = vsel %vm3386, %v3357, %v2171
      %v3391 = vsel %vm3386, %v3358, %v2173
      %v3392 = vsel %vm3386, %v3359, %v2175
      %v3393 = vsel %vm3386, %v3360, %v2177
      %v3394 = vsel %vm3386, %v3361, %v2179
      %v3395 = vsel %vm3386, %v3362, %v2181
      %v3396 = vsel %vm3386, %v3363, %v2183
      %v3397 = vsel %vm3386, %v3364, %v2185
      %v3398 = vsel %vm3386, %v3365, %v2187
      %v3399 = vsel %vm3386, %v3366, %v2189
      %v3400 = vsel %vm3386, %v3367, %v2191
      %v3401 = vsel %vm3386, %v3368, %v2193
      %v3402 = vsel %vm3386, %v3369, %v2195
      %v3403 = vsel %vm3386, %v3370, %v2197
      %v3404 = vsel %vm3386, %v3371, %v2199
      %v3405 = vsel %vm3386, %v3372, %v2201
      %v3406 = vsel %vm3386, %v3373, %v2203
      %v3407 = vsel %vm3386, %v3374, %v2205
      %v3408 = vsel %vm3386, %v3375, %v2207
      %v3409 = vsel %vm3386, %v3376, %v2209
      %v3410 = vsel %vm3386, %v3377, %v2211
      %v3411 = vsel %vm3386, %v3378, %v2213
      %v3412 = vsel %vm3386, %v3379, %v2215
      %v3413 = vsel %vm3386, %v3380, %v2217
      %v3414 = vsel %vm3386, %v3381, %v2219
      %v3415 = vsel %vm3386, %v3382, %v2221
      %v3416 = vsel %vm3386, %v3383, %v2223
      %v3417 = vsel %vm3386, %v3384, %v2225
      %v3418 = vsel %vm3386, %v3385, %v2227
      %vm3419 = vcmask 293888
      %v3420 = vsel %vm3419, %v3387, %v2293
      %v3421 = vsel %vm3419, %v3388, %v2295
      %v3422 = vsel %vm3419, %v3389, %v2297
      %v3423 = vsel %vm3419, %v3390, %v2299
      %v3424 = vsel %vm3419, %v3391, %v2301
      %v3425 = vsel %vm3419, %v3392, %v2303
      %v3426 = vsel %vm3419, %v3393, %v2305
      %v3427 = vsel %vm3419, %v3394, %v2307
      %v3428 = vsel %vm3419, %v3395, %v2309
      %v3429 = vsel %vm3419, %v3396, %v2311
      %v3430 = vsel %vm3419, %v3397, %v2313
      %v3431 = vsel %vm3419, %v3398, %v2315
      %v3432 = vsel %vm3419, %v3399, %v2317
      %v3433 = vsel %vm3419, %v3400, %v2319
      %v3434 = vsel %vm3419, %v3401, %v2321
      %v3435 = vsel %vm3419, %v3402, %v2323
      %v3436 = vsel %vm3419, %v3403, %v2325
      %v3437 = vsel %vm3419, %v3404, %v2327
      %v3438 = vsel %vm3419, %v3405, %v2329
      %v3439 = vsel %vm3419, %v3406, %v2331
      %v3440 = vsel %vm3419, %v3407, %v2333
      %v3441 = vsel %vm3419, %v3408, %v2335
      %v3442 = vsel %vm3419, %v3409, %v2337
      %v3443 = vsel %vm3419, %v3410, %v2339
      %v3444 = vsel %vm3419, %v3411, %v2341
      %v3445 = vsel %vm3419, %v3412, %v2343
      %v3446 = vsel %vm3419, %v3413, %v2345
      %v3447 = vsel %vm3419, %v3414, %v2347
      %v3448 = vsel %vm3419, %v3415, %v2349
      %v3449 = vsel %vm3419, %v3416, %v2351
      %v3450 = vsel %vm3419, %v3417, %v2353
      %v3451 = vsel %vm3419, %v3418, %v2355
      %vm3452 = vcmask 326656
      %v3453 = vsel %vm3452, %v3420, %v2421
      %v3454 = vsel %vm3452, %v3421, %v2423
      %v3455 = vsel %vm3452, %v3422, %v2425
      %v3456 = vsel %vm3452, %v3423, %v2427
      %v3457 = vsel %vm3452, %v3424, %v2429
      %v3458 = vsel %vm3452, %v3425, %v2431
      %v3459 = vsel %vm3452, %v3426, %v2433
      %v3460 = vsel %vm3452, %v3427, %v2435
      %v3461 = vsel %vm3452, %v3428, %v2437
      %v3462 = vsel %vm3452, %v3429, %v2439
      %v3463 = vsel %vm3452, %v3430, %v2441
      %v3464 = vsel %vm3452, %v3431, %v2443
      %v3465 = vsel %vm3452, %v3432, %v2445
      %v3466 = vsel %vm3452, %v3433, %v2447
      %v3467 = vsel %vm3452, %v3434, %v2449
      %v3468 = vsel %vm3452, %v3435, %v2451
      %v3469 = vsel %vm3452, %v3436, %v2453
      %v3470 = vsel %vm3452, %v3437, %v2455
      %v3471 = vsel %vm3452, %v3438, %v2457
      %v3472 = vsel %vm3452, %v3439, %v2459
      %v3473 = vsel %vm3452, %v3440, %v2461
      %v3474 = vsel %vm3452, %v3441, %v2463
      %v3475 = vsel %vm3452, %v3442, %v2465
      %v3476 = vsel %vm3452, %v3443, %v2467
      %v3477 = vsel %vm3452, %v3444, %v2469
      %v3478 = vsel %vm3452, %v3445, %v2471
      %v3479 = vsel %vm3452, %v3446, %v2473
      %v3480 = vsel %vm3452, %v3447, %v2475
      %v3481 = vsel %vm3452, %v3448, %v2477
      %v3482 = vsel %vm3452, %v3449, %v2479
      %v3483 = vsel %vm3452, %v3450, %v2481
      %v3484 = vsel %vm3452, %v3451, %v2483
      %vm3485 = vcmask 359424
      %v3486 = vsel %vm3485, %v3453, %v2549
      %v3487 = vsel %vm3485, %v3454, %v2551
      %v3488 = vsel %vm3485, %v3455, %v2553
      %v3489 = vsel %vm3485, %v3456, %v2555
      %v3490 = vsel %vm3485, %v3457, %v2557
      %v3491 = vsel %vm3485, %v3458, %v2559
      %v3492 = vsel %vm3485, %v3459, %v2561
      %v3493 = vsel %vm3485, %v3460, %v2563
      %v3494 = vsel %vm3485, %v3461, %v2565
      %v3495 = vsel %vm3485, %v3462, %v2567
      %v3496 = vsel %vm3485, %v3463, %v2569
      %v3497 = vsel %vm3485, %v3464, %v2571
      %v3498 = vsel %vm3485, %v3465, %v2573
      %v3499 = vsel %vm3485, %v3466, %v2575
      %v3500 = vsel %vm3485, %v3467, %v2577
      %v3501 = vsel %vm3485, %v3468, %v2579
      %v3502 = vsel %vm3485, %v3469, %v2581
      %v3503 = vsel %vm3485, %v3470, %v2583
      %v3504 = vsel %vm3485, %v3471, %v2585
      %v3505 = vsel %vm3485, %v3472, %v2587
      %v3506 = vsel %vm3485, %v3473, %v2589
      %v3507 = vsel %vm3485, %v3474, %v2591
      %v3508 = vsel %vm3485, %v3475, %v2593
      %v3509 = vsel %vm3485, %v3476, %v2595
      %v3510 = vsel %vm3485, %v3477, %v2597
      %v3511 = vsel %vm3485, %v3478, %v2599
      %v3512 = vsel %vm3485, %v3479, %v2601
      %v3513 = vsel %vm3485, %v3480, %v2603
      %v3514 = vsel %vm3485, %v3481, %v2605
      %v3515 = vsel %vm3485, %v3482, %v2607
      %v3516 = vsel %vm3485, %v3483, %v2609
      %v3517 = vsel %vm3485, %v3484, %v2611
      %vm3518 = vcmask 392192
      %v3519 = vsel %vm3518, %v3486, %v2677
      %v3520 = vsel %vm3518, %v3487, %v2679
      %v3521 = vsel %vm3518, %v3488, %v2681
      %v3522 = vsel %vm3518, %v3489, %v2683
      %v3523 = vsel %vm3518, %v3490, %v2685
      %v3524 = vsel %vm3518, %v3491, %v2687
      %v3525 = vsel %vm3518, %v3492, %v2689
      %v3526 = vsel %vm3518, %v3493, %v2691
      %v3527 = vsel %vm3518, %v3494, %v2693
      %v3528 = vsel %vm3518, %v3495, %v2695
      %v3529 = vsel %vm3518, %v3496, %v2697
      %v3530 = vsel %vm3518, %v3497, %v2699
      %v3531 = vsel %vm3518, %v3498, %v2701
      %v3532 = vsel %vm3518, %v3499, %v2703
      %v3533 = vsel %vm3518, %v3500, %v2705
      %v3534 = vsel %vm3518, %v3501, %v2707
      %v3535 = vsel %vm3518, %v3502, %v2709
      %v3536 = vsel %vm3518, %v3503, %v2711
      %v3537 = vsel %vm3518, %v3504, %v2713
      %v3538 = vsel %vm3518, %v3505, %v2715
      %v3539 = vsel %vm3518, %v3506, %v2717
      %v3540 = vsel %vm3518, %v3507, %v2719
      %v3541 = vsel %vm3518, %v3508, %v2721
      %v3542 = vsel %vm3518, %v3509, %v2723
      %v3543 = vsel %vm3518, %v3510, %v2725
      %v3544 = vsel %vm3518, %v3511, %v2727
      %v3545 = vsel %vm3518, %v3512, %v2729
      %v3546 = vsel %vm3518, %v3513, %v2731
      %v3547 = vsel %vm3518, %v3514, %v2733
      %v3548 = vsel %vm3518, %v3515, %v2735
      %v3549 = vsel %vm3518, %v3516, %v2737
      %v3550 = vsel %vm3518, %v3517, %v2739
      %vm3551 = vcmask 424960
      %v3552 = vsel %vm3551, %v3519, %v2805
      %v3553 = vsel %vm3551, %v3520, %v2807
      %v3554 = vsel %vm3551, %v3521, %v2809
      %v3555 = vsel %vm3551, %v3522, %v2811
      %v3556 = vsel %vm3551, %v3523, %v2813
      %v3557 = vsel %vm3551, %v3524, %v2815
      %v3558 = vsel %vm3551, %v3525, %v2817
      %v3559 = vsel %vm3551, %v3526, %v2819
      %v3560 = vsel %vm3551, %v3527, %v2821
      %v3561 = vsel %vm3551, %v3528, %v2823
      %v3562 = vsel %vm3551, %v3529, %v2825
      %v3563 = vsel %vm3551, %v3530, %v2827
      %v3564 = vsel %vm3551, %v3531, %v2829
      %v3565 = vsel %vm3551, %v3532, %v2831
      %v3566 = vsel %vm3551, %v3533, %v2833
      %v3567 = vsel %vm3551, %v3534, %v2835
      %v3568 = vsel %vm3551, %v3535, %v2837
      %v3569 = vsel %vm3551, %v3536, %v2839
      %v3570 = vsel %vm3551, %v3537, %v2841
      %v3571 = vsel %vm3551, %v3538, %v2843
      %v3572 = vsel %vm3551, %v3539, %v2845
      %v3573 = vsel %vm3551, %v3540, %v2847
      %v3574 = vsel %vm3551, %v3541, %v2849
      %v3575 = vsel %vm3551, %v3542, %v2851
      %v3576 = vsel %vm3551, %v3543, %v2853
      %v3577 = vsel %vm3551, %v3544, %v2855
      %v3578 = vsel %vm3551, %v3545, %v2857
      %v3579 = vsel %vm3551, %v3546, %v2859
      %v3580 = vsel %vm3551, %v3547, %v2861
      %v3581 = vsel %vm3551, %v3548, %v2863
      %v3582 = vsel %vm3551, %v3549, %v2865
      %v3583 = vsel %vm3551, %v3550, %v2867
      %vm3584 = vcmask 457728
      %v3585 = vsel %vm3584, %v3552, %v2933
      %v3586 = vsel %vm3584, %v3553, %v2935
      %v3587 = vsel %vm3584, %v3554, %v2937
      %v3588 = vsel %vm3584, %v3555, %v2939
      %v3589 = vsel %vm3584, %v3556, %v2941
      %v3590 = vsel %vm3584, %v3557, %v2943
      %v3591 = vsel %vm3584, %v3558, %v2945
      %v3592 = vsel %vm3584, %v3559, %v2947
      %v3593 = vsel %vm3584, %v3560, %v2949
      %v3594 = vsel %vm3584, %v3561, %v2951
      %v3595 = vsel %vm3584, %v3562, %v2953
      %v3596 = vsel %vm3584, %v3563, %v2955
      %v3597 = vsel %vm3584, %v3564, %v2957
      %v3598 = vsel %vm3584, %v3565, %v2959
      %v3599 = vsel %vm3584, %v3566, %v2961
      %v3600 = vsel %vm3584, %v3567, %v2963
      %v3601 = vsel %vm3584, %v3568, %v2965
      %v3602 = vsel %vm3584, %v3569, %v2967
      %v3603 = vsel %vm3584, %v3570, %v2969
      %v3604 = vsel %vm3584, %v3571, %v2971
      %v3605 = vsel %vm3584, %v3572, %v2973
      %v3606 = vsel %vm3584, %v3573, %v2975
      %v3607 = vsel %vm3584, %v3574, %v2977
      %v3608 = vsel %vm3584, %v3575, %v2979
      %v3609 = vsel %vm3584, %v3576, %v2981
      %v3610 = vsel %vm3584, %v3577, %v2983
      %v3611 = vsel %vm3584, %v3578, %v2985
      %v3612 = vsel %vm3584, %v3579, %v2987
      %v3613 = vsel %vm3584, %v3580, %v2989
      %v3614 = vsel %vm3584, %v3581, %v2991
      %v3615 = vsel %vm3584, %v3582, %v2993
      %v3616 = vsel %vm3584, %v3583, %v2995
      %vm3617 = vcmask 490496
      %v3618 = vsel %vm3617, %v3585, %v3061
      %v3619 = vsel %vm3617, %v3586, %v3063
      %v3620 = vsel %vm3617, %v3587, %v3065
      %v3621 = vsel %vm3617, %v3588, %v3067
      %v3622 = vsel %vm3617, %v3589, %v3069
      %v3623 = vsel %vm3617, %v3590, %v3071
      %v3624 = vsel %vm3617, %v3591, %v3073
      %v3625 = vsel %vm3617, %v3592, %v3075
      %v3626 = vsel %vm3617, %v3593, %v3077
      %v3627 = vsel %vm3617, %v3594, %v3079
      %v3628 = vsel %vm3617, %v3595, %v3081
      %v3629 = vsel %vm3617, %v3596, %v3083
      %v3630 = vsel %vm3617, %v3597, %v3085
      %v3631 = vsel %vm3617, %v3598, %v3087
      %v3632 = vsel %vm3617, %v3599, %v3089
      %v3633 = vsel %vm3617, %v3600, %v3091
      %v3634 = vsel %vm3617, %v3601, %v3093
      %v3635 = vsel %vm3617, %v3602, %v3095
      %v3636 = vsel %vm3617, %v3603, %v3097
      %v3637 = vsel %vm3617, %v3604, %v3099
      %v3638 = vsel %vm3617, %v3605, %v3101
      %v3639 = vsel %vm3617, %v3606, %v3103
      %v3640 = vsel %vm3617, %v3607, %v3105
      %v3641 = vsel %vm3617, %v3608, %v3107
      %v3642 = vsel %vm3617, %v3609, %v3109
      %v3643 = vsel %vm3617, %v3610, %v3111
      %v3644 = vsel %vm3617, %v3611, %v3113
      %v3645 = vsel %vm3617, %v3612, %v3115
      %v3646 = vsel %vm3617, %v3613, %v3117
      %v3647 = vsel %vm3617, %v3614, %v3119
      %v3648 = vsel %vm3617, %v3615, %v3121
      %v3649 = vsel %vm3617, %v3616, %v3123
      %3682 = vrot.lane.b32.xlu0 %v979, 4
      %v3683 = vpop.permute.xlu0 %3682
      %3684 = vrot.lane.b32.xlu0 %v980, 4
      %v3685 = vpop.permute.xlu0 %3684
      %3686 = vrot.lane.b32.xlu0 %v981, 4
      %v3687 = vpop.permute.xlu0 %3686
      %3688 = vrot.lane.b32.xlu0 %v982, 4
      %v3689 = vpop.permute.xlu0 %3688
      %3690 = vrot.lane.b32.xlu0 %v983, 4
      %v3691 = vpop.permute.xlu0 %3690
      %3692 = vrot.lane.b32.xlu0 %v984, 4
      %v3693 = vpop.permute.xlu0 %3692
      %3694 = vrot.lane.b32.xlu0 %v985, 4
      %v3695 = vpop.permute.xlu0 %3694
      %3696 = vrot.lane.b32.xlu0 %v986, 4
      %v3697 = vpop.permute.xlu0 %3696
      %3698 = vrot.lane.b32.xlu0 %v987, 4
      %v3699 = vpop.permute.xlu0 %3698
      %3700 = vrot.lane.b32.xlu0 %v988, 4
      %v3701 = vpop.permute.xlu0 %3700
      %3702 = vrot.lane.b32.xlu0 %v989, 4
      %v3703 = vpop.permute.xlu0 %3702
      %3704 = vrot.lane.b32.xlu0 %v990, 4
      %v3705 = vpop.permute.xlu0 %3704
      %3706 = vrot.lane.b32.xlu0 %v991, 4
      %v3707 = vpop.permute.xlu0 %3706
      %3708 = vrot.lane.b32.xlu0 %v992, 4
      %v3709 = vpop.permute.xlu0 %3708
      %3710 = vrot.lane.b32.xlu0 %v993, 4
      %v3711 = vpop.permute.xlu0 %3710
      %3712 = vrot.lane.b32.xlu0 %v994, 4
      %v3713 = vpop.permute.xlu0 %3712
      %3714 = vrot.lane.b32.xlu0 %v995, 4
      %v3715 = vpop.permute.xlu0 %3714
      %3716 = vrot.lane.b32.xlu0 %v996, 4
      %v3717 = vpop.permute.xlu0 %3716
      %3718 = vrot.lane.b32.xlu0 %v997, 4
      %v3719 = vpop.permute.xlu0 %3718
      %3720 = vrot.lane.b32.xlu0 %v998, 4
      %v3721 = vpop.permute.xlu0 %3720
      %3722 = vrot.lane.b32.xlu0 %v999, 4
      %v3723 = vpop.permute.xlu0 %3722
      %3724 = vrot.lane.b32.xlu0 %v1000, 4
      %v3725 = vpop.permute.xlu0 %3724
      %3726 = vrot.lane.b32.xlu0 %v1001, 4
      %v3727 = vpop.permute.xlu0 %3726
      %3728 = vrot.lane.b32.xlu0 %v1002, 4
      %v3729 = vpop.permute.xlu0 %3728
      %3730 = vrot.lane.b32.xlu0 %v1003, 4
      %v3731 = vpop.permute.xlu0 %3730
      %3732 = vrot.lane.b32.xlu0 %v1004, 4
      %v3733 = vpop.permute.xlu0 %3732
      %3734 = vrot.lane.b32.xlu0 %v1005, 4
      %v3735 = vpop.permute.xlu0 %3734
      %3736 = vrot.lane.b32.xlu0 %v1006, 4
      %v3737 = vpop.permute.xlu0 %3736
      %3738 = vrot.lane.b32.xlu0 %v1007, 4
      %v3739 = vpop.permute.xlu0 %3738
      %3740 = vrot.lane.b32.xlu0 %v1008, 4
      %v3741 = vpop.permute.xlu0 %3740
      %3742 = vrot.lane.b32.xlu0 %v1009, 4
      %v3743 = vpop.permute.xlu0 %3742
      %3744 = vrot.lane.b32.xlu0 %v1010, 4
      %v3745 = vpop.permute.xlu0 %3744
      %3810 = vrot.lane.b32.xlu0 %v1011, 8
      %v3811 = vpop.permute.xlu0 %3810
      %3812 = vrot.lane.b32.xlu0 %v1012, 8
      %v3813 = vpop.permute.xlu0 %3812
      %3814 = vrot.lane.b32.xlu0 %v1013, 8
      %v3815 = vpop.permute.xlu0 %3814
      %3816 = vrot.lane.b32.xlu0 %v1014, 8
      %v3817 = vpop.permute.xlu0 %3816
      %3818 = vrot.lane.b32.xlu0 %v1015, 8
      %v3819 = vpop.permute.xlu0 %3818
      %3820 = vrot.lane.b32.xlu0 %v1016, 8
      %v3821 = vpop.permute.xlu0 %3820
      %3822 = vrot.lane.b32.xlu0 %v1017, 8
      %v3823 = vpop.permute.xlu0 %3822
      %3824 = vrot.lane.b32.xlu0 %v1018, 8
      %v3825 = vpop.permute.xlu0 %3824
      %3826 = vrot.lane.b32.xlu0 %v1019, 8
      %v3827 = vpop.permute.xlu0 %3826
      %3828 = vrot.lane.b32.xlu0 %v1020, 8
      %v3829 = vpop.permute.xlu0 %3828
      %3830 = vrot.lane.b32.xlu0 %v1021, 8
      %v3831 = vpop.permute.xlu0 %3830
      %3832 = vrot.lane.b32.xlu0 %v1022, 8
      %v3833 = vpop.permute.xlu0 %3832
      %3834 = vrot.lane.b32.xlu0 %v1023, 8
      %v3835 = vpop.permute.xlu0 %3834
      %3836 = vrot.lane.b32.xlu0 %v1024, 8
      %v3837 = vpop.permute.xlu0 %3836
      %3838 = vrot.lane.b32.xlu0 %v1025, 8
      %v3839 = vpop.permute.xlu0 %3838
      %3840 = vrot.lane.b32.xlu0 %v1026, 8
      %v3841 = vpop.permute.xlu0 %3840
      %3842 = vrot.lane.b32.xlu0 %v1027, 8
      %v3843 = vpop.permute.xlu0 %3842
      %3844 = vrot.lane.b32.xlu0 %v1028, 8
      %v3845 = vpop.permute.xlu0 %3844
      %3846 = vrot.lane.b32.xlu0 %v1029, 8
      %v3847 = vpop.permute.xlu0 %3846
      %3848 = vrot.lane.b32.xlu0 %v1030, 8
      %v3849 = vpop.permute.xlu0 %3848
      %3850 = vrot.lane.b32.xlu0 %v1031, 8
      %v3851 = vpop.permute.xlu0 %3850
      %3852 = vrot.lane.b32.xlu0 %v1032, 8
      %v3853 = vpop.permute.xlu0 %3852
      %3854 = vrot.lane.b32.xlu0 %v1033, 8
      %v3855 = vpop.permute.xlu0 %3854
      %3856 = vrot.lane.b32.xlu0 %v1034, 8
      %v3857 = vpop.permute.xlu0 %3856
      %3858 = vrot.lane.b32.xlu0 %v1035, 8
      %v3859 = vpop.permute.xlu0 %3858
      %3860 = vrot.lane.b32.xlu0 %v1036, 8
      %v3861 = vpop.permute.xlu0 %3860
      %3862 = vrot.lane.b32.xlu0 %v1037, 8
      %v3863 = vpop.permute.xlu0 %3862
      %3864 = vrot.lane.b32.xlu0 %v1038, 8
      %v3865 = vpop.permute.xlu0 %3864
      %3866 = vrot.lane.b32.xlu0 %v1039, 8
      %v3867 = vpop.permute.xlu0 %3866
      %3868 = vrot.lane.b32.xlu0 %v1040, 8
      %v3869 = vpop.permute.xlu0 %3868
      %3870 = vrot.lane.b32.xlu0 %v1041, 8
      %v3871 = vpop.permute.xlu0 %3870
      %3872 = vrot.lane.b32.xlu0 %v1042, 8
      %v3873 = vpop.permute.xlu0 %3872
      %3938 = vrot.lane.b32.xlu0 %v1043, 12
      %v3939 = vpop.permute.xlu0 %3938
      %3940 = vrot.lane.b32.xlu0 %v1044, 12
      %v3941 = vpop.permute.xlu0 %3940
      %3942 = vrot.lane.b32.xlu0 %v1045, 12
      %v3943 = vpop.permute.xlu0 %3942
      %3944 = vrot.lane.b32.xlu0 %v1046, 12
      %v3945 = vpop.permute.xlu0 %3944
      %3946 = vrot.lane.b32.xlu0 %v1047, 12
      %v3947 = vpop.permute.xlu0 %3946
      %3948 = vrot.lane.b32.xlu0 %v1048, 12
      %v3949 = vpop.permute.xlu0 %3948
      %3950 = vrot.lane.b32.xlu0 %v1049, 12
      %v3951 = vpop.permute.xlu0 %3950
      %3952 = vrot.lane.b32.xlu0 %v1050, 12
      %v3953 = vpop.permute.xlu0 %3952
      %3954 = vrot.lane.b32.xlu0 %v1051, 12
      %v3955 = vpop.permute.xlu0 %3954
      %3956 = vrot.lane.b32.xlu0 %v1052, 12
      %v3957 = vpop.permute.xlu0 %3956
      %3958 = vrot.lane.b32.xlu0 %v1053, 12
      %v3959 = vpop.permute.xlu0 %3958
      %3960 = vrot.lane.b32.xlu0 %v1054, 12
      %v3961 = vpop.permute.xlu0 %3960
      %3962 = vrot.lane.b32.xlu0 %v1055, 12
      %v3963 = vpop.permute.xlu0 %3962
      %3964 = vrot.lane.b32.xlu0 %v1056, 12
      %v3965 = vpop.permute.xlu0 %3964
      %3966 = vrot.lane.b32.xlu0 %v1057, 12
      %v3967 = vpop.permute.xlu0 %3966
      %3968 = vrot.lane.b32.xlu0 %v1058, 12
      %v3969 = vpop.permute.xlu0 %3968
      %3970 = vrot.lane.b32.xlu0 %v1059, 12
      %v3971 = vpop.permute.xlu0 %3970
      %3972 = vrot.lane.b32.xlu0 %v1060, 12
      %v3973 = vpop.permute.xlu0 %3972
      %3974 = vrot.lane.b32.xlu0 %v1061, 12
      %v3975 = vpop.permute.xlu0 %3974
      %3976 = vrot.lane.b32.xlu0 %v1062, 12
      %v3977 = vpop.permute.xlu0 %3976
      %3978 = vrot.lane.b32.xlu0 %v1063, 12
      %v3979 = vpop.permute.xlu0 %3978
      %3980 = vrot.lane.b32.xlu0 %v1064, 12
      %v3981 = vpop.permute.xlu0 %3980
      %3982 = vrot.lane.b32.xlu0 %v1065, 12
      %v3983 = vpop.permute.xlu0 %3982
      %3984 = vrot.lane.b32.xlu0 %v1066, 12
      %v3985 = vpop.permute.xlu0 %3984
      %3986 = vrot.lane.b32.xlu0 %v1067, 12
      %v3987 = vpop.permute.xlu0 %3986
      %3988 = vrot.lane.b32.xlu0 %v1068, 12
      %v3989 = vpop.permute.xlu0 %3988
      %3990 = vrot.lane.b32.xlu0 %v1069, 12
      %v3991 = vpop.permute.xlu0 %3990
      %3992 = vrot.lane.b32.xlu0 %v1070, 12
      %v3993 = vpop.permute.xlu0 %3992
      %3994 = vrot.lane.b32.xlu0 %v1071, 12
      %v3995 = vpop.permute.xlu0 %3994
      %3996 = vrot.lane.b32.xlu0 %v1072, 12
      %v3997 = vpop.permute.xlu0 %3996
      %3998 = vrot.lane.b32.xlu0 %v1073, 12
      %v3999 = vpop.permute.xlu0 %3998
      %4000 = vrot.lane.b32.xlu0 %v1074, 12
      %v4001 = vpop.permute.xlu0 %4000
      %4066 = vrot.lane.b32.xlu0 %v1076, 16
      %v4067 = vpop.permute.xlu0 %4066
      %4068 = vrot.lane.b32.xlu0 %v1077, 16
      %v4069 = vpop.permute.xlu0 %4068
      %4070 = vrot.lane.b32.xlu0 %v1078, 16
      %v4071 = vpop.permute.xlu0 %4070
      %4072 = vrot.lane.b32.xlu0 %v1079, 16
      %v4073 = vpop.permute.xlu0 %4072
      %4074 = vrot.lane.b32.xlu0 %v1080, 16
      %v4075 = vpop.permute.xlu0 %4074
      %4076 = vrot.lane.b32.xlu0 %v1081, 16
      %v4077 = vpop.permute.xlu0 %4076
      %4078 = vrot.lane.b32.xlu0 %v1082, 16
      %v4079 = vpop.permute.xlu0 %4078
      %4080 = vrot.lane.b32.xlu0 %v1083, 16
      %v4081 = vpop.permute.xlu0 %4080
      %4082 = vrot.lane.b32.xlu0 %v1084, 16
      %v4083 = vpop.permute.xlu0 %4082
      %4084 = vrot.lane.b32.xlu0 %v1085, 16
      %v4085 = vpop.permute.xlu0 %4084
      %4086 = vrot.lane.b32.xlu0 %v1086, 16
      %v4087 = vpop.permute.xlu0 %4086
      %4088 = vrot.lane.b32.xlu0 %v1087, 16
      %v4089 = vpop.permute.xlu0 %4088
      %4090 = vrot.lane.b32.xlu0 %v1088, 16
      %v4091 = vpop.permute.xlu0 %4090
      %4092 = vrot.lane.b32.xlu0 %v1089, 16
      %v4093 = vpop.permute.xlu0 %4092
      %4094 = vrot.lane.b32.xlu0 %v1090, 16
      %v4095 = vpop.permute.xlu0 %4094
      %4096 = vrot.lane.b32.xlu0 %v1091, 16
      %v4097 = vpop.permute.xlu0 %4096
      %4098 = vrot.lane.b32.xlu0 %v1092, 16
      %v4099 = vpop.permute.xlu0 %4098
      %4100 = vrot.lane.b32.xlu0 %v1093, 16
      %v4101 = vpop.permute.xlu0 %4100
      %4102 = vrot.lane.b32.xlu0 %v1094, 16
      %v4103 = vpop.permute.xlu0 %4102
      %4104 = vrot.lane.b32.xlu0 %v1095, 16
      %v4105 = vpop.permute.xlu0 %4104
      %4106 = vrot.lane.b32.xlu0 %v1096, 16
      %v4107 = vpop.permute.xlu0 %4106
      %4108 = vrot.lane.b32.xlu0 %v1097, 16
      %v4109 = vpop.permute.xlu0 %4108
      %4110 = vrot.lane.b32.xlu0 %v1098, 16
      %v4111 = vpop.permute.xlu0 %4110
      %4112 = vrot.lane.b32.xlu0 %v1099, 16
      %v4113 = vpop.permute.xlu0 %4112
      %4114 = vrot.lane.b32.xlu0 %v1100, 16
      %v4115 = vpop.permute.xlu0 %4114
      %4116 = vrot.lane.b32.xlu0 %v1101, 16
      %v4117 = vpop.permute.xlu0 %4116
      %4118 = vrot.lane.b32.xlu0 %v1102, 16
      %v4119 = vpop.permute.xlu0 %4118
      %4120 = vrot.lane.b32.xlu0 %v1103, 16
      %v4121 = vpop.permute.xlu0 %4120
      %4122 = vrot.lane.b32.xlu0 %v1104, 16
      %v4123 = vpop.permute.xlu0 %4122
      %4124 = vrot.lane.b32.xlu0 %v1105, 16
      %v4125 = vpop.permute.xlu0 %4124
      %4126 = vrot.lane.b32.xlu0 %v1106, 16
      %v4127 = vpop.permute.xlu0 %4126
      %4128 = vrot.lane.b32.xlu0 %v1107, 16
      %v4129 = vpop.permute.xlu0 %4128
      %4194 = vrot.lane.b32.xlu0 %v1108, 20
      %v4195 = vpop.permute.xlu0 %4194
      %4196 = vrot.lane.b32.xlu0 %v1109, 20
      %v4197 = vpop.permute.xlu0 %4196
      %4198 = vrot.lane.b32.xlu0 %v1110, 20
      %v4199 = vpop.permute.xlu0 %4198
      %4200 = vrot.lane.b32.xlu0 %v1111, 20
      %v4201 = vpop.permute.xlu0 %4200
      %4202 = vrot.lane.b32.xlu0 %v1112, 20
      %v4203 = vpop.permute.xlu0 %4202
      %4204 = vrot.lane.b32.xlu0 %v1113, 20
      %v4205 = vpop.permute.xlu0 %4204
      %4206 = vrot.lane.b32.xlu0 %v1114, 20
      %v4207 = vpop.permute.xlu0 %4206
      %4208 = vrot.lane.b32.xlu0 %v1115, 20
      %v4209 = vpop.permute.xlu0 %4208
      %4210 = vrot.lane.b32.xlu0 %v1116, 20
      %v4211 = vpop.permute.xlu0 %4210
      %4212 = vrot.lane.b32.xlu0 %v1117, 20
      %v4213 = vpop.permute.xlu0 %4212
      %4214 = vrot.lane.b32.xlu0 %v1118, 20
      %v4215 = vpop.permute.xlu0 %4214
      %4216 = vrot.lane.b32.xlu0 %v1119, 20
      %v4217 = vpop.permute.xlu0 %4216
      %4218 = vrot.lane.b32.xlu0 %v1120, 20
      %v4219 = vpop.permute.xlu0 %4218
      %4220 = vrot.lane.b32.xlu0 %v1121, 20
      %v4221 = vpop.permute.xlu0 %4220
      %4222 = vrot.lane.b32.xlu0 %v1122, 20
      %v4223 = vpop.permute.xlu0 %4222
      %4224 = vrot.lane.b32.xlu0 %v1123, 20
      %v4225 = vpop.permute.xlu0 %4224
      %4226 = vrot.lane.b32.xlu0 %v1124, 20
      %v4227 = vpop.permute.xlu0 %4226
      %4228 = vrot.lane.b32.xlu0 %v1125, 20
      %v4229 = vpop.permute.xlu0 %4228
      %4230 = vrot.lane.b32.xlu0 %v1126, 20
      %v4231 = vpop.permute.xlu0 %4230
      %4232 = vrot.lane.b32.xlu0 %v1127, 20
      %v4233 = vpop.permute.xlu0 %4232
      %4234 = vrot.lane.b32.xlu0 %v1128, 20
      %v4235 = vpop.permute.xlu0 %4234
      %4236 = vrot.lane.b32.xlu0 %v1129, 20
      %v4237 = vpop.permute.xlu0 %4236
      %4238 = vrot.lane.b32.xlu0 %v1130, 20
      %v4239 = vpop.permute.xlu0 %4238
      %4240 = vrot.lane.b32.xlu0 %v1131, 20
      %v4241 = vpop.permute.xlu0 %4240
      %4242 = vrot.lane.b32.xlu0 %v1132, 20
      %v4243 = vpop.permute.xlu0 %4242
      %4244 = vrot.lane.b32.xlu0 %v1133, 20
      %v4245 = vpop.permute.xlu0 %4244
      %4246 = vrot.lane.b32.xlu0 %v1134, 20
      %v4247 = vpop.permute.xlu0 %4246
      %4248 = vrot.lane.b32.xlu0 %v1135, 20
      %v4249 = vpop.permute.xlu0 %4248
      %4250 = vrot.lane.b32.xlu0 %v1136, 20
      %v4251 = vpop.permute.xlu0 %4250
      %4252 = vrot.lane.b32.xlu0 %v1137, 20
      %v4253 = vpop.permute.xlu0 %4252
      %4254 = vrot.lane.b32.xlu0 %v1138, 20
      %v4255 = vpop.permute.xlu0 %4254
      %4256 = vrot.lane.b32.xlu0 %v1139, 20
      %v4257 = vpop.permute.xlu0 %4256
      %4322 = vrot.lane.b32.xlu0 %v1140, 24
      %v4323 = vpop.permute.xlu0 %4322
      %4324 = vrot.lane.b32.xlu0 %v1141, 24
      %v4325 = vpop.permute.xlu0 %4324
      %4326 = vrot.lane.b32.xlu0 %v1142, 24
      %v4327 = vpop.permute.xlu0 %4326
      %4328 = vrot.lane.b32.xlu0 %v1143, 24
      %v4329 = vpop.permute.xlu0 %4328
      %4330 = vrot.lane.b32.xlu0 %v1144, 24
      %v4331 = vpop.permute.xlu0 %4330
      %4332 = vrot.lane.b32.xlu0 %v1145, 24
      %v4333 = vpop.permute.xlu0 %4332
      %4334 = vrot.lane.b32.xlu0 %v1146, 24
      %v4335 = vpop.permute.xlu0 %4334
      %4336 = vrot.lane.b32.xlu0 %v1147, 24
      %v4337 = vpop.permute.xlu0 %4336
      %4338 = vrot.lane.b32.xlu0 %v1148, 24
      %v4339 = vpop.permute.xlu0 %4338
      %4340 = vrot.lane.b32.xlu0 %v1149, 24
      %v4341 = vpop.permute.xlu0 %4340
      %4342 = vrot.lane.b32.xlu0 %v1150, 24
      %v4343 = vpop.permute.xlu0 %4342
      %4344 = vrot.lane.b32.xlu0 %v1151, 24
      %v4345 = vpop.permute.xlu0 %4344
      %4346 = vrot.lane.b32.xlu0 %v1152, 24
      %v4347 = vpop.permute.xlu0 %4346
      %4348 = vrot.lane.b32.xlu0 %v1153, 24
      %v4349 = vpop.permute.xlu0 %4348
      %4350 = vrot.lane.b32.xlu0 %v1154, 24
      %v4351 = vpop.permute.xlu0 %4350
      %4352 = vrot.lane.b32.xlu0 %v1155, 24
      %v4353 = vpop.permute.xlu0 %4352
      %4354 = vrot.lane.b32.xlu0 %v1156, 24
      %v4355 = vpop.permute.xlu0 %4354
      %4356 = vrot.lane.b32.xlu0 %v1157, 24
      %v4357 = vpop.permute.xlu0 %4356
      %4358 = vrot.lane.b32.xlu0 %v1158, 24
      %v4359 = vpop.permute.xlu0 %4358
      %4360 = vrot.lane.b32.xlu0 %v1159, 24
      %v4361 = vpop.permute.xlu0 %4360
      %4362 = vrot.lane.b32.xlu0 %v1160, 24
      %v4363 = vpop.permute.xlu0 %4362
      %4364 = vrot.lane.b32.xlu0 %v1161, 24
      %v4365 = vpop.permute.xlu0 %4364
      %4366 = vrot.lane.b32.xlu0 %v1162, 24
      %v4367 = vpop.permute.xlu0 %4366
      %4368 = vrot.lane.b32.xlu0 %v1163, 24
      %v4369 = vpop.permute.xlu0 %4368
      %4370 = vrot.lane.b32.xlu0 %v1164, 24
      %v4371 = vpop.permute.xlu0 %4370
      %4372 = vrot.lane.b32.xlu0 %v1165, 24
      %v4373 = vpop.permute.xlu0 %4372
      %4374 = vrot.lane.b32.xlu0 %v1166, 24
      %v4375 = vpop.permute.xlu0 %4374
      %4376 = vrot.lane.b32.xlu0 %v1167, 24
      %v4377 = vpop.permute.xlu0 %4376
      %4378 = vrot.lane.b32.xlu0 %v1168, 24
      %v4379 = vpop.permute.xlu0 %4378
      %4380 = vrot.lane.b32.xlu0 %v1169, 24
      %v4381 = vpop.permute.xlu0 %4380
      %4382 = vrot.lane.b32.xlu0 %v1170, 24
      %v4383 = vpop.permute.xlu0 %4382
      %4384 = vrot.lane.b32.xlu0 %v1171, 24
      %v4385 = vpop.permute.xlu0 %4384
      %4450 = vrot.lane.b32.xlu0 %v1172, 28
      %v4451 = vpop.permute.xlu0 %4450
      %4452 = vrot.lane.b32.xlu0 %v1173, 28
      %v4453 = vpop.permute.xlu0 %4452
      %4454 = vrot.lane.b32.xlu0 %v1174, 28
      %v4455 = vpop.permute.xlu0 %4454
      %4456 = vrot.lane.b32.xlu0 %v1175, 28
      %v4457 = vpop.permute.xlu0 %4456
      %4458 = vrot.lane.b32.xlu0 %v1176, 28
      %v4459 = vpop.permute.xlu0 %4458
      %4460 = vrot.lane.b32.xlu0 %v1177, 28
      %v4461 = vpop.permute.xlu0 %4460
      %4462 = vrot.lane.b32.xlu0 %v1178, 28
      %v4463 = vpop.permute.xlu0 %4462
      %4464 = vrot.lane.b32.xlu0 %v1179, 28
      %v4465 = vpop.permute.xlu0 %4464
      %4466 = vrot.lane.b32.xlu0 %v1180, 28
      %v4467 = vpop.permute.xlu0 %4466
      %4468 = vrot.lane.b32.xlu0 %v1181, 28
      %v4469 = vpop.permute.xlu0 %4468
      %4470 = vrot.lane.b32.xlu0 %v1182, 28
      %v4471 = vpop.permute.xlu0 %4470
      %4472 = vrot.lane.b32.xlu0 %v1183, 28
      %v4473 = vpop.permute.xlu0 %4472
      %4474 = vrot.lane.b32.xlu0 %v1184, 28
      %v4475 = vpop.permute.xlu0 %4474
      %4476 = vrot.lane.b32.xlu0 %v1185, 28
      %v4477 = vpop.permute.xlu0 %4476
      %4478 = vrot.lane.b32.xlu0 %v1186, 28
      %v4479 = vpop.permute.xlu0 %4478
      %4480 = vrot.lane.b32.xlu0 %v1187, 28
      %v4481 = vpop.permute.xlu0 %4480
      %4482 = vrot.lane.b32.xlu0 %v1188, 28
      %v4483 = vpop.permute.xlu0 %4482
      %4484 = vrot.lane.b32.xlu0 %v1189, 28
      %v4485 = vpop.permute.xlu0 %4484
      %4486 = vrot.lane.b32.xlu0 %v1190, 28
      %v4487 = vpop.permute.xlu0 %4486
      %4488 = vrot.lane.b32.xlu0 %v1191, 28
      %v4489 = vpop.permute.xlu0 %4488
      %4490 = vrot.lane.b32.xlu0 %v1192, 28
      %v4491 = vpop.permute.xlu0 %4490
      %4492 = vrot.lane.b32.xlu0 %v1193, 28
      %v4493 = vpop.permute.xlu0 %4492
      %4494 = vrot.lane.b32.xlu0 %v1194, 28
      %v4495 = vpop.permute.xlu0 %4494
      %4496 = vrot.lane.b32.xlu0 %v1195, 28
      %v4497 = vpop.permute.xlu0 %4496
      %4498 = vrot.lane.b32.xlu0 %v1196, 28
      %v4499 = vpop.permute.xlu0 %4498
      %4500 = vrot.lane.b32.xlu0 %v1197, 28
      %v4501 = vpop.permute.xlu0 %4500
      %4502 = vrot.lane.b32.xlu0 %v1198, 28
      %v4503 = vpop.permute.xlu0 %4502
      %4504 = vrot.lane.b32.xlu0 %v1199, 28
      %v4505 = vpop.permute.xlu0 %4504
      %4506 = vrot.lane.b32.xlu0 %v1200, 28
      %v4507 = vpop.permute.xlu0 %4506
      %4508 = vrot.lane.b32.xlu0 %v1201, 28
      %v4509 = vpop.permute.xlu0 %4508
      %4510 = vrot.lane.b32.xlu0 %v1202, 28
      %v4511 = vpop.permute.xlu0 %4510
      %4512 = vrot.lane.b32.xlu0 %v1203, 28
      %v4513 = vpop.permute.xlu0 %4512
      %4578 = vrot.lane.b32.xlu0 %v1204, 32
      %v4579 = vpop.permute.xlu0 %4578
      %4580 = vrot.lane.b32.xlu0 %v1205, 32
      %v4581 = vpop.permute.xlu0 %4580
      %4582 = vrot.lane.b32.xlu0 %v1206, 32
      %v4583 = vpop.permute.xlu0 %4582
      %4584 = vrot.lane.b32.xlu0 %v1207, 32
      %v4585 = vpop.permute.xlu0 %4584
      %4586 = vrot.lane.b32.xlu0 %v1208, 32
      %v4587 = vpop.permute.xlu0 %4586
      %4588 = vrot.lane.b32.xlu0 %v1209, 32
      %v4589 = vpop.permute.xlu0 %4588
      %4590 = vrot.lane.b32.xlu0 %v1210, 32
      %v4591 = vpop.permute.xlu0 %4590
      %4592 = vrot.lane.b32.xlu0 %v1211, 32
      %v4593 = vpop.permute.xlu0 %4592
      %4594 = vrot.lane.b32.xlu0 %v1212, 32
      %v4595 = vpop.permute.xlu0 %4594
      %4596 = vrot.lane.b32.xlu0 %v1213, 32
      %v4597 = vpop.permute.xlu0 %4596
      %4598 = vrot.lane.b32.xlu0 %v1214, 32
      %v4599 = vpop.permute.xlu0 %4598
      %4600 = vrot.lane.b32.xlu0 %v1215, 32
      %v4601 = vpop.permute.xlu0 %4600
      %4602 = vrot.lane.b32.xlu0 %v1216, 32
      %v4603 = vpop.permute.xlu0 %4602
      %4604 = vrot.lane.b32.xlu0 %v1217, 32
      %v4605 = vpop.permute.xlu0 %4604
      %4606 = vrot.lane.b32.xlu0 %v1218, 32
      %v4607 = vpop.permute.xlu0 %4606
      %4608 = vrot.lane.b32.xlu0 %v1219, 32
      %v4609 = vpop.permute.xlu0 %4608
      %4610 = vrot.lane.b32.xlu0 %v1220, 32
      %v4611 = vpop.permute.xlu0 %4610
      %4612 = vrot.lane.b32.xlu0 %v1221, 32
      %v4613 = vpop.permute.xlu0 %4612
      %4614 = vrot.lane.b32.xlu0 %v1222, 32
      %v4615 = vpop.permute.xlu0 %4614
      %4616 = vrot.lane.b32.xlu0 %v1223, 32
      %v4617 = vpop.permute.xlu0 %4616
      %4618 = vrot.lane.b32.xlu0 %v1224, 32
      %v4619 = vpop.permute.xlu0 %4618
      %4620 = vrot.lane.b32.xlu0 %v1225, 32
      %v4621 = vpop.permute.xlu0 %4620
      %4622 = vrot.lane.b32.xlu0 %v1226, 32
      %v4623 = vpop.permute.xlu0 %4622
      %4624 = vrot.lane.b32.xlu0 %v1227, 32
      %v4625 = vpop.permute.xlu0 %4624
      %4626 = vrot.lane.b32.xlu0 %v1228, 32
      %v4627 = vpop.permute.xlu0 %4626
      %4628 = vrot.lane.b32.xlu0 %v1229, 32
      %v4629 = vpop.permute.xlu0 %4628
      %4630 = vrot.lane.b32.xlu0 %v1230, 32
      %v4631 = vpop.permute.xlu0 %4630
      %4632 = vrot.lane.b32.xlu0 %v1231, 32
      %v4633 = vpop.permute.xlu0 %4632
      %4634 = vrot.lane.b32.xlu0 %v1232, 32
      %v4635 = vpop.permute.xlu0 %4634
      %4636 = vrot.lane.b32.xlu0 %v1233, 32
      %v4637 = vpop.permute.xlu0 %4636
      %4638 = vrot.lane.b32.xlu0 %v1234, 32
      %v4639 = vpop.permute.xlu0 %4638
      %4640 = vrot.lane.b32.xlu0 %v1235, 32
      %v4641 = vpop.permute.xlu0 %4640
      %v4674 = vsel %vm306, %v947, %v3683
      %v4675 = vsel %vm306, %v948, %v3685
      %v4676 = vsel %vm306, %v949, %v3687
      %v4677 = vsel %vm306, %v950, %v3689
      %v4678 = vsel %vm306, %v951, %v3691
      %v4679 = vsel %vm306, %v952, %v3693
      %v4680 = vsel %vm306, %v953, %v3695
      %v4681 = vsel %vm306, %v954, %v3697
      %v4682 = vsel %vm306, %v955, %v3699
      %v4683 = vsel %vm306, %v956, %v3701
      %v4684 = vsel %vm306, %v957, %v3703
      %v4685 = vsel %vm306, %v958, %v3705
      %v4686 = vsel %vm306, %v959, %v3707
      %v4687 = vsel %vm306, %v960, %v3709
      %v4688 = vsel %vm306, %v961, %v3711
      %v4689 = vsel %vm306, %v962, %v3713
      %v4690 = vsel %vm306, %v963, %v3715
      %v4691 = vsel %vm306, %v964, %v3717
      %v4692 = vsel %vm306, %v965, %v3719
      %v4693 = vsel %vm306, %v966, %v3721
      %v4694 = vsel %vm306, %v967, %v3723
      %v4695 = vsel %vm306, %v968, %v3725
      %v4696 = vsel %vm306, %v969, %v3727
      %v4697 = vsel %vm306, %v970, %v3729
      %v4698 = vsel %vm306, %v971, %v3731
      %v4699 = vsel %vm306, %v972, %v3733
      %v4700 = vsel %vm306, %v973, %v3735
      %v4701 = vsel %vm306, %v974, %v3737
      %v4702 = vsel %vm306, %v975, %v3739
      %v4703 = vsel %vm306, %v976, %v3741
      %v4704 = vsel %vm306, %v977, %v3743
      %v4705 = vsel %vm306, %v978, %v3745
      %v4706 = vsel %vm3188, %v4674, %v3811
      %v4707 = vsel %vm3188, %v4675, %v3813
      %v4708 = vsel %vm3188, %v4676, %v3815
      %v4709 = vsel %vm3188, %v4677, %v3817
      %v4710 = vsel %vm3188, %v4678, %v3819
      %v4711 = vsel %vm3188, %v4679, %v3821
      %v4712 = vsel %vm3188, %v4680, %v3823
      %v4713 = vsel %vm3188, %v4681, %v3825
      %v4714 = vsel %vm3188, %v4682, %v3827
      %v4715 = vsel %vm3188, %v4683, %v3829
      %v4716 = vsel %vm3188, %v4684, %v3831
      %v4717 = vsel %vm3188, %v4685, %v3833
      %v4718 = vsel %vm3188, %v4686, %v3835
      %v4719 = vsel %vm3188, %v4687, %v3837
      %v4720 = vsel %vm3188, %v4688, %v3839
      %v4721 = vsel %vm3188, %v4689, %v3841
      %v4722 = vsel %vm3188, %v4690, %v3843
      %v4723 = vsel %vm3188, %v4691, %v3845
      %v4724 = vsel %vm3188, %v4692, %v3847
      %v4725 = vsel %vm3188, %v4693, %v3849
      %v4726 = vsel %vm3188, %v4694, %v3851
      %v4727 = vsel %vm3188, %v4695, %v3853
      %v4728 = vsel %vm3188, %v4696, %v3855
      %v4729 = vsel %vm3188, %v4697, %v3857
      %v4730 = vsel %vm3188, %v4698, %v3859
      %v4731 = vsel %vm3188, %v4699, %v3861
      %v4732 = vsel %vm3188, %v4700, %v3863
      %v4733 = vsel %vm3188, %v4701, %v3865
      %v4734 = vsel %vm3188, %v4702, %v3867
      %v4735 = vsel %vm3188, %v4703, %v3869
      %v4736 = vsel %vm3188, %v4704, %v3871
      %v4737 = vsel %vm3188, %v4705, %v3873
      %v4738 = vsel %vm3221, %v4706, %v3939
      %v4739 = vsel %vm3221, %v4707, %v3941
      %v4740 = vsel %vm3221, %v4708, %v3943
      %v4741 = vsel %vm3221, %v4709, %v3945
      %v4742 = vsel %vm3221, %v4710, %v3947
      %v4743 = vsel %vm3221, %v4711, %v3949
      %v4744 = vsel %vm3221, %v4712, %v3951
      %v4745 = vsel %vm3221, %v4713, %v3953
      %v4746 = vsel %vm3221, %v4714, %v3955
      %v4747 = vsel %vm3221, %v4715, %v3957
      %v4748 = vsel %vm3221, %v4716, %v3959
      %v4749 = vsel %vm3221, %v4717, %v3961
      %v4750 = vsel %vm3221, %v4718, %v3963
      %v4751 = vsel %vm3221, %v4719, %v3965
      %v4752 = vsel %vm3221, %v4720, %v3967
      %v4753 = vsel %vm3221, %v4721, %v3969
      %v4754 = vsel %vm3221, %v4722, %v3971
      %v4755 = vsel %vm3221, %v4723, %v3973
      %v4756 = vsel %vm3221, %v4724, %v3975
      %v4757 = vsel %vm3221, %v4725, %v3977
      %v4758 = vsel %vm3221, %v4726, %v3979
      %v4759 = vsel %vm3221, %v4727, %v3981
      %v4760 = vsel %vm3221, %v4728, %v3983
      %v4761 = vsel %vm3221, %v4729, %v3985
      %v4762 = vsel %vm3221, %v4730, %v3987
      %v4763 = vsel %vm3221, %v4731, %v3989
      %v4764 = vsel %vm3221, %v4732, %v3991
      %v4765 = vsel %vm3221, %v4733, %v3993
      %v4766 = vsel %vm3221, %v4734, %v3995
      %v4767 = vsel %vm3221, %v4735, %v3997
      %v4768 = vsel %vm3221, %v4736, %v3999
      %v4769 = vsel %vm3221, %v4737, %v4001
      %v4770 = vsel %vm3254, %v4738, %v4067
      %v4771 = vsel %vm3254, %v4739, %v4069
      %v4772 = vsel %vm3254, %v4740, %v4071
      %v4773 = vsel %vm3254, %v4741, %v4073
      %v4774 = vsel %vm3254, %v4742, %v4075
      %v4775 = vsel %vm3254, %v4743, %v4077
      %v4776 = vsel %vm3254, %v4744, %v4079
      %v4777 = vsel %vm3254, %v4745, %v4081
      %v4778 = vsel %vm3254, %v4746, %v4083
      %v4779 = vsel %vm3254, %v4747, %v4085
      %v4780 = vsel %vm3254, %v4748, %v4087
      %v4781 = vsel %vm3254, %v4749, %v4089
      %v4782 = vsel %vm3254, %v4750, %v4091
      %v4783 = vsel %vm3254, %v4751, %v4093
      %v4784 = vsel %vm3254, %v4752, %v4095
      %v4785 = vsel %vm3254, %v4753, %v4097
      %v4786 = vsel %vm3254, %v4754, %v4099
      %v4787 = vsel %vm3254, %v4755, %v4101
      %v4788 = vsel %vm3254, %v4756, %v4103
      %v4789 = vsel %vm3254, %v4757, %v4105
      %v4790 = vsel %vm3254, %v4758, %v4107
      %v4791 = vsel %vm3254, %v4759, %v4109
      %v4792 = vsel %vm3254, %v4760, %v4111
      %v4793 = vsel %vm3254, %v4761, %v4113
      %v4794 = vsel %vm3254, %v4762, %v4115
      %v4795 = vsel %vm3254, %v4763, %v4117
      %v4796 = vsel %vm3254, %v4764, %v4119
      %v4797 = vsel %vm3254, %v4765, %v4121
      %v4798 = vsel %vm3254, %v4766, %v4123
      %v4799 = vsel %vm3254, %v4767, %v4125
      %v4800 = vsel %vm3254, %v4768, %v4127
      %v4801 = vsel %vm3254, %v4769, %v4129
      %v4802 = vsel %vm3287, %v4770, %v4195
      %v4803 = vsel %vm3287, %v4771, %v4197
      %v4804 = vsel %vm3287, %v4772, %v4199
      %v4805 = vsel %vm3287, %v4773, %v4201
      %v4806 = vsel %vm3287, %v4774, %v4203
      %v4807 = vsel %vm3287, %v4775, %v4205
      %v4808 = vsel %vm3287, %v4776, %v4207
      %v4809 = vsel %vm3287, %v4777, %v4209
      %v4810 = vsel %vm3287, %v4778, %v4211
      %v4811 = vsel %vm3287, %v4779, %v4213
      %v4812 = vsel %vm3287, %v4780, %v4215
      %v4813 = vsel %vm3287, %v4781, %v4217
      %v4814 = vsel %vm3287, %v4782, %v4219
      %v4815 = vsel %vm3287, %v4783, %v4221
      %v4816 = vsel %vm3287, %v4784, %v4223
      %v4817 = vsel %vm3287, %v4785, %v4225
      %v4818 = vsel %vm3287, %v4786, %v4227
      %v4819 = vsel %vm3287, %v4787, %v4229
      %v4820 = vsel %vm3287, %v4788, %v4231
      %v4821 = vsel %vm3287, %v4789, %v4233
      %v4822 = vsel %vm3287, %v4790, %v4235
      %v4823 = vsel %vm3287, %v4791, %v4237
      %v4824 = vsel %vm3287, %v4792, %v4239
      %v4825 = vsel %vm3287, %v4793, %v4241
      %v4826 = vsel %vm3287, %v4794, %v4243
      %v4827 = vsel %vm3287, %v4795, %v4245
      %v4828 = vsel %vm3287, %v4796, %v4247
      %v4829 = vsel %vm3287, %v4797, %v4249
      %v4830 = vsel %vm3287, %v4798, %v4251
      %v4831 = vsel %vm3287, %v4799, %v4253
      %v4832 = vsel %vm3287, %v4800, %v4255
      %v4833 = vsel %vm3287, %v4801, %v4257
      %v4834 = vsel %vm3320, %v4802, %v4323
      %v4835 = vsel %vm3320, %v4803, %v4325
      %v4836 = vsel %vm3320, %v4804, %v4327
      %v4837 = vsel %vm3320, %v4805, %v4329
      %v4838 = vsel %vm3320, %v4806, %v4331
      %v4839 = vsel %vm3320, %v4807, %v4333
      %v4840 = vsel %vm3320, %v4808, %v4335
      %v4841 = vsel %vm3320, %v4809, %v4337
      %v4842 = vsel %vm3320, %v4810, %v4339
      %v4843 = vsel %vm3320, %v4811, %v4341
      %v4844 = vsel %vm3320, %v4812, %v4343
      %v4845 = vsel %vm3320, %v4813, %v4345
      %v4846 = vsel %vm3320, %v4814, %v4347
      %v4847 = vsel %vm3320, %v4815, %v4349
      %v4848 = vsel %vm3320, %v4816, %v4351
      %v4849 = vsel %vm3320, %v4817, %v4353
      %v4850 = vsel %vm3320, %v4818, %v4355
      %v4851 = vsel %vm3320, %v4819, %v4357
      %v4852 = vsel %vm3320, %v4820, %v4359
      %v4853 = vsel %vm3320, %v4821, %v4361
      %v4854 = vsel %vm3320, %v4822, %v4363
      %v4855 = vsel %vm3320, %v4823, %v4365
      %v4856 = vsel %vm3320, %v4824, %v4367
      %v4857 = vsel %vm3320, %v4825, %v4369
      %v4858 = vsel %vm3320, %v4826, %v4371
      %v4859 = vsel %vm3320, %v4827, %v4373
      %v4860 = vsel %vm3320, %v4828, %v4375
      %v4861 = vsel %vm3320, %v4829, %v4377
      %v4862 = vsel %vm3320, %v4830, %v4379
      %v4863 = vsel %vm3320, %v4831, %v4381
      %v4864 = vsel %vm3320, %v4832, %v4383
      %v4865 = vsel %vm3320, %v4833, %v4385
      %v4866 = vsel %vm3353, %v4834, %v4451
      %v4867 = vsel %vm3353, %v4835, %v4453
      %v4868 = vsel %vm3353, %v4836, %v4455
      %v4869 = vsel %vm3353, %v4837, %v4457
      %v4870 = vsel %vm3353, %v4838, %v4459
      %v4871 = vsel %vm3353, %v4839, %v4461
      %v4872 = vsel %vm3353, %v4840, %v4463
      %v4873 = vsel %vm3353, %v4841, %v4465
      %v4874 = vsel %vm3353, %v4842, %v4467
      %v4875 = vsel %vm3353, %v4843, %v4469
      %v4876 = vsel %vm3353, %v4844, %v4471
      %v4877 = vsel %vm3353, %v4845, %v4473
      %v4878 = vsel %vm3353, %v4846, %v4475
      %v4879 = vsel %vm3353, %v4847, %v4477
      %v4880 = vsel %vm3353, %v4848, %v4479
      %v4881 = vsel %vm3353, %v4849, %v4481
      %v4882 = vsel %vm3353, %v4850, %v4483
      %v4883 = vsel %vm3353, %v4851, %v4485
      %v4884 = vsel %vm3353, %v4852, %v4487
      %v4885 = vsel %vm3353, %v4853, %v4489
      %v4886 = vsel %vm3353, %v4854, %v4491
      %v4887 = vsel %vm3353, %v4855, %v4493
      %v4888 = vsel %vm3353, %v4856, %v4495
      %v4889 = vsel %vm3353, %v4857, %v4497
      %v4890 = vsel %vm3353, %v4858, %v4499
      %v4891 = vsel %vm3353, %v4859, %v4501
      %v4892 = vsel %vm3353, %v4860, %v4503
      %v4893 = vsel %vm3353, %v4861, %v4505
      %v4894 = vsel %vm3353, %v4862, %v4507
      %v4895 = vsel %vm3353, %v4863, %v4509
      %v4896 = vsel %vm3353, %v4864, %v4511
      %v4897 = vsel %vm3353, %v4865, %v4513
      %v4898 = vsel %vm3386, %v4866, %v4579
      %v4899 = vsel %vm3386, %v4867, %v4581
      %v4900 = vsel %vm3386, %v4868, %v4583
      %v4901 = vsel %vm3386, %v4869, %v4585
      %v4902 = vsel %vm3386, %v4870, %v4587
      %v4903 = vsel %vm3386, %v4871, %v4589
      %v4904 = vsel %vm3386, %v4872, %v4591
      %v4905 = vsel %vm3386, %v4873, %v4593
      %v4906 = vsel %vm3386, %v4874, %v4595
      %v4907 = vsel %vm3386, %v4875, %v4597
      %v4908 = vsel %vm3386, %v4876, %v4599
      %v4909 = vsel %vm3386, %v4877, %v4601
      %v4910 = vsel %vm3386, %v4878, %v4603
      %v4911 = vsel %vm3386, %v4879, %v4605
      %v4912 = vsel %vm3386, %v4880, %v4607
      %v4913 = vsel %vm3386, %v4881, %v4609
      %v4914 = vsel %vm3386, %v4882, %v4611
      %v4915 = vsel %vm3386, %v4883, %v4613
      %v4916 = vsel %vm3386, %v4884, %v4615
      %v4917 = vsel %vm3386, %v4885, %v4617
      %v4918 = vsel %vm3386, %v4886, %v4619
      %v4919 = vsel %vm3386, %v4887, %v4621
      %v4920 = vsel %vm3386, %v4888, %v4623
      %v4921 = vsel %vm3386, %v4889, %v4625
      %v4922 = vsel %vm3386, %v4890, %v4627
      %v4923 = vsel %vm3386, %v4891, %v4629
      %v4924 = vsel %vm3386, %v4892, %v4631
      %v4925 = vsel %vm3386, %v4893, %v4633
      %v4926 = vsel %vm3386, %v4894, %v4635
      %v4927 = vsel %vm3386, %v4895, %v4637
      %v4928 = vsel %vm3386, %v4896, %v4639
      %v4929 = vsel %vm3386, %v4897, %v4641
      %4962 = vrot.lane.b32.xlu0 %v4898, 64
      %v4963 = vpop.permute.xlu0 %4962
      %4964 = vrot.lane.b32.xlu0 %v4899, 64
      %v4965 = vpop.permute.xlu0 %4964
      %4966 = vrot.lane.b32.xlu0 %v4900, 64
      %v4967 = vpop.permute.xlu0 %4966
      %4968 = vrot.lane.b32.xlu0 %v4901, 64
      %v4969 = vpop.permute.xlu0 %4968
      %4970 = vrot.lane.b32.xlu0 %v4902, 64
      %v4971 = vpop.permute.xlu0 %4970
      %4972 = vrot.lane.b32.xlu0 %v4903, 64
      %v4973 = vpop.permute.xlu0 %4972
      %4974 = vrot.lane.b32.xlu0 %v4904, 64
      %v4975 = vpop.permute.xlu0 %4974
      %4976 = vrot.lane.b32.xlu0 %v4905, 64
      %v4977 = vpop.permute.xlu0 %4976
      %4978 = vrot.lane.b32.xlu0 %v4906, 64
      %v4979 = vpop.permute.xlu0 %4978
      %4980 = vrot.lane.b32.xlu0 %v4907, 64
      %v4981 = vpop.permute.xlu0 %4980
      %4982 = vrot.lane.b32.xlu0 %v4908, 64
      %v4983 = vpop.permute.xlu0 %4982
      %4984 = vrot.lane.b32.xlu0 %v4909, 64
      %v4985 = vpop.permute.xlu0 %4984
      %4986 = vrot.lane.b32.xlu0 %v4910, 64
      %v4987 = vpop.permute.xlu0 %4986
      %4988 = vrot.lane.b32.xlu0 %v4911, 64
      %v4989 = vpop.permute.xlu0 %4988
      %4990 = vrot.lane.b32.xlu0 %v4912, 64
      %v4991 = vpop.permute.xlu0 %4990
      %4992 = vrot.lane.b32.xlu0 %v4913, 64
      %v4993 = vpop.permute.xlu0 %4992
      %4994 = vrot.lane.b32.xlu0 %v4914, 64
      %v4995 = vpop.permute.xlu0 %4994
      %4996 = vrot.lane.b32.xlu0 %v4915, 64
      %v4997 = vpop.permute.xlu0 %4996
      %4998 = vrot.lane.b32.xlu0 %v4916, 64
      %v4999 = vpop.permute.xlu0 %4998
      %5000 = vrot.lane.b32.xlu0 %v4917, 64
      %v5001 = vpop.permute.xlu0 %5000
      %5002 = vrot.lane.b32.xlu0 %v4918, 64
      %v5003 = vpop.permute.xlu0 %5002
      %5004 = vrot.lane.b32.xlu0 %v4919, 64
      %v5005 = vpop.permute.xlu0 %5004
      %5006 = vrot.lane.b32.xlu0 %v4920, 64
      %v5007 = vpop.permute.xlu0 %5006
      %5008 = vrot.lane.b32.xlu0 %v4921, 64
      %v5009 = vpop.permute.xlu0 %5008
      %5010 = vrot.lane.b32.xlu0 %v4922, 64
      %v5011 = vpop.permute.xlu0 %5010
      %5012 = vrot.lane.b32.xlu0 %v4923, 64
      %v5013 = vpop.permute.xlu0 %5012
      %5014 = vrot.lane.b32.xlu0 %v4924, 64
      %v5015 = vpop.permute.xlu0 %5014
      %5016 = vrot.lane.b32.xlu0 %v4925, 64
      %v5017 = vpop.permute.xlu0 %5016
      %5018 = vrot.lane.b32.xlu0 %v4926, 64
      %v5019 = vpop.permute.xlu0 %5018
      %5020 = vrot.lane.b32.xlu0 %v4927, 64
      %v5021 = vpop.permute.xlu0 %5020
      %5022 = vrot.lane.b32.xlu0 %v4928, 64
      %v5023 = vpop.permute.xlu0 %5022
      %5024 = vrot.lane.b32.xlu0 %v4929, 64
      %v5025 = vpop.permute.xlu0 %5024
      %vm5058 = vcmask 523264
      %v5059 = vsel %vm5058, %v3618, %v4963
      %v5060 = vsel %vm5058, %v3619, %v4965
      %v5061 = vsel %vm5058, %v3620, %v4967
      %v5062 = vsel %vm5058, %v3621, %v4969
      %v5063 = vsel %vm5058, %v3622, %v4971
      %v5064 = vsel %vm5058, %v3623, %v4973
      %v5065 = vsel %vm5058, %v3624, %v4975
      %v5066 = vsel %vm5058, %v3625, %v4977
      %v5067 = vsel %vm5058, %v3626, %v4979
      %v5068 = vsel %vm5058, %v3627, %v4981
      %v5069 = vsel %vm5058, %v3628, %v4983
      %v5070 = vsel %vm5058, %v3629, %v4985
      %v5071 = vsel %vm5058, %v3630, %v4987
      %v5072 = vsel %vm5058, %v3631, %v4989
      %v5073 = vsel %vm5058, %v3632, %v4991
      %v5074 = vsel %vm5058, %v3633, %v4993
      %v5075 = vsel %vm5058, %v3634, %v4995
      %v5076 = vsel %vm5058, %v3635, %v4997
      %v5077 = vsel %vm5058, %v3636, %v4999
      %v5078 = vsel %vm5058, %v3637, %v5001
      %v5079 = vsel %vm5058, %v3638, %v5003
      %v5080 = vsel %vm5058, %v3639, %v5005
      %v5081 = vsel %vm5058, %v3640, %v5007
      %v5082 = vsel %vm5058, %v3641, %v5009
      %v5083 = vsel %vm5058, %v3642, %v5011
      %v5084 = vsel %vm5058, %v3643, %v5013
      %v5085 = vsel %vm5058, %v3644, %v5015
      %v5086 = vsel %vm5058, %v3645, %v5017
      %v5087 = vsel %vm5058, %v3646, %v5019
      %v5088 = vsel %vm5058, %v3647, %v5021
      %v5089 = vsel %vm5058, %v3648, %v5023
      %v5090 = vsel %vm5058, %v3649, %v5025
      %v5091 = vld [vmem:[%s1] sm:$0xff]
      %v5092 = vld [vmem:[%s1 + $0x8] sm:$0xff]
      %v5093 = vld [vmem:[%s1 + $0x10] sm:$0xff]
      %v5094 = vld [vmem:[%s1 + $0x18] sm:$0xff]
      %v5095 = vld [vmem:[%s1 + $0x20] sm:$0xff]
      %v5096 = vld [vmem:[%s1 + $0x28] sm:$0xff]
      %v5097 = vld [vmem:[%s1 + $0x30] sm:$0xff]
      %v5098 = vld [vmem:[%s1 + $0x38] sm:$0xff]
      %v5099 = vld [vmem:[%s1 + $0x40] sm:$0xff]
      %v5100 = vld [vmem:[%s1 + $0x48] sm:$0xff]
      %v5101 = vld [vmem:[%s1 + $0x50] sm:$0xff]
      %v5102 = vld [vmem:[%s1 + $0x58] sm:$0xff]
      %v5103 = vld [vmem:[%s1 + $0x60] sm:$0xf]
      %vm5104 = vcmask 818176
      %v5106 = vsel %vm5104, %v5059, 0
      %v5109 = vsel %vm5104, %v5060, 0
      %v5112 = vsel %vm5104, %v5061, 0
      %v5115 = vsel %vm5104, %v5062, 0
      %v5118 = vsel %vm5104, %v5063, 0
      %v5121 = vsel %vm5104, %v5064, 0
      %v5124 = vsel %vm5104, %v5065, 0
      %v5127 = vsel %vm5104, %v5066, 0
      %v5130 = vsel %vm5104, %v5067, 0
      %v5133 = vsel %vm5104, %v5068, 0
      %v5136 = vsel %vm5104, %v5069, 0
      %v5139 = vsel %vm5104, %v5070, 0
      %v5142 = vsel %vm5104, %v5071, 0
      %v5145 = vsel %vm5104, %v5072, 0
      %v5148 = vsel %vm5104, %v5073, 0
      %v5151 = vsel %vm5104, %v5074, 0
      %v5154 = vsel %vm5104, %v5075, 0
      %v5157 = vsel %vm5104, %v5076, 0
      %v5160 = vsel %vm5104, %v5077, 0
      %v5163 = vsel %vm5104, %v5078, 0
      %v5166 = vsel %vm5104, %v5079, 0
      %v5169 = vsel %vm5104, %v5080, 0
      %v5172 = vsel %vm5104, %v5081, 0
      %v5175 = vsel %vm5104, %v5082, 0
      %v5178 = vsel %vm5104, %v5083, 0
      %v5181 = vsel %vm5104, %v5084, 0
      %v5184 = vsel %vm5104, %v5085, 0
      %v5187 = vsel %vm5104, %v5086, 0
      %v5190 = vsel %vm5104, %v5087, 0
      %v5193 = vsel %vm5104, %v5088, 0
      %v5196 = vsel %vm5104, %v5089, 0
      %v5199 = vsel %vm5104, %v5090, 0
      %vm5201 = vcmask 1043456
      %v5203 = vsel %vm5201, %v5103, 0
      %5205 = vmatprep.subr.mxu0 0.0
      %5206 = vmatpush1.msra.mxu0 %v5091
      %5207 = vmatprep.subr.mxu0 0.0
      %5208 = vmatpush1.msra.mxu0 %v5092
      %5209 = vmatprep.subr.mxu0 0.0
      %5210 = vmatpush1.msra.mxu0 %v5093
      %5211 = vmatprep.subr.mxu0 0.0
      %5212 = vmatpush1.msra.mxu0 %v5094
      %5213 = vmatprep.subr.mxu0 0.0
      %5214 = vmatpush1.msra.mxu0 %v5095
      %5215 = vmatprep.subr.mxu0 0.0
      %5216 = vmatpush1.msra.mxu0 %v5096
      %5217 = vmatprep.subr.mxu0 0.0
      %5218 = vmatpush1.msra.mxu0 %v5097
      %5219 = vmatprep.subr.mxu0 0.0
      %5220 = vmatpush1.msra.mxu0 %v5098
      %5221 = vmatprep.subr.mxu0 0.0
      %5222 = vmatpush1.msra.mxu0 %v5099
      %5223 = vmatprep.subr.mxu0 0.0
      %5224 = vmatpush1.msra.mxu0 %v5100
      %5225 = vmatprep.subr.mxu0 0.0
      %5226 = vmatpush1.msra.mxu0 %v5101
      %5227 = vmatprep.subr.mxu0 0.0
      %5228 = vmatpush1.msra.mxu0 %v5102
      %5229 = vmatprep.subr.mxu0 0.0
      %5230 = vmatpush1.msra.mxu0 %v5203
      %5231 = vmatprep.subr.mxu0 0.0
      %5232 = vmatpush1.msra.mxu0 0.0
      %5233 = vmatprep.subr.mxu0 0.0
      %5234 = vmatpush1.msra.mxu0 0.0
      %5235 = vmatprep.subr.mxu0 0.0
      %5236 = vmatpush1.msra.mxu0 0.0
      %5237 = vmatprep.subr.mxu0 0.0
      %5238 = vmatpush1.msra.mxu0 0.0
      %5239 = vmatprep.subr.mxu0 0.0
      %5240 = vmatpush1.msra.mxu0 0.0
      %5241 = vmatprep.subr.mxu0 0.0
      %5242 = vmatpush1.msra.mxu0 0.0
      %5243 = vmatprep.subr.mxu0 0.0
      %5244 = vmatpush1.msra.mxu0 0.0
      %5245 = vmatprep.subr.mxu0 0.0
      %5246 = vmatpush1.msra.mxu0 0.0
      %5247 = vmatprep.subr.mxu0 0.0
      %5248 = vmatpush1.msra.mxu0 0.0
      %5249 = vmatprep.subr.mxu0 0.0
      %5250 = vmatpush1.msra.mxu0 0.0
      %5251 = vmatprep.subr.mxu0 0.0
      %5252 = vmatpush1.msra.mxu0 0.0
      %5253 = vmatprep.subr.mxu0 0.0
      %5254 = vmatpush1.msra.mxu0 0.0
      %5255 = vmatprep.subr.mxu0 0.0
      %5256 = vmatpush1.msra.mxu0 0.0
      %5257 = vmatprep.subr.mxu0 0.0
      %5258 = vmatpush1.msra.mxu0 0.0
      %5259 = vmatprep.subr.mxu0 0.0
      %5260 = vmatpush1.msra.mxu0 0.0
      %5261 = vmatprep.subr.mxu0 0.0
      %5262 = vmatpush1.msra.mxu0 0.0
      %5263 = vmatprep.subr.mxu0 0.0
      %5264 = vmatpush1.msra.mxu0 0.0
      %5265 = vmatprep.subr.mxu0 0.0
      %5266 = vmatpush1.msra.mxu0 0.0
      %5267 = vmatprep.subr.mxu0 0.0
      %5268 = vmatpush1.msra.mxu0 0.0
      %5269 = vmatprep.mubr.f32.mxu0 0.0
      %5270 = vmatmul.mubr.f32.gmra.mrb[0].mxu0 %v5106
      %v5271 = vpop.f32.mrb[0].mxu0
      %v5272 = vadd.f32 0.0, %v5271
      %v5273 = vpop.f32.mrb[0].mxu0
      %5274 = vmatprep.mubr.f32.mxu0 0.0
      %5275 = vmatmul.mubr.f32.gmra.mrb[0].mxu0 %v5109
      %v5276 = vpop.f32.mrb[0].mxu0
      %v5277 = vadd.f32 0.0, %v5276
      %v5278 = vpop.f32.mrb[0].mxu0
      %5279 = vmatprep.mubr.f32.mxu0 0.0
      %5280 = vmatmul.mubr.f32.gmra.mrb[0].mxu0 %v5112
      %v5281 = vpop.f32.mrb[0].mxu0
      %v5282 = vadd.f32 0.0, %v5281
      %v5283 = vpop.f32.mrb[0].mxu0
      %5284 = vmatprep.mubr.f32.mxu0 0.0
      %5285 = vmatmul.mubr.f32.gmra.mrb[0].mxu0 %v5115
      %v5286 = vpop.f32.mrb[0].mxu0
      %v5287 = vadd.f32 0.0, %v5286
      %v5288 = vpop.f32.mrb[0].mxu0
      %5289 = vmatprep.mubr.f32.mxu0 0.0
      %5290 = vmatmul.mubr.f32.gmra.mrb[0].mxu0 %v5118
      %v5291 = vpop.f32.mrb[0].mxu0
      %v5292 = vadd.f32 0.0, %v5291
      %v5293 = vpop.f32.mrb[0].mxu0
      %5294 = vmatprep.mubr.f32.mxu0 0.0
      %5295 = vmatmul.mubr.f32.gmra.mrb[0].mxu0 %v5121
      %v5296 = vpop.f32.mrb[0].mxu0
      %v5297 = vadd.f32 0.0, %v5296
      %v5298 = vpop.f32.mrb[0].mxu0
      %5299 = vmatprep.mubr.f32.mxu0 0.0
      %5300 = vmatmul.mubr.f32.gmra.mrb[0].mxu0 %v5124
      %v5301 = vpop.f32.mrb[0].mxu0
      %v5302 = vadd.f32 0.0, %v5301
      %v5303 = vpop.f32.mrb[0].mxu0
      %5304 = vmatprep.mubr.f32.mxu0 0.0
      %5305 = vmatmul.mubr.f32.gmra.mrb[0].mxu0 %v5127
      %v5306 = vpop.f32.mrb[0].mxu0
      %v5307 = vadd.f32 0.0, %v5306
      %v5308 = vpop.f32.mrb[0].mxu0
      %5309 = vmatprep.mubr.f32.mxu0 0.0
      %5310 = vmatmul.mubr.f32.gmra.mrb[0].mxu0 %v5130
      %v5311 = vpop.f32.mrb[0].mxu0
      %v5312 = vadd.f32 0.0, %v5311
      %v5313 = vpop.f32.mrb[0].mxu0
      %5314 = vmatprep.mubr.f32.mxu0 0.0
      %5315 = vmatmul.mubr.f32.gmra.mrb[0].mxu0 %v5133
      %v5316 = vpop.f32.mrb[0].mxu0
      %v5317 = vadd.f32 0.0, %v5316
      %v5318 = vpop.f32.mrb[0].mxu0
      %5319 = vmatprep.mubr.f32.mxu0 0.0
      %5320 = vmatmul.mubr.f32.gmra.mrb[0].mxu0 %v5136
      %v5321 = vpop.f32.mrb[0].mxu0
      %v5322 = vadd.f32 0.0, %v5321
      %v5323 = vpop.f32.mrb[0].mxu0
      %5324 = vmatprep.mubr.f32.mxu0 0.0
      %5325 = vmatmul.mubr.f32.gmra.mrb[0].mxu0 %v5139
      %v5326 = vpop.f32.mrb[0].mxu0
      %v5327 = vadd.f32 0.0, %v5326
      %v5328 = vpop.f32.mrb[0].mxu0
      %5329 = vmatprep.mubr.f32.mxu0 0.0
      %5330 = vmatmul.mubr.f32.gmra.mrb[0].mxu0 %v5142
      %v5331 = vpop.f32.mrb[0].mxu0
      %v5332 = vadd.f32 0.0, %v5331
      %v5333 = vpop.f32.mrb[0].mxu0
      %5334 = vmatprep.mubr.f32.mxu0 0.0
      %5335 = vmatmul.mubr.f32.gmra.mrb[0].mxu0 %v5145
      %v5336 = vpop.f32.mrb[0].mxu0
      %v5337 = vadd.f32 0.0, %v5336
      %v5338 = vpop.f32.mrb[0].mxu0
      %5339 = vmatprep.mubr.f32.mxu0 0.0
      %5340 = vmatmul.mubr.f32.gmra.mrb[0].mxu0 %v5148
      %v5341 = vpop.f32.mrb[0].mxu0
      %v5342 = vadd.f32 0.0, %v5341
      %v5343 = vpop.f32.mrb[0].mxu0
      %5344 = vmatprep.mubr.f32.mxu0 0.0
      %5345 = vmatmul.mubr.f32.gmra.mrb[0].mxu0 %v5151
      %v5346 = vpop.f32.mrb[0].mxu0
      %v5347 = vadd.f32 0.0, %v5346
      %v5348 = vpop.f32.mrb[0].mxu0
      %5349 = vmatprep.mubr.f32.mxu0 0.0
      %5350 = vmatmul.mubr.f32.gmra.mrb[0].mxu0 %v5154
      %v5351 = vpop.f32.mrb[0].mxu0
      %v5352 = vadd.f32 0.0, %v5351
      %v5353 = vpop.f32.mrb[0].mxu0
      %5354 = vmatprep.mubr.f32.mxu0 0.0
      %5355 = vmatmul.mubr.f32.gmra.mrb[0].mxu0 %v5157
      %v5356 = vpop.f32.mrb[0].mxu0
      %v5357 = vadd.f32 0.0, %v5356
      %v5358 = vpop.f32.mrb[0].mxu0
      %5359 = vmatprep.mubr.f32.mxu0 0.0
      %5360 = vmatmul.mubr.f32.gmra.mrb[0].mxu0 %v5160
      %v5361 = vpop.f32.mrb[0].mxu0
      %v5362 = vadd.f32 0.0, %v5361
      %v5363 = vpop.f32.mrb[0].mxu0
      %5364 = vmatprep.mubr.f32.mxu0 0.0
      %5365 = vmatmul.mubr.f32.gmra.mrb[0].mxu0 %v5163
      %v5366 = vpop.f32.mrb[0].mxu0
      %v5367 = vadd.f32 0.0, %v5366
      %v5368 = vpop.f32.mrb[0].mxu0
      %5369 = vmatprep.mubr.f32.mxu0 0.0
      %5370 = vmatmul.mubr.f32.gmra.mrb[0].mxu0 %v5166
      %v5371 = vpop.f32.mrb[0].mxu0
      %v5372 = vadd.f32 0.0, %v5371
      %v5373 = vpop.f32.mrb[0].mxu0
      %5374 = vmatprep.mubr.f32.mxu0 0.0
      %5375 = vmatmul.mubr.f32.gmra.mrb[0].mxu0 %v5169
      %v5376 = vpop.f32.mrb[0].mxu0
      %v5377 = vadd.f32 0.0, %v5376
      %v5378 = vpop.f32.mrb[0].mxu0
      %5379 = vmatprep.mubr.f32.mxu0 0.0
      %5380 = vmatmul.mubr.f32.gmra.mrb[0].mxu0 %v5172
      %v5381 = vpop.f32.mrb[0].mxu0
      %v5382 = vadd.f32 0.0, %v5381
      %v5383 = vpop.f32.mrb[0].mxu0
      %5384 = vmatprep.mubr.f32.mxu0 0.0
      %5385 = vmatmul.mubr.f32.gmra.mrb[0].mxu0 %v5175
      %v5386 = vpop.f32.mrb[0].mxu0
      %v5387 = vadd.f32 0.0, %v5386
      %v5388 = vpop.f32.mrb[0].mxu0
      %5389 = vmatprep.mubr.f32.mxu0 0.0
      %5390 = vmatmul.mubr.f32.gmra.mrb[0].mxu0 %v5178
      %v5391 = vpop.f32.mrb[0].mxu0
      %v5392 = vadd.f32 0.0, %v5391
      %v5393 = vpop.f32.mrb[0].mxu0
      %5394 = vmatprep.mubr.f32.mxu0 0.0
      %5395 = vmatmul.mubr.f32.gmra.mrb[0].mxu0 %v5181
      %v5396 = vpop.f32.mrb[0].mxu0
      %v5397 = vadd.f32 0.0, %v5396
      %v5398 = vpop.f32.mrb[0].mxu0
      %5399 = vmatprep.mubr.f32.mxu0 0.0
      %5400 = vmatmul.mubr.f32.gmra.mrb[0].mxu0 %v5184
      %v5401 = vpop.f32.mrb[0].mxu0
      %v5402 = vadd.f32 0.0, %v5401
      %v5403 = vpop.f32.mrb[0].mxu0
      %5404 = vmatprep.mubr.f32.mxu0 0.0
      %5405 = vmatmul.mubr.f32.gmra.mrb[0].mxu0 %v5187
      %v5406 = vpop.f32.mrb[0].mxu0
      %v5407 = vadd.f32 0.0, %v5406
      %v5408 = vpop.f32.mrb[0].mxu0
      %5409 = vmatprep.mubr.f32.mxu0 0.0
      %5410 = vmatmul.mubr.f32.gmra.mrb[0].mxu0 %v5190
      %v5411 = vpop.f32.mrb[0].mxu0
      %v5412 = vadd.f32 0.0, %v5411
      %v5413 = vpop.f32.mrb[0].mxu0
      %5414 = vmatprep.mubr.f32.mxu0 0.0
      %5415 = vmatmul.mubr.f32.gmra.mrb[0].mxu0 %v5193
      %v5416 = vpop.f32.mrb[0].mxu0
      %v5417 = vadd.f32 0.0, %v5416
      %v5418 = vpop.f32.mrb[0].mxu0
      %5419 = vmatprep.mubr.f32.mxu0 0.0
      %5420 = vmatmul.mubr.f32.gmra.mrb[0].mxu0 %v5196
      %v5421 = vpop.f32.mrb[0].mxu0
      %v5422 = vadd.f32 0.0, %v5421
      %v5423 = vpop.f32.mrb[0].mxu0
      %5424 = vmatprep.mubr.f32.mxu0 0.0
      %5425 = vmatmul.mubr.f32.gmra.mrb[0].mxu0 %v5199
      %v5426 = vpop.f32.mrb[0].mxu0
      %v5427 = vadd.f32 0.0, %v5426
      %v5428 = vpop.f32.mrb[0].mxu0
      %5429 = vdwg.mxu0
      %v5430 = vld [vmem:[%s2] sm:$0x1]
      %v5432 = vlaneseq
      %v5433 = vshrl.u32 %v5432, 7
      %v5434 = vsub.s32 0, %v5433
      %v5435 = vrot.slane %v5430, %v5434
      %v5437 = vmul.f32 %v5272, %v5435
      %v5438 = vmul.f32 %v5277, %v5435
      %v5439 = vmul.f32 %v5282, %v5435
      %v5440 = vmul.f32 %v5287, %v5435
      %v5441 = vmul.f32 %v5292, %v5435
      %v5442 = vmul.f32 %v5297, %v5435
      %v5443 = vmul.f32 %v5302, %v5435
      %v5444 = vmul.f32 %v5307, %v5435
      %v5445 = vmul.f32 %v5312, %v5435
      %v5446 = vmul.f32 %v5317, %v5435
      %v5447 = vmul.f32 %v5322, %v5435
      %v5448 = vmul.f32 %v5327, %v5435
      %v5449 = vmul.f32 %v5332, %v5435
      %v5450 = vmul.f32 %v5337, %v5435
      %v5451 = vmul.f32 %v5342, %v5435
      %v5452 = vmul.f32 %v5347, %v5435
      %v5453 = vmul.f32 %v5352, %v5435
      %v5454 = vmul.f32 %v5357, %v5435
      %v5455 = vmul.f32 %v5362, %v5435
      %v5456 = vmul.f32 %v5367, %v5435
      %v5457 = vmul.f32 %v5372, %v5435
      %v5458 = vmul.f32 %v5377, %v5435
      %v5459 = vmul.f32 %v5382, %v5435
      %v5460 = vmul.f32 %v5387, %v5435
      %v5461 = vmul.f32 %v5392, %v5435
      %v5462 = vmul.f32 %v5397, %v5435
      %v5463 = vmul.f32 %v5402, %v5435
      %v5464 = vmul.f32 %v5407, %v5435
      %v5465 = vmul.f32 %v5412, %v5435
      %v5466 = vmul.f32 %v5417, %v5435
      %v5467 = vmul.f32 %v5422, %v5435
      %v5468 = vmul.f32 %v5427, %v5435
      %v5469 = vld [vmem:[%s3] sm:$0x1]
      %v5471 = vlaneseq
      %v5472 = vshrl.u32 %v5471, 7
      %v5473 = vsub.s32 0, %v5472
      %v5474 = vrot.slane %v5469, %v5473
      %v5476 = vadd.f32 %v5437, %v5474
      %v5477 = vadd.f32 %v5438, %v5474
      %v5478 = vadd.f32 %v5439, %v5474
      %v5479 = vadd.f32 %v5440, %v5474
      %v5480 = vadd.f32 %v5441, %v5474
      %v5481 = vadd.f32 %v5442, %v5474
      %v5482 = vadd.f32 %v5443, %v5474
      %v5483 = vadd.f32 %v5444, %v5474
      %v5484 = vadd.f32 %v5445, %v5474
      %v5485 = vadd.f32 %v5446, %v5474
      %v5486 = vadd.f32 %v5447, %v5474
      %v5487 = vadd.f32 %v5448, %v5474
      %v5488 = vadd.f32 %v5449, %v5474
      %v5489 = vadd.f32 %v5450, %v5474
      %v5490 = vadd.f32 %v5451, %v5474
      %v5491 = vadd.f32 %v5452, %v5474
      %v5492 = vadd.f32 %v5453, %v5474
      %v5493 = vadd.f32 %v5454, %v5474
      %v5494 = vadd.f32 %v5455, %v5474
      %v5495 = vadd.f32 %v5456, %v5474
      %v5496 = vadd.f32 %v5457, %v5474
      %v5497 = vadd.f32 %v5458, %v5474
      %v5498 = vadd.f32 %v5459, %v5474
      %v5499 = vadd.f32 %v5460, %v5474
      %v5500 = vadd.f32 %v5461, %v5474
      %v5501 = vadd.f32 %v5462, %v5474
      %v5502 = vadd.f32 %v5463, %v5474
      %v5503 = vadd.f32 %v5464, %v5474
      %v5504 = vadd.f32 %v5465, %v5474
      %v5505 = vadd.f32 %v5466, %v5474
      %v5506 = vadd.f32 %v5467, %v5474
      %v5507 = vadd.f32 %v5468, %v5474
      %v5508 = vmax.f32 %v5476, 0.0
      %v5509 = vmax.f32 %v5477, 0.0
      %v5510 = vmax.f32 %v5478, 0.0
      %v5511 = vmax.f32 %v5479, 0.0
      %v5512 = vmax.f32 %v5480, 0.0
      %v5513 = vmax.f32 %v5481, 0.0
      %v5514 = vmax.f32 %v5482, 0.0
      %v5515 = vmax.f32 %v5483, 0.0
      %v5516 = vmax.f32 %v5484, 0.0
      %v5517 = vmax.f32 %v5485, 0.0
      %v5518 = vmax.f32 %v5486, 0.0
      %v5519 = vmax.f32 %v5487, 0.0
      %v5520 = vmax.f32 %v5488, 0.0
      %v5521 = vmax.f32 %v5489, 0.0
      %v5522 = vmax.f32 %v5490, 0.0
      %v5523 = vmax.f32 %v5491, 0.0
      %v5524 = vmax.f32 %v5492, 0.0
      %v5525 = vmax.f32 %v5493, 0.0
      %v5526 = vmax.f32 %v5494, 0.0
      %v5527 = vmax.f32 %v5495, 0.0
      %v5528 = vmax.f32 %v5496, 0.0
      %v5529 = vmax.f32 %v5497, 0.0
      %v5530 = vmax.f32 %v5498, 0.0
      %v5531 = vmax.f32 %v5499, 0.0
      %v5532 = vmax.f32 %v5500, 0.0
      %v5533 = vmax.f32 %v5501, 0.0
      %v5534 = vmax.f32 %v5502, 0.0
      %v5535 = vmax.f32 %v5503, 0.0
      %v5536 = vmax.f32 %v5504, 0.0
      %v5537 = vmax.f32 %v5505, 0.0
      %v5538 = vmax.f32 %v5506, 0.0
      %v5539 = vmax.f32 %v5507, 0.0
      %5572 = vrot.lane.b32.xlu0 %v5508, 124
      %v5573 = vpop.permute.xlu0 %5572
      %5574 = vrot.lane.b32.xlu0 %v5509, 124
      %v5575 = vpop.permute.xlu0 %5574
      %5576 = vrot.lane.b32.xlu0 %v5510, 124
      %v5577 = vpop.permute.xlu0 %5576
      %5578 = vrot.lane.b32.xlu0 %v5511, 124
      %v5579 = vpop.permute.xlu0 %5578
      %5580 = vrot.lane.b32.xlu0 %v5512, 124
      %v5581 = vpop.permute.xlu0 %5580
      %5582 = vrot.lane.b32.xlu0 %v5513, 124
      %v5583 = vpop.permute.xlu0 %5582
      %5584 = vrot.lane.b32.xlu0 %v5514, 124
      %v5585 = vpop.permute.xlu0 %5584
      %5586 = vrot.lane.b32.xlu0 %v5515, 124
      %v5587 = vpop.permute.xlu0 %5586
      %5588 = vrot.lane.b32.xlu0 %v5516, 124
      %v5589 = vpop.permute.xlu0 %5588
      %5590 = vrot.lane.b32.xlu0 %v5517, 124
      %v5591 = vpop.permute.xlu0 %5590
      %5592 = vrot.lane.b32.xlu0 %v5518, 124
      %v5593 = vpop.permute.xlu0 %5592
      %5594 = vrot.lane.b32.xlu0 %v5519, 124
      %v5595 = vpop.permute.xlu0 %5594
      %5596 = vrot.lane.b32.xlu0 %v5520, 124
      %v5597 = vpop.permute.xlu0 %5596
      %5598 = vrot.lane.b32.xlu0 %v5521, 124
      %v5599 = vpop.permute.xlu0 %5598
      %5600 = vrot.lane.b32.xlu0 %v5522, 124
      %v5601 = vpop.permute.xlu0 %5600
      %5602 = vrot.lane.b32.xlu0 %v5523, 124
      %v5603 = vpop.permute.xlu0 %5602
      %5604 = vrot.lane.b32.xlu0 %v5524, 124
      %v5605 = vpop.permute.xlu0 %5604
      %5606 = vrot.lane.b32.xlu0 %v5525, 124
      %v5607 = vpop.permute.xlu0 %5606
      %5608 = vrot.lane.b32.xlu0 %v5526, 124
      %v5609 = vpop.permute.xlu0 %5608
      %5610 = vrot.lane.b32.xlu0 %v5527, 124
      %v5611 = vpop.permute.xlu0 %5610
      %5612 = vrot.lane.b32.xlu0 %v5528, 124
      %v5613 = vpop.permute.xlu0 %5612
      %5614 = vrot.lane.b32.xlu0 %v5529, 124
      %v5615 = vpop.permute.xlu0 %5614
      %5616 = vrot.lane.b32.xlu0 %v5530, 124
      %v5617 = vpop.permute.xlu0 %5616
      %5618 = vrot.lane.b32.xlu0 %v5531, 124
      %v5619 = vpop.permute.xlu0 %5618
      %5620 = vrot.lane.b32.xlu0 %v5532, 124
      %v5621 = vpop.permute.xlu0 %5620
      %5622 = vrot.lane.b32.xlu0 %v5533, 124
      %v5623 = vpop.permute.xlu0 %5622
      %5624 = vrot.lane.b32.xlu0 %v5534, 124
      %v5625 = vpop.permute.xlu0 %5624
      %5626 = vrot.lane.b32.xlu0 %v5535, 124
      %v5627 = vpop.permute.xlu0 %5626
      %5628 = vrot.lane.b32.xlu0 %v5536, 124
      %v5629 = vpop.permute.xlu0 %5628
      %5630 = vrot.lane.b32.xlu0 %v5537, 124
      %v5631 = vpop.permute.xlu0 %5630
      %5632 = vrot.lane.b32.xlu0 %v5538, 124
      %v5633 = vpop.permute.xlu0 %5632
      %5634 = vrot.lane.b32.xlu0 %v5539, 124
      %v5635 = vpop.permute.xlu0 %5634
      %v5668 = vadd.f32 %v5508, %v5573
      %v5669 = vadd.f32 %v5509, %v5575
      %v5670 = vadd.f32 %v5510, %v5577
      %v5671 = vadd.f32 %v5511, %v5579
      %v5672 = vadd.f32 %v5512, %v5581
      %v5673 = vadd.f32 %v5513, %v5583
      %v5674 = vadd.f32 %v5514, %v5585
      %v5675 = vadd.f32 %v5515, %v5587
      %v5676 = vadd.f32 %v5516, %v5589
      %v5677 = vadd.f32 %v5517, %v5591
      %v5678 = vadd.f32 %v5518, %v5593
      %v5679 = vadd.f32 %v5519, %v5595
      %v5680 = vadd.f32 %v5520, %v5597
      %v5681 = vadd.f32 %v5521, %v5599
      %v5682 = vadd.f32 %v5522, %v5601
      %v5683 = vadd.f32 %v5523, %v5603
      %v5684 = vadd.f32 %v5524, %v5605
      %v5685 = vadd.f32 %v5525, %v5607
      %v5686 = vadd.f32 %v5526, %v5609
      %v5687 = vadd.f32 %v5527, %v5611
      %v5688 = vadd.f32 %v5528, %v5613
      %v5689 = vadd.f32 %v5529, %v5615
      %v5690 = vadd.f32 %v5530, %v5617
      %v5691 = vadd.f32 %v5531, %v5619
      %v5692 = vadd.f32 %v5532, %v5621
      %v5693 = vadd.f32 %v5533, %v5623
      %v5694 = vadd.f32 %v5534, %v5625
      %v5695 = vadd.f32 %v5535, %v5627
      %v5696 = vadd.f32 %v5536, %v5629
      %v5697 = vadd.f32 %v5537, %v5631
      %v5698 = vadd.f32 %v5538, %v5633
      %v5699 = vadd.f32 %v5539, %v5635
      %v5700 = vsel %vm306, %v5668, 0.0
      %v5701 = vsel %vm306, %v5669, 0.0
      %v5702 = vadd.f32 %v5700, %v5701
      %v5703 = vsel %vm306, %v5670, 0.0
      %v5704 = vadd.f32 %v5702, %v5703
      %v5705 = vsel %vm306, %v5671, 0.0
      %v5706 = vadd.f32 %v5704, %v5705
      %v5707 = vsel %vm306, %v5672, 0.0
      %v5708 = vadd.f32 %v5706, %v5707
      %v5709 = vsel %vm306, %v5673, 0.0
      %v5710 = vadd.f32 %v5708, %v5709
      %v5711 = vsel %vm306, %v5674, 0.0
      %v5712 = vadd.f32 %v5710, %v5711
      %v5713 = vsel %vm306, %v5675, 0.0
      %v5714 = vadd.f32 %v5712, %v5713
      %v5715 = vsel %vm306, %v5676, 0.0
      %v5716 = vadd.f32 %v5714, %v5715
      %v5717 = vsel %vm306, %v5677, 0.0
      %v5718 = vadd.f32 %v5716, %v5717
      %v5719 = vsel %vm306, %v5678, 0.0
      %v5720 = vadd.f32 %v5718, %v5719
      %v5721 = vsel %vm306, %v5679, 0.0
      %v5722 = vadd.f32 %v5720, %v5721
      %v5723 = vsel %vm306, %v5680, 0.0
      %v5724 = vadd.f32 %v5722, %v5723
      %v5725 = vsel %vm306, %v5681, 0.0
      %v5726 = vadd.f32 %v5724, %v5725
      %v5727 = vsel %vm306, %v5682, 0.0
      %v5728 = vadd.f32 %v5726, %v5727
      %v5729 = vsel %vm306, %v5683, 0.0
      %v5730 = vadd.f32 %v5728, %v5729
      %v5731 = vsel %vm306, %v5684, 0.0
      %v5732 = vadd.f32 %v5730, %v5731
      %v5733 = vsel %vm306, %v5685, 0.0
      %v5734 = vadd.f32 %v5732, %v5733
      %v5735 = vsel %vm306, %v5686, 0.0
      %v5736 = vadd.f32 %v5734, %v5735
      %v5737 = vsel %vm306, %v5687, 0.0
      %v5738 = vadd.f32 %v5736, %v5737
      %v5739 = vsel %vm306, %v5688, 0.0
      %v5740 = vadd.f32 %v5738, %v5739
      %v5741 = vsel %vm306, %v5689, 0.0
      %v5742 = vadd.f32 %v5740, %v5741
      %v5743 = vsel %vm306, %v5690, 0.0
      %v5744 = vadd.f32 %v5742, %v5743
      %v5745 = vsel %vm306, %v5691, 0.0
      %v5746 = vadd.f32 %v5744, %v5745
      %v5747 = vsel %vm306, %v5692, 0.0
      %v5748 = vadd.f32 %v5746, %v5747
      %v5749 = vsel %vm306, %v5693, 0.0
      %v5750 = vadd.f32 %v5748, %v5749
      %v5751 = vsel %vm306, %v5694, 0.0
      %v5752 = vadd.f32 %v5750, %v5751
      %v5753 = vsel %vm306, %v5695, 0.0
      %v5754 = vadd.f32 %v5752, %v5753
      %v5755 = vsel %vm306, %v5696, 0.0
      %v5756 = vadd.f32 %v5754, %v5755
      %v5757 = vsel %vm306, %v5697, 0.0
      %v5758 = vadd.f32 %v5756, %v5757
      %v5759 = vsel %vm306, %v5698, 0.0
      %v5760 = vadd.f32 %v5758, %v5759
      %v5761 = vsel %vm306, %v5699, 0.0
      %v5762 = vadd.f32 %v5760, %v5761
      %v5763 = vrot.slane %v5762, 4
      %v5764 = vadd.f32 %v5762, %v5763
      %v5765 = vrot.slane %v5764, 2
      %v5766 = vadd.f32 %v5764, %v5765
      %v5767 = vrot.slane %v5766, 1
      %v5768 = vadd.f32 %v5766, %v5767
      %v5769 = vrcp.pop 256.0
      %v5770 = vmul.f32 %v5768, %v5769
      %v5771 = vld [vmem:[%s4] sm:$0xf]
      %v5772 = vld [vmem:[%s5] sm:$0x1]
      %v5774 = vsel %vm306, %v5770, 0
      %v5777 = vsel %vm5201, %v5771, 0
      %5779 = vmatprep.subr.mxu0 0.0
      %5780 = vmatpush1.msra.mxu0 %v5777
      %5781 = vmatprep.subr.mxu0 0.0
      %5782 = vmatpush1.msra.mxu0 0.0
      %5783 = vmatprep.subr.mxu0 0.0
      %5784 = vmatpush1.msra.mxu0 0.0
      %5785 = vmatprep.subr.mxu0 0.0
      %5786 = vmatpush1.msra.mxu0 0.0
      %5787 = vmatprep.subr.mxu0 0.0
      %5788 = vmatpush1.msra.mxu0 0.0
      %5789 = vmatprep.subr.mxu0 0.0
      %5790 = vmatpush1.msra.mxu0 0.0
      %5791 = vmatprep.subr.mxu0 0.0
      %5792 = vmatpush1.msra.mxu0 0.0
      %5793 = vmatprep.subr.mxu0 0.0
      %5794 = vmatpush1.msra.mxu0 0.0
      %5795 = vmatprep.subr.mxu0 0.0
      %5796 = vmatpush1.msra.mxu0 0.0
      %5797 = vmatprep.subr.mxu0 0.0
      %5798 = vmatpush1.msra.mxu0 0.0
      %5799 = vmatprep.subr.mxu0 0.0
      %5800 = vmatpush1.msra.mxu0 0.0
      %5801 = vmatprep.subr.mxu0 0.0
      %5802 = vmatpush1.msra.mxu0 0.0
      %5803 = vmatprep.subr.mxu0 0.0
      %5804 = vmatpush1.msra.mxu0 0.0
      %5805 = vmatprep.subr.mxu0 0.0
      %5806 = vmatpush1.msra.mxu0 0.0
      %5807 = vmatprep.subr.mxu0 0.0
      %5808 = vmatpush1.msra.mxu0 0.0
      %5809 = vmatprep.subr.mxu0 0.0
      %5810 = vmatpush1.msra.mxu0 0.0
      %5811 = vmatprep.subr.mxu0 0.0
      %5812 = vmatpush1.msra.mxu0 0.0
      %5813 = vmatprep.subr.mxu0 0.0
      %5814 = vmatpush1.msra.mxu0 0.0
      %5815 = vmatprep.subr.mxu0 0.0
      %5816 = vmatpush1.msra.mxu0 0.0
      %5817 = vmatprep.subr.mxu0 0.0
      %5818 = vmatpush1.msra.mxu0 0.0
      %5819 = vmatprep.subr.mxu0 0.0
      %5820 = vmatpush1.msra.mxu0 0.0
      %5821 = vmatprep.subr.mxu0 0.0
      %5822 = vmatpush1.msra.mxu0 0.0
      %5823 = vmatprep.subr.mxu0 0.0
      %5824 = vmatpush1.msra.mxu0 0.0
      %5825 = vmatprep.subr.mxu0 0.0
      %5826 = vmatpush1.msra.mxu0 0.0
      %5827 = vmatprep.subr.mxu0 0.0
      %5828 = vmatpush1.msra.mxu0 0.0
      %5829 = vmatprep.subr.mxu0 0.0
      %5830 = vmatpush1.msra.mxu0 0.0
      %5831 = vmatprep.subr.mxu0 0.0
      %5832 = vmatpush1.msra.mxu0 0.0
      %5833 = vmatprep.subr.mxu0 0.0
      %5834 = vmatpush1.msra.mxu0 0.0
      %5835 = vmatprep.subr.mxu0 0.0
      %5836 = vmatpush1.msra.mxu0 0.0
      %5837 = vmatprep.subr.mxu0 0.0
      %5838 = vmatpush1.msra.mxu0 0.0
      %5839 = vmatprep.subr.mxu0 0.0
      %5840 = vmatpush1.msra.mxu0 0.0
      %5841 = vmatprep.subr.mxu0 0.0
      %5842 = vmatpush1.msra.mxu0 0.0
      %5843 = vmatprep.mubr.f32.mxu0 0.0
      %5844 = vmatmul.mubr.f32.gmra.mrb[0].mxu0 %v5774
      %v5845 = vpop.f32.mrb[0].mxu0
      %v5846 = vadd.f32 %v5772, %v5845
      %v5847 = vpop.f32.mrb[0].mxu0
      %5848 = vdwg.mxu0
      %v5849 = vld [vmem:[%s6] sm:$0xff]
      %v5850 = vld [vmem:[%s6 + $0x8] sm:$0xff]
      %v5851 = vld [vmem:[%s6 + $0x10] sm:$0xff]
      %v5852 = vld [vmem:[%s6 + $0x18] sm:$0xff]
      %v5853 = vld [vmem:[%s7] sm:$0x1]
      %v5855 = vsel %vm3386, %v5846, 0
      %5857 = vmatprep.subr.mxu0 0.0
      %5858 = vmatpush1.msra.mxu0 %v5849
      %5859 = vmatprep.subr.mxu0 0.0
      %5860 = vmatpush1.msra.mxu0 %v5850
      %5861 = vmatprep.subr.mxu0 0.0
      %5862 = vmatpush1.msra.mxu0 %v5851
      %5863 = vmatprep.subr.mxu0 0.0
      %5864 = vmatpush1.msra.mxu0 %v5852
      %5865 = vmatprep.subr.mxu0 0.0
      %5866 = vmatpush1.msra.mxu0 0.0
      %5867 = vmatprep.subr.mxu0 0.0
      %5868 = vmatpush1.msra.mxu0 0.0
      %5869 = vmatprep.subr.mxu0 0.0
      %5870 = vmatpush1.msra.mxu0 0.0
      %5871 = vmatprep.subr.mxu0 0.0
      %5872 = vmatpush1.msra.mxu0 0.0
      %5873 = vmatprep.subr.mxu0 0.0
      %5874 = vmatpush1.msra.mxu0 0.0
      %5875 = vmatprep.subr.mxu0 0.0
      %5876 = vmatpush1.msra.mxu0 0.0
      %5877 = vmatprep.subr.mxu0 0.0
      %5878 = vmatpush1.msra.mxu0 0.0
      %5879 = vmatprep.subr.mxu0 0.0
      %5880 = vmatpush1.msra.mxu0 0.0
      %5881 = vmatprep.subr.mxu0 0.0
      %5882 = vmatpush1.msra.mxu0 0.0
      %5883 = vmatprep.subr.mxu0 0.0
      %5884 = vmatpush1.msra.mxu0 0.0
      %5885 = vmatprep.subr.mxu0 0.0
      %5886 = vmatpush1.msra.mxu0 0.0
      %5887 = vmatprep.subr.mxu0 0.0
      %5888 = vmatpush1.msra.mxu0 0.0
      %5889 = vmatprep.subr.mxu0 0.0
      %5890 = vmatpush1.msra.mxu0 0.0
      %5891 = vmatprep.subr.mxu0 0.0
      %5892 = vmatpush1.msra.mxu0 0.0
      %5893 = vmatprep.subr.mxu0 0.0
      %5894 = vmatpush1.msra.mxu0 0.0
      %5895 = vmatprep.subr.mxu0 0.0
      %5896 = vmatpush1.msra.mxu0 0.0
      %5897 = vmatprep.subr.mxu0 0.0
      %5898 = vmatpush1.msra.mxu0 0.0
      %5899 = vmatprep.subr.mxu0 0.0
      %5900 = vmatpush1.msra.mxu0 0.0
      %5901 = vmatprep.subr.mxu0 0.0
      %5902 = vmatpush1.msra.mxu0 0.0
      %5903 = vmatprep.subr.mxu0 0.0
      %5904 = vmatpush1.msra.mxu0 0.0
      %5905 = vmatprep.subr.mxu0 0.0
      %5906 = vmatpush1.msra.mxu0 0.0
      %5907 = vmatprep.subr.mxu0 0.0
      %5908 = vmatpush1.msra.mxu0 0.0
      %5909 = vmatprep.subr.mxu0 0.0
      %5910 = vmatpush1.msra.mxu0 0.0
      %5911 = vmatprep.subr.mxu0 0.0
      %5912 = vmatpush1.msra.mxu0 0.0
      %5913 = vmatprep.subr.mxu0 0.0
      %5914 = vmatpush1.msra.mxu0 0.0
      %5915 = vmatprep.subr.mxu0 0.0
      %5916 = vmatpush1.msra.mxu0 0.0
      %5917 = vmatprep.subr.mxu0 0.0
      %5918 = vmatpush1.msra.mxu0 0.0
      %5919 = vmatprep.subr.mxu0 0.0
      %5920 = vmatpush1.msra.mxu0 0.0
      %5921 = vmatprep.mubr.f32.mxu0 0.0
      %5922 = vmatmul.mubr.f32.gmra.mrb[0].mxu0 %v5855
      %v5923 = vpop.f32.mrb[0].mxu0
      %v5924 = vadd.f32 %v5853, %v5923
      %v5925 = vpop.f32.mrb[0].mxu0
      %5926 = vdwg.mxu0
      %5928 = vrot.lane.b32.xlu0 %v5924, 124
      %v5929 = vpop.permute.xlu0 %5928
      %v5931 = vmax.f32 %v5924, %v5929
      %v5932 = vsub.f32 %v5924, %v5931
      %v5933 = vmul.f32 %v5932, 1.442695
      %v5934 = vpow.pop %v5933
      %5936 = vrot.lane.b32.xlu0 %v5931, 4
      %v5937 = vpop.permute.xlu0 %5936
      %v5939 = vsub.f32 %v5924, %v5937
      %v5940 = vmul.f32 %v5939, 1.442695
      %v5941 = vpow.pop %v5940
      %5943 = vrot.lane.b32.xlu0 %v5941, 124
      %v5944 = vpop.permute.xlu0 %5943
      %v5946 = vadd.f32 %v5934, %v5944
      %v5947 = vrcp.pop %v5946
      %v5948 = vmul.f32 1.0, %v5947
      %v5949 = vmul.f32 %v5934, %v5948
      %v5950 = vlaneseq
      %v5951 = vshrl.u32 %v5950, 7
      %v5952 = vsub.s32 0, %v5951
      %v5953 = vrot.slane %v5949, %v5952
      %v5954 = vmul.f32 %v5508, %v5953
      %v5955 = vmul.f32 %v5509, %v5953
      %v5956 = vmul.f32 %v5510, %v5953
      %v5957 = vmul.f32 %v5511, %v5953
      %v5958 = vmul.f32 %v5512, %v5953
      %v5959 = vmul.f32 %v5513, %v5953
      %v5960 = vmul.f32 %v5514, %v5953
      %v5961 = vmul.f32 %v5515, %v5953
      %v5962 = vmul.f32 %v5516, %v5953
      %v5963 = vmul.f32 %v5517, %v5953
      %v5964 = vmul.f32 %v5518, %v5953
      %v5965 = vmul.f32 %v5519, %v5953
      %v5966 = vmul.f32 %v5520, %v5953
      %v5967 = vmul.f32 %v5521, %v5953
      %v5968 = vmul.f32 %v5522, %v5953
      %v5969 = vmul.f32 %v5523, %v5953
      %v5970 = vmul.f32 %v5524, %v5953
      %v5971 = vmul.f32 %v5525, %v5953
      %v5972 = vmul.f32 %v5526, %v5953
      %v5973 = vmul.f32 %v5527, %v5953
      %v5974 = vmul.f32 %v5528, %v5953
      %v5975 = vmul.f32 %v5529, %v5953
      %v5976 = vmul.f32 %v5530, %v5953
      %v5977 = vmul.f32 %v5531, %v5953
      %v5978 = vmul.f32 %v5532, %v5953
      %v5979 = vmul.f32 %v5533, %v5953
      %v5980 = vmul.f32 %v5534, %v5953
      %v5981 = vmul.f32 %v5535, %v5953
      %v5982 = vmul.f32 %v5536, %v5953
      %v5983 = vmul.f32 %v5537, %v5953
      %v5984 = vmul.f32 %v5538, %v5953
      %v5985 = vmul.f32 %v5539, %v5953
      %5987 = vrot.lane.b32.xlu0 %v5948, 4
      %v5988 = vpop.permute.xlu0 %5987
      %v5990 = vmul.f32 %v5941, %v5988
      %v5991 = vlaneseq
      %v5992 = vshrl.u32 %v5991, 7
      %v5993 = vsub.s32 0, %v5992
      %v5994 = vrot.slane %v5990, %v5993
      %v5995 = vmul.f32 %v5508, %v5994
      %v5996 = vmul.f32 %v5509, %v5994
      %v5997 = vmul.f32 %v5510, %v5994
      %v5998 = vmul.f32 %v5511, %v5994
      %v5999 = vmul.f32 %v5512, %v5994
      %v6000 = vmul.f32 %v5513, %v5994
      %v6001 = vmul.f32 %v5514, %v5994
      %v6002 = vmul.f32 %v5515, %v5994
      %v6003 = vmul.f32 %v5516, %v5994
      %v6004 = vmul.f32 %v5517, %v5994
      %v6005 = vmul.f32 %v5518, %v5994
      %v6006 = vmul.f32 %v5519, %v5994
      %v6007 = vmul.f32 %v5520, %v5994
      %v6008 = vmul.f32 %v5521, %v5994
      %v6009 = vmul.f32 %v5522, %v5994
      %v6010 = vmul.f32 %v5523, %v5994
      %v6011 = vmul.f32 %v5524, %v5994
      %v6012 = vmul.f32 %v5525, %v5994
      %v6013 = vmul.f32 %v5526, %v5994
      %v6014 = vmul.f32 %v5527, %v5994
      %v6015 = vmul.f32 %v5528, %v5994
      %v6016 = vmul.f32 %v5529, %v5994
      %v6017 = vmul.f32 %v5530, %v5994
      %v6018 = vmul.f32 %v5531, %v5994
      %v6019 = vmul.f32 %v5532, %v5994
      %v6020 = vmul.f32 %v5533, %v5994
      %v6021 = vmul.f32 %v5534, %v5994
      %v6022 = vmul.f32 %v5535, %v5994
      %v6023 = vmul.f32 %v5536, %v5994
      %v6024 = vmul.f32 %v5537, %v5994
      %v6025 = vmul.f32 %v5538, %v5994
      %v6026 = vmul.f32 %v5539, %v5994
      %6059 = vrot.lane.b32.xlu0 %v5995, 124
      %v6060 = vpop.permute.xlu0 %6059
      %6061 = vrot.lane.b32.xlu0 %v5996, 124
      %v6062 = vpop.permute.xlu0 %6061
      %6063 = vrot.lane.b32.xlu0 %v5997, 124
      %v6064 = vpop.permute.xlu0 %6063
      %6065 = vrot.lane.b32.xlu0 %v5998, 124
      %v6066 = vpop.permute.xlu0 %6065
      %6067 = vrot.lane.b32.xlu0 %v5999, 124
      %v6068 = vpop.permute.xlu0 %6067
      %6069 = vrot.lane.b32.xlu0 %v6000, 124
      %v6070 = vpop.permute.xlu0 %6069
      %6071 = vrot.lane.b32.xlu0 %v6001, 124
      %v6072 = vpop.permute.xlu0 %6071
      %6073 = vrot.lane.b32.xlu0 %v6002, 124
      %v6074 = vpop.permute.xlu0 %6073
      %6075 = vrot.lane.b32.xlu0 %v6003, 124
      %v6076 = vpop.permute.xlu0 %6075
      %6077 = vrot.lane.b32.xlu0 %v6004, 124
      %v6078 = vpop.permute.xlu0 %6077
      %6079 = vrot.lane.b32.xlu0 %v6005, 124
      %v6080 = vpop.permute.xlu0 %6079
      %6081 = vrot.lane.b32.xlu0 %v6006, 124
      %v6082 = vpop.permute.xlu0 %6081
      %6083 = vrot.lane.b32.xlu0 %v6007, 124
      %v6084 = vpop.permute.xlu0 %6083
      %6085 = vrot.lane.b32.xlu0 %v6008, 124
      %v6086 = vpop.permute.xlu0 %6085
      %6087 = vrot.lane.b32.xlu0 %v6009, 124
      %v6088 = vpop.permute.xlu0 %6087
      %6089 = vrot.lane.b32.xlu0 %v6010, 124
      %v6090 = vpop.permute.xlu0 %6089
      %6091 = vrot.lane.b32.xlu0 %v6011, 124
      %v6092 = vpop.permute.xlu0 %6091
      %6093 = vrot.lane.b32.xlu0 %v6012, 124
      %v6094 = vpop.permute.xlu0 %6093
      %6095 = vrot.lane.b32.xlu0 %v6013, 124
      %v6096 = vpop.permute.xlu0 %6095
      %6097 = vrot.lane.b32.xlu0 %v6014, 124
      %v6098 = vpop.permute.xlu0 %6097
      %6099 = vrot.lane.b32.xlu0 %v6015, 124
      %v6100 = vpop.permute.xlu0 %6099
      %6101 = vrot.lane.b32.xlu0 %v6016, 124
      %v6102 = vpop.permute.xlu0 %6101
      %6103 = vrot.lane.b32.xlu0 %v6017, 124
      %v6104 = vpop.permute.xlu0 %6103
      %6105 = vrot.lane.b32.xlu0 %v6018, 124
      %v6106 = vpop.permute.xlu0 %6105
      %6107 = vrot.lane.b32.xlu0 %v6019, 124
      %v6108 = vpop.permute.xlu0 %6107
      %6109 = vrot.lane.b32.xlu0 %v6020, 124
      %v6110 = vpop.permute.xlu0 %6109
      %6111 = vrot.lane.b32.xlu0 %v6021, 124
      %v6112 = vpop.permute.xlu0 %6111
      %6113 = vrot.lane.b32.xlu0 %v6022, 124
      %v6114 = vpop.permute.xlu0 %6113
      %6115 = vrot.lane.b32.xlu0 %v6023, 124
      %v6116 = vpop.permute.xlu0 %6115
      %6117 = vrot.lane.b32.xlu0 %v6024, 124
      %v6118 = vpop.permute.xlu0 %6117
      %6119 = vrot.lane.b32.xlu0 %v6025, 124
      %v6120 = vpop.permute.xlu0 %6119
      %6121 = vrot.lane.b32.xlu0 %v6026, 124
      %v6122 = vpop.permute.xlu0 %6121
      %v6155 = vadd.f32 %v5954, %v6060
      %v6156 = vadd.f32 %v5955, %v6062
      %v6157 = vadd.f32 %v5956, %v6064
      %v6158 = vadd.f32 %v5957, %v6066
      %v6159 = vadd.f32 %v5958, %v6068
      %v6160 = vadd.f32 %v5959, %v6070
      %v6161 = vadd.f32 %v5960, %v6072
      %v6162 = vadd.f32 %v5961, %v6074
      %v6163 = vadd.f32 %v5962, %v6076
      %v6164 = vadd.f32 %v5963, %v6078
      %v6165 = vadd.f32 %v5964, %v6080
      %v6166 = vadd.f32 %v5965, %v6082
      %v6167 = vadd.f32 %v5966, %v6084
      %v6168 = vadd.f32 %v5967, %v6086
      %v6169 = vadd.f32 %v5968, %v6088
      %v6170 = vadd.f32 %v5969, %v6090
      %v6171 = vadd.f32 %v5970, %v6092
      %v6172 = vadd.f32 %v5971, %v6094
      %v6173 = vadd.f32 %v5972, %v6096
      %v6174 = vadd.f32 %v5973, %v6098
      %v6175 = vadd.f32 %v5974, %v6100
      %v6176 = vadd.f32 %v5975, %v6102
      %v6177 = vadd.f32 %v5976, %v6104
      %v6178 = vadd.f32 %v5977, %v6106
      %v6179 = vadd.f32 %v5978, %v6108
      %v6180 = vadd.f32 %v5979, %v6110
      %v6181 = vadd.f32 %v5980, %v6112
      %v6182 = vadd.f32 %v5981, %v6114
      %v6183 = vadd.f32 %v5982, %v6116
      %v6184 = vadd.f32 %v5983, %v6118
      %v6185 = vadd.f32 %v5984, %v6120
      %v6186 = vadd.f32 %v5985, %v6122
      %6187 = vst.msk [vmem:[%s305] sm:$0xff] %vm306, %v6155
      %6188 = vst.msk [vmem:[%s305 + $0x8] sm:$0xff] %vm306, %v6156
      %6189 = vst.msk [vmem:[%s305 + $0x10] sm:$0xff] %vm306, %v6157
      %6190 = vst.msk [vmem:[%s305 + $0x18] sm:$0xff] %vm306, %v6158
      %6191 = vst.msk [vmem:[%s305 + $0x20] sm:$0xff] %vm306, %v6159
      %6192 = vst.msk [vmem:[%s305 + $0x28] sm:$0xff] %vm306, %v6160
      %6193 = vst.msk [vmem:[%s305 + $0x30] sm:$0xff] %vm306, %v6161
      %6194 = vst.msk [vmem:[%s305 + $0x38] sm:$0xff] %vm306, %v6162
      %6195 = vst.msk [vmem:[%s305 + $0x40] sm:$0xff] %vm306, %v6163
      %6196 = vst.msk [vmem:[%s305 + $0x48] sm:$0xff] %vm306, %v6164
      %6197 = vst.msk [vmem:[%s305 + $0x50] sm:$0xff] %vm306, %v6165
      %6198 = vst.msk [vmem:[%s305 + $0x58] sm:$0xff] %vm306, %v6166
      %6199 = vst.msk [vmem:[%s305 + $0x60] sm:$0xff] %vm306, %v6167
      %6200 = vst.msk [vmem:[%s305 + $0x68] sm:$0xff] %vm306, %v6168
      %6201 = vst.msk [vmem:[%s305 + $0x70] sm:$0xff] %vm306, %v6169
      %6202 = vst.msk [vmem:[%s305 + $0x78] sm:$0xff] %vm306, %v6170
      %6203 = vst.msk [vmem:[%s305 + $0x80] sm:$0xff] %vm306, %v6171
      %6204 = vst.msk [vmem:[%s305 + $0x88] sm:$0xff] %vm306, %v6172
      %6205 = vst.msk [vmem:[%s305 + $0x90] sm:$0xff] %vm306, %v6173
      %6206 = vst.msk [vmem:[%s305 + $0x98] sm:$0xff] %vm306, %v6174
      %6207 = vst.msk [vmem:[%s305 + $0xa0] sm:$0xff] %vm306, %v6175
      %6208 = vst.msk [vmem:[%s305 + $0xa8] sm:$0xff] %vm306, %v6176
      %6209 = vst.msk [vmem:[%s305 + $0xb0] sm:$0xff] %vm306, %v6177
      %6210 = vst.msk [vmem:[%s305 + $0xb8] sm:$0xff] %vm306, %v6178
      %6211 = vst.msk [vmem:[%s305 + $0xc0] sm:$0xff] %vm306, %v6179
      %6212 = vst.msk [vmem:[%s305 + $0xc8] sm:$0xff] %vm306, %v6180
      %6213 = vst.msk [vmem:[%s305 + $0xd0] sm:$0xff] %vm306, %v6181
      %6214 = vst.msk [vmem:[%s305 + $0xd8] sm:$0xff] %vm306, %v6182
      %6215 = vst.msk [vmem:[%s305 + $0xe0] sm:$0xff] %vm306, %v6183
      %6216 = vst.msk [vmem:[%s305 + $0xe8] sm:$0xff] %vm306, %v6184
      %6217 = vst.msk [vmem:[%s305 + $0xf0] sm:$0xff] %vm306, %v6185
      %6218 = vst.msk [vmem:[%s305 + $0xf8] sm:$0xff] %vm306, %v6186
      %p6219 = scmp.lt.s32.totalorder %s19, 1
      %s6220 = scalar_select %p6219, %s19, 1
      %s6221 = smul.addr %s6220, 32
      %s6222 = smul.addr %s6221, 8
      %s6223 = scalar_lea.vmem %s8, %s6222
      // Predicated region
      $region53: #{ske_conv_pallas.1} parent=51 // pred_check
        %p6224 = pneg %p210
      $region54: #{ske_conv_pallas.1} parent=51 // pred_check_branch
        %6226 = sbr.rel (%p6224) target = $region56
      $region55: #{ske_conv_pallas.1} parent=51 // pred_region
        _
      $region56: #{ske_conv_pallas.1} parent=51 // pred_fallthru
        _
    $region52: #{ske_conv_pallas.1} parent=5 // pred_fallthru
      _
    %p6227 = scmp.le.s32.totalorder 2, %s14
    // Predicated region
    $region57: #{ske_conv_pallas.1} parent=5 // pred_check
      %p6228 = pneg %p6227
    $region58: #{ske_conv_pallas.1} parent=5 // pred_check_branch
      %6230 = sbr.rel (%p6228) target = $region60
    $region59: #{ske_conv_pallas.1} parent=5 // pred_region
      %s6231 = ssub.s32 %s14, 2
      // Predicated region
      $region61: #{ske_conv_pallas.1} parent=59 // pred_check
        %p6232 = pneg %p216
      $region62: #{ske_conv_pallas.1} parent=59 // pred_check_branch
        %6234 = sbr.rel (%p6232) target = $region64
      $region63: #{ske_conv_pallas.1} parent=59 // pred_region
        %p6235 = scmp.lt.s32.totalorder %s20, 1
        %s6236 = scalar_select %p6235, %s20, 1
        %s6237 = smul.addr %s6236, 32
        %s6238 = smul.addr %s6237, 8
        %s6239 = scalar_lea.vmem %s8, %s6238
      $region64: #{ske_conv_pallas.1} parent=59 // pred_fallthru
        _
    $region60: #{ske_conv_pallas.1} parent=5 // pred_fallthru
      _
  $region6: #{ske_conv_pallas.1} parent=0 // loop_footer
    %s18 = sadd.s32 1, %s14
  $region7: #{ske_conv_pallas.1} parent=0 // loop_footer_branch
    %13 = sbr.rel target = $region3
  $region8: #{ske_conv_pallas.1} parent=0 // loop_exit
    _

</llo_original>
